<compile_context>
chip_gen: v7x
topology: tpu7x:2x2x1
jax: 0.10.0
libtpu: 0.0.40
codegen_flags: <defaults>
</compile_context>

<pallas_src>
import functools

import jax
import jax.numpy as jnp
from jax.experimental import pallas as pl
from jax.experimental.pallas import tpu as pltpu


# ---------------- in-kernel helpers (traced inside the Pallas body) ----------------

def _group_norm_lane_dense(x, gm, gmt, gamma_row, beta_row, n_groups, eps):
    """GroupNorm on the lane-dense view.  x: (Bt, H, W*C) f32.
    gm: (W*C, G) 0/1 lane->group matrix, gmt: (G, W*C) its transpose,
    gamma_row/beta_row: (1, W*C) per-lane affine rows."""
    Bt, H, WC = x.shape
    inv_cnt = 1.0 / float(H * WC // n_groups)            # elements per (sample, group)
    s1 = jnp.sum(x, axis=1)                              # (Bt, W*C) per-lane sums
    s2 = jnp.sum(x * x, axis=1)                          # (Bt, W*C)
    gsum = jnp.dot(s1, gm, preferred_element_type=jnp.float32)   # (Bt, G)
    gsq = jnp.dot(s2, gm, preferred_element_type=jnp.float32)    # (Bt, G)
    mean = gsum * inv_cnt
    var = jnp.maximum(gsq * inv_cnt - mean * mean, 0.0)  # guard single-pass cancellation
    rstd = jax.lax.rsqrt(var + eps)
    mean_row = jnp.dot(mean, gmt, preferred_element_type=jnp.float32)  # (Bt, W*C)
    rstd_row = jnp.dot(rstd, gmt, preferred_element_type=jnp.float32)
    xn = (x - mean_row[:, None, :]) * rstd_row[:, None, :]
    return xn * gamma_row + beta_row                     # rows broadcast over (Bt, H)


def _swish(x, beta):
    z = x if beta == 1.0 else beta * x
    return x * jax.nn.sigmoid(z)                         # sigmoid -> EUP slot


def _conv3x3_banded(x, w_ref, bias_row, mxu_dtype):
    """3x3 'same' conv on the lane-dense view.
    x: (Bt, H, W*Cin); w_ref: (3, W*Cin, W*Cout) banded-in-W weights;
    bias_row: (1, W*Cout).
    H-taps are XLU sublane rolls + VPU border masks (exact, MXU stays free for the
    actual conv contractions)."""
    Bt, H, WCin = x.shape
    WCout = w_ref.shape[-1]
    n = Bt * H
    x2 = x.reshape(n, WCin)

    # Row index within each sample; zero the rows that would read across the H border
    # (this also kills cross-sample leakage from the circular roll).
    row = jax.lax.broadcasted_iota(jnp.int32, (n, 1), 0) % H
    x_up = jnp.where(row == 0, 0.0, pltpu.roll(x2, 1, 0))         # row h -> input h-1
    x_dn = jnp.where(row == H - 1, 0.0, pltpu.roll(x2, n - 1, 0))  # row h -> input h+1

    w0 = w_ref[0].astype(mxu_dtype)
    w1 = w_ref[1].astype(mxu_dtype)
    w2 = w_ref[2].astype(mxu_dtype)
    acc = jnp.dot(x_up.astype(mxu_dtype), w0, preferred_element_type=jnp.float32)
    acc = acc + jnp.dot(x2.astype(mxu_dtype), w1, preferred_element_type=jnp.float32)
    acc = acc + jnp.dot(x_dn.astype(mxu_dtype), w2, preferred_element_type=jnp.float32)
    return acc.reshape(Bt, H, WCout) + bias_row


# ---------------- the Pallas kernel (bt samples per grid step) ----------------

def _resblock_kernel(*refs, n_groups, use_shortcut_conv, swish_beta, eps, mxu_dtype):
    if use_shortcut_conv:
        (x_ref,
         g1_ref, b1_ref, gm1_ref, gmt1_ref, w1_ref, bb1_ref,
         g2_ref, b2_ref, gm2_ref, gmt2_ref, w2_ref, bb2_ref,
         ws_ref, bs_ref, o_ref) = refs
    else:
        (x_ref,
         g1_ref, b1_ref, gm1_ref, gmt1_ref, w1_ref, bb1_ref,
         g2_ref, b2_ref, gm2_ref, gmt2_ref, w2_ref, bb2_ref,
         o_ref) = refs
        ws_ref = bs_ref = None

    x = x_ref[...].astype(jnp.float32)                   # (Bt, H, W*Cin)

    h = _group_norm_lane_dense(x, gm1_ref[...], gmt1_ref[...],
                               g1_ref[...], b1_ref[...], n_groups, eps)
    h = _swish(h, swish_beta)
    h = _conv3x3_banded(h, w1_ref, bb1_ref[...], mxu_dtype)

    h = _group_norm_lane_dense(h, gm2_ref[...], gmt2_ref[...],
                               g2_ref[...], b2_ref[...], n_groups, eps)
    h = _swish(h, swish_beta)
    # nn.Dropout(p=0.1) is the identity in eval mode.
    # TODO(synk): training-mode dropout would use pltpu.prng_seed / prng_random_bits.
    h = _conv3x3_banded(h, w2_ref, bb2_ref[...], mxu_dtype)

    if use_shortcut_conv:
        Bt, H, WCin = x.shape
        WCout = ws_ref.shape[-1]
        sc = jnp.dot(x.reshape(Bt * H, WCin).astype(mxu_dtype),
                     ws_ref[...].astype(mxu_dtype),
                     preferred_element_type=jnp.float32)
        sc = sc.reshape(Bt, H, WCout) + bs_ref[...]
    else:
        sc = x

    o_ref[...] = (h + sc).astype(o_ref.dtype)


# ---------------- wrapper-side parameter preprocessing (plain JAX, tiny) ------------

def _banded_conv_weights(w_hwio, W):
    """(3,3,Cin,Cout) HWIO -> (3, W*Cin, W*Cout): folds the W-taps and 'same' W-padding
    into one banded matrix per H-tap (zero blocks at the W borders)."""
    KH, KW, Cin, Cout = w_hwio.shape
    wi = jnp.arange(W)
    wo = jnp.arange(W)
    big = jnp.zeros((KH, W, Cin, W, Cout), w_hwio.dtype)
    for dh in range(KH):
        for dw in range(KW):
            band = (wi[:, None] == wo[None, :] + (dw - 1)).astype(w_hwio.dtype)
            big = big.at[dh].add(band[:, None, :, None] *
                                 w_hwio[dh, dw][None, :, None, :])
    return big.reshape(KH, W * Cin, W * Cout)


def _blockdiag_1x1_weights(ws, W):
    """(Cin, Cout) 1x1-conv weights -> block-diagonal (W*Cin, W*Cout)."""
    Cin, Cout = ws.shape
    eye = jnp.eye(W, dtype=ws.dtype)
    return (eye[:, None, :, None] * ws[None, :, None, :]).reshape(W * Cin, W * Cout)


def _group_matrices(W, C, n_groups, dtype=jnp.float32):
    """0/1 matrices mapping lane index w*C+c to its group (and back)."""
    ch = jnp.arange(W * C) % C
    grp = ch // (C // n_groups)
    gm = (grp[:, None] == jnp.arange(n_groups)[None, :]).astype(dtype)   # (W*C, G)
    return gm, gm.T                                                      # (G, W*C)


def _tile_row(v, W):
    """(1, C) per-channel vector -> (1, W*C) per-lane row (lane index = w*C + c)."""
    return jnp.tile(v.reshape(1, -1), (1, W))


def _choose_bt(B, H, *, target_m=128, min_grid=2):
    """Largest divisor bt of B with bt*H <= target_m (fill the MXU M dim) while
    keeping B // bt >= min_grid (>= 1 step per v7x TensorCore)."""
    best = 1
    for bt in range(1, B + 1):
        if B % bt == 0 and bt * H <= target_m and B // bt >= min_grid:
            best = bt
    return best


# ---------------- public wrappers ----------------

def residual_block_nhwc(x_nhwc, params, n_groups, *, bt=None, swish_beta=1.0,
                        eps=1e-5, mxu_dtype=jnp.bfloat16, vmem_limit_bytes=None):
    """x_nhwc: (B, H, W, Cin) float32 -> (B, H, W, Cout) float32.
    mxu_dtype: operand dtype for the conv / shortcut matmuls (accumulation is always
    f32).  bfloat16 (default) gives native MXU throughput on v5e/v6e/v7x; use
    jnp.float32 for exact parity with an f32 reference."""
    B, H, W, Cin = x_nhwc.shape
    w1, bw1 = params["w1"], params["bw1"]                # (3,3,Cin,Cout), (1,Cout)
    w2, bw2 = params["w2"], params["bw2"]                # (3,3,Cout,Cout), (1,Cout)
    g1, b1 = params["g1"], params["b1"]                  # (1,Cin)
    g2, b2 = params["g2"], params["b2"]                  # (1,Cout)
    Cout = w1.shape[-1]
    use_shortcut_conv = (Cin != Cout)

    if bt is None:
        bt = _choose_bt(B, H)
    assert B % bt == 0, "batch must be divisible by bt"
    assert Cin % n_groups == 0 and Cout % n_groups == 0

    x2d = x_nhwc.reshape(B, H, W * Cin)                  # lane-dense view (free reshape)

    gm1, gmt1 = _group_matrices(W, Cin, n_groups)
    gm2, gmt2 = _group_matrices(W, Cout, n_groups)
    g1r, b1r = _tile_row(g1, W), _tile_row(b1, W)
    g2r, b2r = _tile_row(g2, W), _tile_row(b2, W)
    # Pre-cast the (large) banded conv weights to the MXU operand dtype: halves the
    # weight DMA and resident VMEM when mxu_dtype is bf16.
    wbig1 = _banded_conv_weights(w1, W).astype(mxu_dtype)
    wbig2 = _banded_conv_weights(w2, W).astype(mxu_dtype)
    bb1, bb2 = _tile_row(bw1, W), _tile_row(bw2, W)

    inputs = [x2d, g1r, b1r, gm1, gmt1, wbig1, bb1,
              g2r, b2r, gm2, gmt2, wbig2, bb2]
    if use_shortcut_conv:
        ws, bs = params["ws"], params["bs"]              # (Cin,Cout), (1,Cout)
        inputs += [_blockdiag_1x1_weights(ws, W).astype(mxu_dtype), _tile_row(bs, W)]

    def full(a):
        return pl.BlockSpec(a.shape, lambda i, _nd=a.ndim: (0,) * _nd)

    in_specs = [pl.BlockSpec((bt, H, W * Cin), lambda i: (i, 0, 0))]
    in_specs += [full(a) for a in inputs[1:]]

    kernel = functools.partial(_resblock_kernel,
                               n_groups=n_groups,
                               use_shortcut_conv=use_shortcut_conv,
                               swish_beta=swish_beta,
                               eps=eps,
                               mxu_dtype=mxu_dtype)

    cp = dict(dimension_semantics=("parallel",))
    if vmem_limit_bytes is not None:
        cp["vmem_limit_bytes"] = vmem_limit_bytes

    out2d = pl.pallas_call(
        kernel,
        out_shape=jax.ShapeDtypeStruct((B, H, W * Cout), jnp.float32),
        grid_spec=pltpu.PrefetchScalarGridSpec(
            num_scalar_prefetch=0,
            grid=(B // bt,),
            in_specs=in_specs,
            out_specs=pl.BlockSpec((bt, H, W * Cout), lambda i: (i, 0, 0)),
        ),
        compiler_params=pltpu.CompilerParams(**cp),
    )(*inputs)

    return out2d.reshape(B, H, W, Cout)


def residual_block(x_nchw, params, n_groups, **kw):
    """PyTorch-layout entry: (B, Cin, H, W) -> (B, Cout, H, W).
    In a full network prefer residual_block_nhwc (stay NHWC / lane-dense throughout)
    to avoid the two boundary transposes and their extra HBM passes."""
    x = jnp.transpose(x_nchw, (0, 2, 3, 1))
    y = residual_block_nhwc(x, params, n_groups, **kw)
    return jnp.transpose(y, (0, 3, 1, 2))


# ---------------- pure-JAX reference (for correctness check) ----------------

def _ref_group_norm_nchw(x, gamma, beta, n_groups, eps=1e-5):
    B, C, H, W = x.shape
    xg = x.reshape(B, n_groups, (C // n_groups) * H * W)
    mu = xg.mean(axis=-1, keepdims=True)
    var = ((xg - mu) ** 2).mean(axis=-1, keepdims=True)
    xn = ((xg - mu) * jax.lax.rsqrt(var + eps)).reshape(B, C, H, W)
    return xn * gamma.reshape(1, C, 1, 1) + beta.reshape(1, C, 1, 1)


def _ref_conv_nchw(x, w_hwio, b, pad):
    y = jax.lax.conv_general_dilated(
        x, w_hwio, window_strides=(1, 1), padding=[(pad, pad), (pad, pad)],
        dimension_numbers=("NCHW", "HWIO", "NCHW"))
    return y + b.reshape(1, -1, 1, 1)


def residual_block_ref(x, params, n_groups):
    h = _ref_group_norm_nchw(x, params["g1"][0], params["b1"][0], n_groups)
    h = h * jax.nn.sigmoid(h)
    h = _ref_conv_nchw(h, params["w1"], params["bw1"][0], 1)
    h = _ref_group_norm_nchw(h, params["g2"][0], params["b2"][0], n_groups)
    h = h * jax.nn.sigmoid(h)
    h = _ref_conv_nchw(h, params["w2"], params["bw2"][0], 1)
    if "ws" in params:
        Cin, Cout = params["ws"].shape
        sc = _ref_conv_nchw(x, params["ws"].reshape(1, 1, Cin, Cout),
                            params["bs"][0], 0)
    else:
        sc = x
    return h + sc


# ---------------- demo ----------------

def _make_params(key, Cin, Cout):
    ks = jax.random.split(key, 10)
    f32 = jnp.float32
    p = {
        "g1": 1.0 + 0.1 * jax.random.normal(ks[0], (1, Cin), f32),
        "b1": 0.1 * jax.random.normal(ks[1], (1, Cin), f32),
        "w1": 0.1 * jax.random.normal(ks[2], (3, 3, Cin, Cout), f32),
        "bw1": 0.1 * jax.random.normal(ks[3], (1, Cout), f32),
        "g2": 1.0 + 0.1 * jax.random.normal(ks[4], (1, Cout), f32),
        "b2": 0.1 * jax.random.normal(ks[5], (1, Cout), f32),
        "w2": 0.1 * jax.random.normal(ks[6], (3, 3, Cout, Cout), f32),
        "bw2": 0.1 * jax.random.normal(ks[7], (1, Cout), f32),
    }
    if Cin != Cout:
        p["ws"] = 0.1 * jax.random.normal(ks[8], (Cin, Cout), f32)
        p["bs"] = 0.1 * jax.random.normal(ks[9], (1, Cout), f32)
    return p


if __name__ == "__main__":
    key = jax.random.PRNGKey(0)
    k_x1, k_p1, k_x2, k_p2 = jax.random.split(key, 4)
    n_groups = 4  # must divide both Cin and Cout

    # Case 1: Cin != Cout -> 1x1-conv shortcut.  bt is auto-selected (bt=8) so the
    # matmul M = bt*H = 128 fills the MXU rows while the grid stays >= 2 (one step per
    # v7x TensorCore).  mxu_dtype=f32 here for tight parity with the f32 reference.
    B, Cin, Cout, H, W = 16, 8, 16, 16, 16
    x = jax.random.normal(k_x1, (B, Cin, H, W), jnp.float32)
    params = _make_params(k_p1, Cin, Cout)
    out = jax.block_until_ready(
        residual_block(x, params, n_groups, mxu_dtype=jnp.float32))
    ref = jax.block_until_ready(residual_block_ref(x, params, n_groups))
    assert out.shape == (B, Cout, H, W)
    err1 = float(jnp.max(jnp.abs(out - ref)))
    assert jnp.allclose(out, ref, rtol=1e-3, atol=1e-3), err1

    # Case 2: Cin == Cout -> identity shortcut (ws/bs not passed at all); default
    # bf16 MXU operands (f32 accumulation), so differences vs the f32 reference are
    # at the bf16-truncation level (~1e-2).
    B2, C2 = 8, 16
    x2 = jax.random.normal(k_x2, (B2, C2, H, W), jnp.float32)
    params2 = _make_params(k_p2, C2, C2)
    out2 = jax.block_until_ready(residual_block(x2, params2, n_groups))   # bt auto -> 4
    ref2 = jax.block_until_ready(residual_block_ref(x2, params2, n_groups))
    err2 = float(jnp.max(jnp.abs(out2 - ref2)))
    assert jnp.allclose(out2, ref2, rtol=5e-2, atol=5e-2), err2

    print("KERNEL_OK")
</pallas_src>

<mosaic_0001>
module attributes {stable_mosaic.version = 11 : i64} {
  func.func @_resblock_kernel(%arg0: i32, %arg1: memref<8x16x128xf32, #tpu.memory_space<vmem>>, %arg2: memref<1x128xf32, #tpu.memory_space<vmem>>, %arg3: memref<1x128xf32, #tpu.memory_space<vmem>>, %arg4: memref<128x4xf32, #tpu.memory_space<vmem>>, %arg5: memref<4x128xf32, #tpu.memory_space<vmem>>, %arg6: memref<3x128x256xf32, #tpu.memory_space<vmem>>, %arg7: memref<1x256xf32, #tpu.memory_space<vmem>>, %arg8: memref<1x256xf32, #tpu.memory_space<vmem>>, %arg9: memref<1x256xf32, #tpu.memory_space<vmem>>, %arg10: memref<256x4xf32, #tpu.memory_space<vmem>>, %arg11: memref<4x256xf32, #tpu.memory_space<vmem>>, %arg12: memref<3x256x256xf32, #tpu.memory_space<vmem>>, %arg13: memref<1x256xf32, #tpu.memory_space<vmem>>, %arg14: memref<128x256xf32, #tpu.memory_space<vmem>>, %arg15: memref<1x256xf32, #tpu.memory_space<vmem>>, %arg16: memref<8x16x256xf32, #tpu.memory_space<vmem>>) attributes {dimension_semantics = [#tpu.dimension_semantics<parallel>], iteration_bounds = array<i64: 2>, scalar_prefetch = 0 : i64, scratch_operands = 0 : i64, tpu.core_type = #tpu.core_type<tc>, window_params = [{transform_indices = @transform_0, window_bounds = array<i64: 8, 16, 128>}, {pipeline_mode = #tpu.pipeline_mode<synchronous>, transform_indices = @transform_1, window_bounds = array<i64: 1, 128>}, {pipeline_mode = #tpu.pipeline_mode<synchronous>, transform_indices = @transform_2, window_bounds = array<i64: 1, 128>}, {pipeline_mode = #tpu.pipeline_mode<synchronous>, transform_indices = @transform_3, window_bounds = array<i64: 128, 4>}, {pipeline_mode = #tpu.pipeline_mode<synchronous>, transform_indices = @transform_4, window_bounds = array<i64: 4, 128>}, {pipeline_mode = #tpu.pipeline_mode<synchronous>, transform_indices = @transform_5, window_bounds = array<i64: 3, 128, 256>}, {pipeline_mode = #tpu.pipeline_mode<synchronous>, transform_indices = @transform_6, window_bounds = array<i64: 1, 256>}, {pipeline_mode = #tpu.pipeline_mode<synchronous>, transform_indices = @transform_7, window_bounds = array<i64: 1, 256>}, {pipeline_mode = #tpu.pipeline_mode<synchronous>, transform_indices = @transform_8, window_bounds = array<i64: 1, 256>}, {pipeline_mode = #tpu.pipeline_mode<synchronous>, transform_indices = @transform_9, window_bounds = array<i64: 256, 4>}, {pipeline_mode = #tpu.pipeline_mode<synchronous>, transform_indices = @transform_10, window_bounds = array<i64: 4, 256>}, {pipeline_mode = #tpu.pipeline_mode<synchronous>, transform_indices = @transform_11, window_bounds = array<i64: 3, 256, 256>}, {pipeline_mode = #tpu.pipeline_mode<synchronous>, transform_indices = @transform_12, window_bounds = array<i64: 1, 256>}, {pipeline_mode = #tpu.pipeline_mode<synchronous>, transform_indices = @transform_13, window_bounds = array<i64: 128, 256>}, {pipeline_mode = #tpu.pipeline_mode<synchronous>, transform_indices = @transform_14, window_bounds = array<i64: 1, 256>}, {transform_indices = @transform_15, window_bounds = array<i64: 8, 16, 256>}]} {
    %c0 = arith.constant 0 : index
    %c0_0 = arith.constant 0 : index
    %c0_1 = arith.constant 0 : index
    %0 = vector.load %arg1[%c0, %c0_0, %c0_1] : memref<8x16x128xf32, #tpu.memory_space<vmem>>, vector<8x16x128xf32>
    %c0_2 = arith.constant 0 : index
    %c0_3 = arith.constant 0 : index
    %1 = vector.load %arg4[%c0_2, %c0_3] : memref<128x4xf32, #tpu.memory_space<vmem>>, vector<128x4xf32>
    %c0_4 = arith.constant 0 : index
    %c0_5 = arith.constant 0 : index
    %2 = vector.load %arg5[%c0_4, %c0_5] : memref<4x128xf32, #tpu.memory_space<vmem>>, vector<4x128xf32>
    %c0_6 = arith.constant 0 : index
    %c0_7 = arith.constant 0 : index
    %3 = vector.load %arg2[%c0_6, %c0_7] : memref<1x128xf32, #tpu.memory_space<vmem>>, vector<1x128xf32>
    %c0_8 = arith.constant 0 : index
    %c0_9 = arith.constant 0 : index
    %4 = vector.load %arg3[%c0_8, %c0_9] : memref<1x128xf32, #tpu.memory_space<vmem>>, vector<1x128xf32>
    %cst = arith.constant dense<0.000000e+00> : vector<8x128xf32>
    %5 = vector.multi_reduction <add>, %0, %cst [1] : vector<8x16x128xf32> to vector<8x128xf32>
    %6 = arith.mulf %0, %0 : vector<8x16x128xf32>
    %cst_10 = arith.constant dense<0.000000e+00> : vector<8x128xf32>
    %7 = vector.multi_reduction <add>, %6, %cst_10 [1] : vector<8x16x128xf32> to vector<8x128xf32>
    %cst_11 = arith.constant dense<0.000000e+00> : vector<8x4xf32>
    %8 = tpu.matmul %5, %1, %cst_11 {dimension_numbers = #tpu.dot_dimension_numbers<[1], [0], [0], [1], [0, 0, 1, 1], [], []>} : vector<8x128xf32>, vector<128x4xf32>, vector<8x4xf32> -> vector<8x4xf32>
    %cst_12 = arith.constant dense<0.000000e+00> : vector<8x4xf32>
    %9 = tpu.matmul %7, %1, %cst_12 {dimension_numbers = #tpu.dot_dimension_numbers<[1], [0], [0], [1], [0, 0, 1, 1], [], []>} : vector<8x128xf32>, vector<128x4xf32>, vector<8x4xf32> -> vector<8x4xf32>
    %cst_13 = arith.constant 0.001953125 : f32
    %10 = vector.broadcast %cst_13 : f32 to vector<8x4xf32>
    %11 = arith.mulf %8, %10 : vector<8x4xf32>
    %cst_14 = arith.constant 0.001953125 : f32
    %12 = vector.broadcast %cst_14 : f32 to vector<8x4xf32>
    %13 = arith.mulf %9, %12 : vector<8x4xf32>
    %14 = arith.mulf %11, %11 : vector<8x4xf32>
    %15 = arith.subf %13, %14 : vector<8x4xf32>
    %cst_15 = arith.constant 0.000000e+00 : f32
    %16 = vector.broadcast %cst_15 : f32 to vector<8x4xf32>
    %17 = arith.maximumf %15, %16 : vector<8x4xf32>
    %cst_16 = arith.constant 9.99999974E-6 : f32
    %18 = vector.broadcast %cst_16 : f32 to vector<8x4xf32>
    %19 = arith.addf %17, %18 : vector<8x4xf32>
    %20 = math.rsqrt %19 : vector<8x4xf32>
    %cst_17 = arith.constant dense<0.000000e+00> : vector<8x128xf32>
    %21 = tpu.matmul %11, %2, %cst_17 {dimension_numbers = #tpu.dot_dimension_numbers<[1], [0], [0], [1], [0, 0, 1, 1], [], []>} : vector<8x4xf32>, vector<4x128xf32>, vector<8x128xf32> -> vector<8x128xf32>
    %cst_18 = arith.constant dense<0.000000e+00> : vector<8x128xf32>
    %22 = tpu.matmul %20, %2, %cst_18 {dimension_numbers = #tpu.dot_dimension_numbers<[1], [0], [0], [1], [0, 0, 1, 1], [], []>} : vector<8x4xf32>, vector<4x128xf32>, vector<8x128xf32> -> vector<8x128xf32>
    %23 = vector.shape_cast %21 : vector<8x128xf32> to vector<8x1x128xf32>
    %24 = vector.broadcast %23 : vector<8x1x128xf32> to vector<8x16x128xf32>
    %25 = arith.subf %0, %24 : vector<8x16x128xf32>
    %26 = vector.shape_cast %22 : vector<8x128xf32> to vector<8x1x128xf32>
    %27 = vector.broadcast %26 : vector<8x1x128xf32> to vector<8x16x128xf32>
    %28 = arith.mulf %25, %27 : vector<8x16x128xf32>
    %29 = vector.shape_cast %3 : vector<1x128xf32> to vector<1x1x128xf32>
    %30 = vector.broadcast %29 : vector<1x1x128xf32> to vector<8x16x128xf32>
    %31 = arith.mulf %28, %30 : vector<8x16x128xf32>
    %32 = vector.shape_cast %4 : vector<1x128xf32> to vector<1x1x128xf32>
    %33 = vector.broadcast %32 : vector<1x1x128xf32> to vector<8x16x128xf32>
    %34 = arith.addf %31, %33 : vector<8x16x128xf32>
    %35 = arith.negf %34 : vector<8x16x128xf32>
    %36 = math.exp %35 : vector<8x16x128xf32>
    %cst_19 = arith.constant 1.000000e+00 : f32
    %37 = vector.broadcast %cst_19 : f32 to vector<8x16x128xf32>
    %38 = arith.addf %37, %36 : vector<8x16x128xf32>
    %39 = arith.divf %37, %38 : vector<8x16x128xf32>
    %40 = arith.mulf %34, %39 : vector<8x16x128xf32>
    %c0_20 = arith.constant 0 : index
    %c0_21 = arith.constant 0 : index
    %41 = vector.load %arg7[%c0_20, %c0_21] : memref<1x256xf32, #tpu.memory_space<vmem>>, vector<1x256xf32>
    %42 = vector.shape_cast %40 : vector<8x16x128xf32> to vector<128x128xf32>
    %43 = tpu.iota {dimensions = array<i32: 0>} : vector<128x1xi32>
    %c16_i32 = arith.constant 16 : i32
    %c0_i32 = arith.constant 0 : i32
    %44 = arith.cmpi eq, %c16_i32, %c0_i32 : i32
    %c1_i32 = arith.constant 1 : i32
    %45 = arith.select %44, %c1_i32, %c16_i32 : i32
    %46 = vector.broadcast %45 : i32 to vector<128x1xi32>
    %47 = arith.remsi %43, %46 : vector<128x1xi32>
    %c0_i32_22 = arith.constant 0 : i32
    %48 = vector.broadcast %c0_i32_22 : i32 to vector<128x1xi32>
    %49 = arith.cmpi ne, %47, %48 : vector<128x1xi32>
    %c0_i32_23 = arith.constant 0 : i32
    %50 = vector.broadcast %c0_i32_23 : i32 to vector<128x1xi32>
    %51 = arith.cmpi slt, %47, %50 : vector<128x1xi32>
    %c0_i32_24 = arith.constant 0 : i32
    %52 = arith.cmpi slt, %45, %c0_i32_24 : i32
    %53 = vector.broadcast %52 : i1 to vector<128x1xi1>
    %54 = vector.broadcast %53 : vector<128x1xi1> to vector<128x1xi1>
    %55 = arith.xori %51, %54 : vector<128x1xi1>
    %56 = arith.andi %55, %49 : vector<128x1xi1>
    %57 = vector.broadcast %45 : i32 to vector<128x1xi32>
    %58 = arith.addi %47, %57 : vector<128x1xi32>
    %59 = arith.select %56, %58, %47 : vector<128x1xi1>, vector<128x1xi32>
    %c0_i32_25 = arith.constant 0 : i32
    %60 = vector.broadcast %c0_i32_25 : i32 to vector<128x1xi32>
    %61 = arith.cmpi eq, %59, %60 : vector<128x1xi32>
    %c1_i32_26 = arith.constant 1 : i32
    %62 = tpu.dynamic_rotate %42 by %c1_i32_26 dim 0 : vector<128x128xf32>, i32 -> vector<128x128xf32>
    %cst_27 = arith.constant 0.000000e+00 : f32
    %63 = vector.shape_cast %61 : vector<128x1xi1> to vector<128x1xi1>
    %64 = vector.broadcast %63 : vector<128x1xi1> to vector<128x128xi1>
    %65 = vector.broadcast %cst_27 : f32 to vector<128x128xf32>
    %66 = arith.select %64, %65, %62 : vector<128x128xi1>, vector<128x128xf32>
    %c15_i32 = arith.constant 15 : i32
    %67 = vector.broadcast %c15_i32 : i32 to vector<128x1xi32>
    %68 = arith.cmpi eq, %59, %67 : vector<128x1xi32>
    %c127_i32 = arith.constant 127 : i32
    %69 = tpu.dynamic_rotate %42 by %c127_i32 dim 0 : vector<128x128xf32>, i32 -> vector<128x128xf32>
    %cst_28 = arith.constant 0.000000e+00 : f32
    %70 = vector.shape_cast %68 : vector<128x1xi1> to vector<128x1xi1>
    %71 = vector.broadcast %70 : vector<128x1xi1> to vector<128x128xi1>
    %72 = vector.broadcast %cst_28 : f32 to vector<128x128xf32>
    %73 = arith.select %71, %72, %69 : vector<128x128xi1>, vector<128x128xf32>
    %c0_29 = arith.constant 0 : index
    %c0_30 = arith.constant 0 : index
    %c0_31 = arith.constant 0 : index
    %74 = vector.load %arg6[%c0_29, %c0_30, %c0_31] : memref<3x128x256xf32, #tpu.memory_space<vmem>>, vector<1x128x256xf32>
    %75 = vector.shape_cast %74 : vector<1x128x256xf32> to vector<128x256xf32>
    %c1 = arith.constant 1 : index
    %c0_32 = arith.constant 0 : index
    %c0_33 = arith.constant 0 : index
    %76 = vector.load %arg6[%c1, %c0_32, %c0_33] : memref<3x128x256xf32, #tpu.memory_space<vmem>>, vector<1x128x256xf32>
    %77 = vector.shape_cast %76 : vector<1x128x256xf32> to vector<128x256xf32>
    %c2 = arith.constant 2 : index
    %c0_34 = arith.constant 0 : index
    %c0_35 = arith.constant 0 : index
    %78 = vector.load %arg6[%c2, %c0_34, %c0_35] : memref<3x128x256xf32, #tpu.memory_space<vmem>>, vector<1x128x256xf32>
    %79 = vector.shape_cast %78 : vector<1x128x256xf32> to vector<128x256xf32>
    %cst_36 = arith.constant dense<0.000000e+00> : vector<128x256xf32>
    %80 = tpu.matmul %66, %75, %cst_36 {dimension_numbers = #tpu.dot_dimension_numbers<[1], [0], [0], [1], [0, 0, 1, 1], [], []>} : vector<128x128xf32>, vector<128x256xf32>, vector<128x256xf32> -> vector<128x256xf32>
    %cst_37 = arith.constant dense<0.000000e+00> : vector<128x256xf32>
    %81 = tpu.matmul %42, %77, %cst_37 {dimension_numbers = #tpu.dot_dimension_numbers<[1], [0], [0], [1], [0, 0, 1, 1], [], []>} : vector<128x128xf32>, vector<128x256xf32>, vector<128x256xf32> -> vector<128x256xf32>
    %82 = arith.addf %80, %81 : vector<128x256xf32>
    %cst_38 = arith.constant dense<0.000000e+00> : vector<128x256xf32>
    %83 = tpu.matmul %73, %79, %cst_38 {dimension_numbers = #tpu.dot_dimension_numbers<[1], [0], [0], [1], [0, 0, 1, 1], [], []>} : vector<128x128xf32>, vector<128x256xf32>, vector<128x256xf32> -> vector<128x256xf32>
    %84 = arith.addf %82, %83 : vector<128x256xf32>
    %85 = vector.shape_cast %84 : vector<128x256xf32> to vector<8x16x256xf32>
    %86 = vector.shape_cast %41 : vector<1x256xf32> to vector<1x1x256xf32>
    %87 = vector.broadcast %86 : vector<1x1x256xf32> to vector<8x16x256xf32>
    %88 = arith.addf %85, %87 : vector<8x16x256xf32>
    %c0_39 = arith.constant 0 : index
    %c0_40 = arith.constant 0 : index
    %89 = vector.load %arg10[%c0_39, %c0_40] : memref<256x4xf32, #tpu.memory_space<vmem>>, vector<256x4xf32>
    %c0_41 = arith.constant 0 : index
    %c0_42 = arith.constant 0 : index
    %90 = vector.load %arg11[%c0_41, %c0_42] : memref<4x256xf32, #tpu.memory_space<vmem>>, vector<4x256xf32>
    %c0_43 = arith.constant 0 : index
    %c0_44 = arith.constant 0 : index
    %91 = vector.load %arg8[%c0_43, %c0_44] : memref<1x256xf32, #tpu.memory_space<vmem>>, vector<1x256xf32>
    %c0_45 = arith.constant 0 : index
    %c0_46 = arith.constant 0 : index
    %92 = vector.load %arg9[%c0_45, %c0_46] : memref<1x256xf32, #tpu.memory_space<vmem>>, vector<1x256xf32>
    %cst_47 = arith.constant dense<0.000000e+00> : vector<8x256xf32>
    %93 = vector.multi_reduction <add>, %88, %cst_47 [1] : vector<8x16x256xf32> to vector<8x256xf32>
    %94 = arith.mulf %88, %88 : vector<8x16x256xf32>
    %cst_48 = arith.constant dense<0.000000e+00> : vector<8x256xf32>
    %95 = vector.multi_reduction <add>, %94, %cst_48 [1] : vector<8x16x256xf32> to vector<8x256xf32>
    %cst_49 = arith.constant dense<0.000000e+00> : vector<8x4xf32>
    %96 = tpu.matmul %93, %89, %cst_49 {dimension_numbers = #tpu.dot_dimension_numbers<[1], [0], [0], [1], [0, 0, 1, 1], [], []>} : vector<8x256xf32>, vector<256x4xf32>, vector<8x4xf32> -> vector<8x4xf32>
    %cst_50 = arith.constant dense<0.000000e+00> : vector<8x4xf32>
    %97 = tpu.matmul %95, %89, %cst_50 {dimension_numbers = #tpu.dot_dimension_numbers<[1], [0], [0], [1], [0, 0, 1, 1], [], []>} : vector<8x256xf32>, vector<256x4xf32>, vector<8x4xf32> -> vector<8x4xf32>
    %cst_51 = arith.constant 9.765625E-4 : f32
    %98 = vector.broadcast %cst_51 : f32 to vector<8x4xf32>
    %99 = arith.mulf %96, %98 : vector<8x4xf32>
    %cst_52 = arith.constant 9.765625E-4 : f32
    %100 = vector.broadcast %cst_52 : f32 to vector<8x4xf32>
    %101 = arith.mulf %97, %100 : vector<8x4xf32>
    %102 = arith.mulf %99, %99 : vector<8x4xf32>
    %103 = arith.subf %101, %102 : vector<8x4xf32>
    %cst_53 = arith.constant 0.000000e+00 : f32
    %104 = vector.broadcast %cst_53 : f32 to vector<8x4xf32>
    %105 = arith.maximumf %103, %104 : vector<8x4xf32>
    %cst_54 = arith.constant 9.99999974E-6 : f32
    %106 = vector.broadcast %cst_54 : f32 to vector<8x4xf32>
    %107 = arith.addf %105, %106 : vector<8x4xf32>
    %108 = math.rsqrt %107 : vector<8x4xf32>
    %cst_55 = arith.constant dense<0.000000e+00> : vector<8x256xf32>
    %109 = tpu.matmul %99, %90, %cst_55 {dimension_numbers = #tpu.dot_dimension_numbers<[1], [0], [0], [1], [0, 0, 1, 1], [], []>} : vector<8x4xf32>, vector<4x256xf32>, vector<8x256xf32> -> vector<8x256xf32>
    %cst_56 = arith.constant dense<0.000000e+00> : vector<8x256xf32>
    %110 = tpu.matmul %108, %90, %cst_56 {dimension_numbers = #tpu.dot_dimension_numbers<[1], [0], [0], [1], [0, 0, 1, 1], [], []>} : vector<8x4xf32>, vector<4x256xf32>, vector<8x256xf32> -> vector<8x256xf32>
    %111 = vector.shape_cast %109 : vector<8x256xf32> to vector<8x1x256xf32>
    %112 = vector.broadcast %111 : vector<8x1x256xf32> to vector<8x16x256xf32>
    %113 = arith.subf %88, %112 : vector<8x16x256xf32>
    %114 = vector.shape_cast %110 : vector<8x256xf32> to vector<8x1x256xf32>
    %115 = vector.broadcast %114 : vector<8x1x256xf32> to vector<8x16x256xf32>
    %116 = arith.mulf %113, %115 : vector<8x16x256xf32>
    %117 = vector.shape_cast %91 : vector<1x256xf32> to vector<1x1x256xf32>
    %118 = vector.broadcast %117 : vector<1x1x256xf32> to vector<8x16x256xf32>
    %119 = arith.mulf %116, %118 : vector<8x16x256xf32>
    %120 = vector.shape_cast %92 : vector<1x256xf32> to vector<1x1x256xf32>
    %121 = vector.broadcast %120 : vector<1x1x256xf32> to vector<8x16x256xf32>
    %122 = arith.addf %119, %121 : vector<8x16x256xf32>
    %123 = arith.negf %122 : vector<8x16x256xf32>
    %124 = math.exp %123 : vector<8x16x256xf32>
    %cst_57 = arith.constant 1.000000e+00 : f32
    %125 = vector.broadcast %cst_57 : f32 to vector<8x16x256xf32>
    %126 = arith.addf %125, %124 : vector<8x16x256xf32>
    %127 = arith.divf %125, %126 : vector<8x16x256xf32>
    %128 = arith.mulf %122, %127 : vector<8x16x256xf32>
    %c0_58 = arith.constant 0 : index
    %c0_59 = arith.constant 0 : index
    %129 = vector.load %arg13[%c0_58, %c0_59] : memref<1x256xf32, #tpu.memory_space<vmem>>, vector<1x256xf32>
    %130 = vector.shape_cast %128 : vector<8x16x256xf32> to vector<128x256xf32>
    %131 = tpu.iota {dimensions = array<i32: 0>} : vector<128x1xi32>
    %c16_i32_60 = arith.constant 16 : i32
    %c0_i32_61 = arith.constant 0 : i32
    %132 = arith.cmpi eq, %c16_i32_60, %c0_i32_61 : i32
    %c1_i32_62 = arith.constant 1 : i32
    %133 = arith.select %132, %c1_i32_62, %c16_i32_60 : i32
    %134 = vector.broadcast %133 : i32 to vector<128x1xi32>
    %135 = arith.remsi %131, %134 : vector<128x1xi32>
    %c0_i32_63 = arith.constant 0 : i32
    %136 = vector.broadcast %c0_i32_63 : i32 to vector<128x1xi32>
    %137 = arith.cmpi ne, %135, %136 : vector<128x1xi32>
    %c0_i32_64 = arith.constant 0 : i32
    %138 = vector.broadcast %c0_i32_64 : i32 to vector<128x1xi32>
    %139 = arith.cmpi slt, %135, %138 : vector<128x1xi32>
    %c0_i32_65 = arith.constant 0 : i32
    %140 = arith.cmpi slt, %133, %c0_i32_65 : i32
    %141 = vector.broadcast %140 : i1 to vector<128x1xi1>
    %142 = vector.broadcast %141 : vector<128x1xi1> to vector<128x1xi1>
    %143 = arith.xori %139, %142 : vector<128x1xi1>
    %144 = arith.andi %143, %137 : vector<128x1xi1>
    %145 = vector.broadcast %133 : i32 to vector<128x1xi32>
    %146 = arith.addi %135, %145 : vector<128x1xi32>
    %147 = arith.select %144, %146, %135 : vector<128x1xi1>, vector<128x1xi32>
    %c0_i32_66 = arith.constant 0 : i32
    %148 = vector.broadcast %c0_i32_66 : i32 to vector<128x1xi32>
    %149 = arith.cmpi eq, %147, %148 : vector<128x1xi32>
    %c1_i32_67 = arith.constant 1 : i32
    %150 = tpu.dynamic_rotate %130 by %c1_i32_67 dim 0 : vector<128x256xf32>, i32 -> vector<128x256xf32>
    %cst_68 = arith.constant 0.000000e+00 : f32
    %151 = vector.shape_cast %149 : vector<128x1xi1> to vector<128x1xi1>
    %152 = vector.broadcast %151 : vector<128x1xi1> to vector<128x256xi1>
    %153 = vector.broadcast %cst_68 : f32 to vector<128x256xf32>
    %154 = arith.select %152, %153, %150 : vector<128x256xi1>, vector<128x256xf32>
    %c15_i32_69 = arith.constant 15 : i32
    %155 = vector.broadcast %c15_i32_69 : i32 to vector<128x1xi32>
    %156 = arith.cmpi eq, %147, %155 : vector<128x1xi32>
    %c127_i32_70 = arith.constant 127 : i32
    %157 = tpu.dynamic_rotate %130 by %c127_i32_70 dim 0 : vector<128x256xf32>, i32 -> vector<128x256xf32>
    %cst_71 = arith.constant 0.000000e+00 : f32
    %158 = vector.shape_cast %156 : vector<128x1xi1> to vector<128x1xi1>
    %159 = vector.broadcast %158 : vector<128x1xi1> to vector<128x256xi1>
    %160 = vector.broadcast %cst_71 : f32 to vector<128x256xf32>
    %161 = arith.select %159, %160, %157 : vector<128x256xi1>, vector<128x256xf32>
    %c0_72 = arith.constant 0 : index
    %c0_73 = arith.constant 0 : index
    %c0_74 = arith.constant 0 : index
    %162 = vector.load %arg12[%c0_72, %c0_73, %c0_74] : memref<3x256x256xf32, #tpu.memory_space<vmem>>, vector<1x256x256xf32>
    %163 = vector.shape_cast %162 : vector<1x256x256xf32> to vector<256x256xf32>
    %c1_75 = arith.constant 1 : index
    %c0_76 = arith.constant 0 : index
    %c0_77 = arith.constant 0 : index
    %164 = vector.load %arg12[%c1_75, %c0_76, %c0_77] : memref<3x256x256xf32, #tpu.memory_space<vmem>>, vector<1x256x256xf32>
    %165 = vector.shape_cast %164 : vector<1x256x256xf32> to vector<256x256xf32>
    %c2_78 = arith.constant 2 : index
    %c0_79 = arith.constant 0 : index
    %c0_80 = arith.constant 0 : index
    %166 = vector.load %arg12[%c2_78, %c0_79, %c0_80] : memref<3x256x256xf32, #tpu.memory_space<vmem>>, vector<1x256x256xf32>
    %167 = vector.shape_cast %166 : vector<1x256x256xf32> to vector<256x256xf32>
    %cst_81 = arith.constant dense<0.000000e+00> : vector<128x256xf32>
    %168 = tpu.matmul %154, %163, %cst_81 {dimension_numbers = #tpu.dot_dimension_numbers<[1], [0], [0], [1], [0, 0, 1, 1], [], []>} : vector<128x256xf32>, vector<256x256xf32>, vector<128x256xf32> -> vector<128x256xf32>
    %cst_82 = arith.constant dense<0.000000e+00> : vector<128x256xf32>
    %169 = tpu.matmul %130, %165, %cst_82 {dimension_numbers = #tpu.dot_dimension_numbers<[1], [0], [0], [1], [0, 0, 1, 1], [], []>} : vector<128x256xf32>, vector<256x256xf32>, vector<128x256xf32> -> vector<128x256xf32>
    %170 = arith.addf %168, %169 : vector<128x256xf32>
    %cst_83 = arith.constant dense<0.000000e+00> : vector<128x256xf32>
    %171 = tpu.matmul %161, %167, %cst_83 {dimension_numbers = #tpu.dot_dimension_numbers<[1], [0], [0], [1], [0, 0, 1, 1], [], []>} : vector<128x256xf32>, vector<256x256xf32>, vector<128x256xf32> -> vector<128x256xf32>
    %172 = arith.addf %170, %171 : vector<128x256xf32>
    %173 = vector.shape_cast %172 : vector<128x256xf32> to vector<8x16x256xf32>
    %174 = vector.shape_cast %129 : vector<1x256xf32> to vector<1x1x256xf32>
    %175 = vector.broadcast %174 : vector<1x1x256xf32> to vector<8x16x256xf32>
    %176 = arith.addf %173, %175 : vector<8x16x256xf32>
    %177 = vector.shape_cast %0 : vector<8x16x128xf32> to vector<128x128xf32>
    %c0_84 = arith.constant 0 : index
    %c0_85 = arith.constant 0 : index
    %178 = vector.load %arg14[%c0_84, %c0_85] : memref<128x256xf32, #tpu.memory_space<vmem>>, vector<128x256xf32>
    %cst_86 = arith.constant dense<0.000000e+00> : vector<128x256xf32>
    %179 = tpu.matmul %177, %178, %cst_86 {dimension_numbers = #tpu.dot_dimension_numbers<[1], [0], [0], [1], [0, 0, 1, 1], [], []>} : vector<128x128xf32>, vector<128x256xf32>, vector<128x256xf32> -> vector<128x256xf32>
    %180 = vector.shape_cast %179 : vector<128x256xf32> to vector<8x16x256xf32>
    %c0_87 = arith.constant 0 : index
    %c0_88 = arith.constant 0 : index
    %181 = vector.load %arg15[%c0_87, %c0_88] : memref<1x256xf32, #tpu.memory_space<vmem>>, vector<1x256xf32>
    %182 = vector.shape_cast %181 : vector<1x256xf32> to vector<1x1x256xf32>
    %183 = vector.broadcast %182 : vector<1x1x256xf32> to vector<8x16x256xf32>
    %184 = arith.addf %180, %183 : vector<8x16x256xf32>
    %185 = arith.addf %176, %184 : vector<8x16x256xf32>
    %c0_89 = arith.constant 0 : index
    %c0_90 = arith.constant 0 : index
    %c0_91 = arith.constant 0 : index
    %186 = vector.load %arg16[%c0_89, %c0_90, %c0_91] : memref<8x16x256xf32, #tpu.memory_space<vmem>>, vector<8x16x256xf32>
    tpu.vector_store %arg16[%c0_89, %c0_90, %c0_91], %185 {strides = array<i32>} : memref<8x16x256xf32, #tpu.memory_space<vmem>>, vector<8x16x256xf32>,
    return
  }
  func.func @transform_0(%arg0: i32) -> (i32, i32, i32) {
    %c0_i32 = arith.constant 0 : i32
    %c0_i32_0 = arith.constant 0 : i32
    %c0_i32_1 = arith.constant 0 : i32
    return %arg0, %c0_i32, %c0_i32_0 : i32, i32, i32
  }
  func.func @transform_1(%arg0: i32) -> (i32, i32) {
    %c0_i32 = arith.constant 0 : i32
    %c0_i32_0 = arith.constant 0 : i32
    %c0_i32_1 = arith.constant 0 : i32
    return %c0_i32, %c0_i32_0 : i32, i32
  }
  func.func @transform_2(%arg0: i32) -> (i32, i32) {
    %c0_i32 = arith.constant 0 : i32
    %c0_i32_0 = arith.constant 0 : i32
    %c0_i32_1 = arith.constant 0 : i32
    return %c0_i32, %c0_i32_0 : i32, i32
  }
  func.func @transform_3(%arg0: i32) -> (i32, i32) {
    %c0_i32 = arith.constant 0 : i32
    %c0_i32_0 = arith.constant 0 : i32
    %c0_i32_1 = arith.constant 0 : i32
    return %c0_i32, %c0_i32_0 : i32, i32
  }
  func.func @transform_4(%arg0: i32) -> (i32, i32) {
    %c0_i32 = arith.constant 0 : i32
    %c0_i32_0 = arith.constant 0 : i32
    %c0_i32_1 = arith.constant 0 : i32
    return %c0_i32, %c0_i32_0 : i32, i32
  }
  func.func @transform_5(%arg0: i32) -> (i32, i32, i32) {
    %c0_i32 = arith.constant 0 : i32
    %c0_i32_0 = arith.constant 0 : i32
    %c0_i32_1 = arith.constant 0 : i32
    %c0_i32_2 = arith.constant 0 : i32
    return %c0_i32, %c0_i32_0, %c0_i32_1 : i32, i32, i32
  }
  func.func @transform_6(%arg0: i32) -> (i32, i32) {
    %c0_i32 = arith.constant 0 : i32
    %c0_i32_0 = arith.constant 0 : i32
    %c0_i32_1 = arith.constant 0 : i32
    return %c0_i32, %c0_i32_0 : i32, i32
  }
  func.func @transform_7(%arg0: i32) -> (i32, i32) {
    %c0_i32 = arith.constant 0 : i32
    %c0_i32_0 = arith.constant 0 : i32
    %c0_i32_1 = arith.constant 0 : i32
    return %c0_i32, %c0_i32_0 : i32, i32
  }
  func.func @transform_8(%arg0: i32) -> (i32, i32) {
    %c0_i32 = arith.constant 0 : i32
    %c0_i32_0 = arith.constant 0 : i32
    %c0_i32_1 = arith.constant 0 : i32
    return %c0_i32, %c0_i32_0 : i32, i32
  }
  func.func @transform_9(%arg0: i32) -> (i32, i32) {
    %c0_i32 = arith.constant 0 : i32
    %c0_i32_0 = arith.constant 0 : i32
    %c0_i32_1 = arith.constant 0 : i32
    return %c0_i32, %c0_i32_0 : i32, i32
  }
  func.func @transform_10(%arg0: i32) -> (i32, i32) {
    %c0_i32 = arith.constant 0 : i32
    %c0_i32_0 = arith.constant 0 : i32
    %c0_i32_1 = arith.constant 0 : i32
    return %c0_i32, %c0_i32_0 : i32, i32
  }
  func.func @transform_11(%arg0: i32) -> (i32, i32, i32) {
    %c0_i32 = arith.constant 0 : i32
    %c0_i32_0 = arith.constant 0 : i32
    %c0_i32_1 = arith.constant 0 : i32
    %c0_i32_2 = arith.constant 0 : i32
    return %c0_i32, %c0_i32_0, %c0_i32_1 : i32, i32, i32
  }
  func.func @transform_12(%arg0: i32) -> (i32, i32) {
    %c0_i32 = arith.constant 0 : i32
    %c0_i32_0 = arith.constant 0 : i32
    %c0_i32_1 = arith.constant 0 : i32
    return %c0_i32, %c0_i32_0 : i32, i32
  }
  func.func @transform_13(%arg0: i32) -> (i32, i32) {
    %c0_i32 = arith.constant 0 : i32
    %c0_i32_0 = arith.constant 0 : i32
    %c0_i32_1 = arith.constant 0 : i32
    return %c0_i32, %c0_i32_0 : i32, i32
  }
  func.func @transform_14(%arg0: i32) -> (i32, i32) {
    %c0_i32 = arith.constant 0 : i32
    %c0_i32_0 = arith.constant 0 : i32
    %c0_i32_1 = arith.constant 0 : i32
    return %c0_i32, %c0_i32_0 : i32, i32
  }
  func.func @transform_15(%arg0: i32) -> (i32, i32, i32) {
    %c0_i32 = arith.constant 0 : i32
    %c0_i32_0 = arith.constant 0 : i32
    %c0_i32_1 = arith.constant 0 : i32
    return %arg0, %c0_i32, %c0_i32_0 : i32, i32, i32
  }
}

</mosaic_0001>

<llo_original>
// kernel: tpu_custom_call.1
$region0: #{tpu_custom_call.1}
  #allocation0 [shape = 'u32[]', space=smem, size = 0x4, offset = 0x4, fixed_abs, tag = 'smem constant byte address 0x4 - core index']
  #allocation1 [shape = 'u32[144,128]{1,0:T(1,128)}', space=vmem, size = 0x12000, scoped, tag = 'internal scratch']
  %s0 = inlined_call_operand.vmem [shape: f32[16,16,128], index: 0, kind: input, shape index: {}]
  %s1 = inlined_call_operand.vmem [shape: f32[1,128], index: 1, kind: input, shape index: {}]
  %s2 = inlined_call_operand.vmem [shape: f32[1,128], index: 2, kind: input, shape index: {}]
  %s3 = inlined_call_operand.vmem [shape: f32[128,4], index: 3, kind: input, shape index: {}]
  %s4 = inlined_call_operand.vmem [shape: f32[4,128], index: 4, kind: input, shape index: {}]
  %s5 = inlined_call_operand.hbm [shape: f32[3,128,256], index: 5, kind: input, shape index: {}]
  %s6 = inlined_call_operand.vmem [shape: f32[1,256], index: 6, kind: input, shape index: {}]
  %s7 = inlined_call_operand.vmem [shape: f32[1,256], index: 7, kind: input, shape index: {}]
  %s8 = inlined_call_operand.vmem [shape: f32[1,256], index: 8, kind: input, shape index: {}]
  %s9 = inlined_call_operand.vmem [shape: f32[256,4], index: 9, kind: input, shape index: {}]
  %s10 = inlined_call_operand.vmem [shape: f32[4,256], index: 10, kind: input, shape index: {}]
  %s11 = inlined_call_operand.hbm [shape: f32[3,256,256], index: 11, kind: input, shape index: {}]
  %s12 = inlined_call_operand.vmem [shape: f32[1,256], index: 12, kind: input, shape index: {}]
  %s13 = inlined_call_operand.hbm [shape: f32[128,256], index: 13, kind: input, shape index: {}]
  %s14 = inlined_call_operand.vmem [shape: f32[1,256], index: 14, kind: input, shape index: {}]
  %s15 = inlined_call_operand.hbm [shape: f32[16,16,256], index: 15, kind: output, shape index: {}]
  %s16 = sld [smem:[#allocation0]]
  $region105: #{tpu_custom_call.1} parent=0
    _
  %s18 = ssub.s32 1, %s16
  %s19 = scalar_select 0, %s18, %s16
  $region1: #{tpu_custom_call.1} parent=0
    #allocation2 [shape = 'u8[393216]{0}', space=vmem, size = 0x60000, scoped, tag = 'input window, operand 5, single buffered']
    #allocation3 [shape = 's32[2]{0}', space=sflag, size = 0x8, scoped, tag = 'scoped memory for tpu_custom_call.1']
    #allocation4 [shape = 's32[2]{0}', space=sflag, size = 0x8, scoped, tag = 'scoped memory for tpu_custom_call.1']
    #allocation5 [shape = 'u8[786432]{0}', space=vmem, size = 0xc0000, scoped, tag = 'input window, operand 11, single buffered']
    #allocation6 [shape = 's32[1]{0}', space=sflag, size = 0x4, scoped, tag = 'scoped memory for tpu_custom_call.1']
    #allocation7 [shape = 'u8[131072]{0}', space=vmem, size = 0x20000, scoped, tag = 'input window, operand 13, single buffered']
    #allocation8 [shape = 'u8[262144]{0}', space=vmem, size = 0x40000, scoped, tag = 'output window, operand 0']
    %20 = vsyncpa [#allocation3], 0
    %21 = vsyncpa [#allocation6], 0
    %22 = vsyncpa [#allocation4], 0
    %s23 = scalar_lea.sflag [#allocation4], 1
    %24 = vsyncpa %s23, 0
    loop: start=0, step=1, limit=4
    $region2: #{tpu_custom_call.1} parent=1 // loop_pre_header
      _
    $region3: #{tpu_custom_call.1} parent=1 // loop_header
      %s26 = sphi 0, %s30
      %p27 = scmp.ge.s32.totalorder %s26, 4
      %s36 = sphi 0, %s38
      %s39 = sphi 0, %s36
      %s40 = sphi 0, %s39
      %s56 = sphi 0, %s40
      %s60 = sphi 0, %s60
      %s62 = sphi 0, %s60
      %s63 = sphi 0, %s62
      %s77 = sphi 0, %s63
      %s81 = sphi 0, %s81
      %s83 = sphi 0, %s81
      %s84 = sphi 0, %s83
      %s98 = sphi 0, %s84
      %s102 = sphi 0, %s102
      %s104 = sphi 0, %s102
      %s105 = sphi 0, %s104
      %s119 = sphi 0, %s105
      %s123 = sphi 0, %s123
      %s125 = sphi 0, %s123
      %s126 = sphi 0, %s125
      %s140 = sphi 0, %s126
      %s144 = sphi 0, %s144
      %s146 = sphi 0, %s144
      %s147 = sphi 0, %s146
      %s161 = sphi 0, %s147
      %s165 = sphi 0, %s165
      %s167 = sphi 0, %s165
      %s168 = sphi 0, %s167
      %s182 = sphi 0, %s168
      %s186 = sphi 0, %s186
      %s188 = sphi 0, %s186
      %s189 = sphi 0, %s188
      %s203 = sphi 0, %s189
      %s207 = sphi 0, %s207
      %s209 = sphi 0, %s207
      %s210 = sphi 0, %s209
      %s224 = sphi 0, %s210
      %s228 = sphi 0, %s228
      %s230 = sphi 0, %s228
      %s231 = sphi 0, %s230
      %s245 = sphi 0, %s231
      %s249 = sphi 0, %s249
      %s251 = sphi 0, %s249
      %s252 = sphi 0, %s251
      %s266 = sphi 0, %s252
      %s270 = sphi 0, %s270
      %s272 = sphi 0, %s270
      %s273 = sphi 0, %s272
      %s287 = sphi 0, %s273
      %s291 = sphi 0, %s291
      %s293 = sphi 0, %s291
      %s294 = sphi 0, %s293
      %s308 = sphi 0, %s294
      %s312 = sphi 0, %s312
      %s314 = sphi 0, %s312
      %s315 = sphi 0, %s314
      %s329 = sphi 0, %s315
      %s333 = sphi 0, %s333
      %s335 = sphi 0, %s333
      %s336 = sphi 0, %s335
      %s350 = sphi 0, %s336
      %s356 = sphi 0, %s358
      %s359 = sphi 0, %s356
      %s360 = sphi 0, %s359
      %s376 = sphi 0, %s360
    $region4: #{tpu_custom_call.1} parent=1 // loop_header_branch
      %29 = sbr.rel (%p27) target = $region8
    $region5: #{tpu_custom_call.1} parent=1 // loop_body
      %s31 = ssub.s32 %s26, 1
      %s32 = ssub.s32 %s26, 2
      %s33 = sadd.s32 %s26, 1
      %s34 = ssub.s32 %s26, %s33
      %p35 = scmp.eq.s32.totalorder %s34, 0
      %s37 = sadd.s32 %s36, 1
      %s38 = scalar_select %p35, %s36, %s37
      %p41 = pneg %p35
      %p42 = scmp.eq.s32.totalorder %s26, 1
      %p43 = por %p41, %p42
      %p44 = scmp.ne.s32.totalorder %s36, %s39
      %p45 = scmp.eq.s32.totalorder %s26, 0
      %p46 = por %p44, %p45
      %p47 = scmp.ne.s32.totalorder %s36, %s39
      %p48 = scmp.eq.s32.totalorder %s31, 1
      %p49 = por %p47, %p48
      %p50 = scmp.ne.s32.totalorder %s39, %s40
      %p51 = scmp.eq.s32.totalorder %s31, 0
      %p52 = por %p50, %p51
      %p53 = scmp.ne.s32.totalorder %s39, %s40
      %p54 = scmp.eq.s32.totalorder %s32, 1
      %p55 = por %p53, %p54
      %p57 = scmp.ne.s32.totalorder %s40, %s56
      %p58 = scmp.eq.s32.totalorder %s32, 0
      %p59 = por %p57, %p58
      %s61 = sadd.s32 %s60, 1
      %p64 = scmp.eq.s32.totalorder %s26, 1
      %p65 = scmp.ne.s32.totalorder %s60, %s62
      %p66 = scmp.eq.s32.totalorder %s26, 0
      %p67 = por %p65, %p66
      %p68 = scmp.ne.s32.totalorder %s60, %s62
      %p69 = scmp.eq.s32.totalorder %s31, 1
      %p70 = por %p68, %p69
      %p71 = scmp.ne.s32.totalorder %s62, %s63
      %p72 = scmp.eq.s32.totalorder %s31, 0
      %p73 = por %p71, %p72
      %p74 = scmp.ne.s32.totalorder %s62, %s63
      %p75 = scmp.eq.s32.totalorder %s32, 1
      %p76 = por %p74, %p75
      %p78 = scmp.ne.s32.totalorder %s63, %s77
      %p79 = scmp.eq.s32.totalorder %s32, 0
      %p80 = por %p78, %p79
      %s82 = sadd.s32 %s81, 1
      %p85 = scmp.eq.s32.totalorder %s26, 1
      %p86 = scmp.ne.s32.totalorder %s81, %s83
      %p87 = scmp.eq.s32.totalorder %s26, 0
      %p88 = por %p86, %p87
      %p89 = scmp.ne.s32.totalorder %s81, %s83
      %p90 = scmp.eq.s32.totalorder %s31, 1
      %p91 = por %p89, %p90
      %p92 = scmp.ne.s32.totalorder %s83, %s84
      %p93 = scmp.eq.s32.totalorder %s31, 0
      %p94 = por %p92, %p93
      %p95 = scmp.ne.s32.totalorder %s83, %s84
      %p96 = scmp.eq.s32.totalorder %s32, 1
      %p97 = por %p95, %p96
      %p99 = scmp.ne.s32.totalorder %s84, %s98
      %p100 = scmp.eq.s32.totalorder %s32, 0
      %p101 = por %p99, %p100
      %s103 = sadd.s32 %s102, 1
      %p106 = scmp.eq.s32.totalorder %s26, 1
      %p107 = scmp.ne.s32.totalorder %s102, %s104
      %p108 = scmp.eq.s32.totalorder %s26, 0
      %p109 = por %p107, %p108
      %p110 = scmp.ne.s32.totalorder %s102, %s104
      %p111 = scmp.eq.s32.totalorder %s31, 1
      %p112 = por %p110, %p111
      %p113 = scmp.ne.s32.totalorder %s104, %s105
      %p114 = scmp.eq.s32.totalorder %s31, 0
      %p115 = por %p113, %p114
      %p116 = scmp.ne.s32.totalorder %s104, %s105
      %p117 = scmp.eq.s32.totalorder %s32, 1
      %p118 = por %p116, %p117
      %p120 = scmp.ne.s32.totalorder %s105, %s119
      %p121 = scmp.eq.s32.totalorder %s32, 0
      %p122 = por %p120, %p121
      %s124 = sadd.s32 %s123, 1
      %p127 = scmp.eq.s32.totalorder %s26, 1
      %p128 = scmp.ne.s32.totalorder %s123, %s125
      %p129 = scmp.eq.s32.totalorder %s26, 0
      %p130 = por %p128, %p129
      %p131 = scmp.ne.s32.totalorder %s123, %s125
      %p132 = scmp.eq.s32.totalorder %s31, 1
      %p133 = por %p131, %p132
      %p134 = scmp.ne.s32.totalorder %s125, %s126
      %p135 = scmp.eq.s32.totalorder %s31, 0
      %p136 = por %p134, %p135
      %p137 = scmp.ne.s32.totalorder %s125, %s126
      %p138 = scmp.eq.s32.totalorder %s32, 1
      %p139 = por %p137, %p138
      %p141 = scmp.ne.s32.totalorder %s126, %s140
      %p142 = scmp.eq.s32.totalorder %s32, 0
      %p143 = por %p141, %p142
      %s145 = sadd.s32 %s144, 1
      %p148 = scmp.eq.s32.totalorder %s26, 1
      %p149 = scmp.ne.s32.totalorder %s144, %s146
      %p150 = scmp.eq.s32.totalorder %s26, 0
      %p151 = por %p149, %p150
      %p152 = scmp.ne.s32.totalorder %s144, %s146
      %p153 = scmp.eq.s32.totalorder %s31, 1
      %p154 = por %p152, %p153
      %p155 = scmp.ne.s32.totalorder %s146, %s147
      %p156 = scmp.eq.s32.totalorder %s31, 0
      %p157 = por %p155, %p156
      %p158 = scmp.ne.s32.totalorder %s146, %s147
      %p159 = scmp.eq.s32.totalorder %s32, 1
      %p160 = por %p158, %p159
      %p162 = scmp.ne.s32.totalorder %s147, %s161
      %p163 = scmp.eq.s32.totalorder %s32, 0
      %p164 = por %p162, %p163
      %s166 = sadd.s32 %s165, 1
      %p169 = scmp.eq.s32.totalorder %s26, 1
      %p170 = scmp.ne.s32.totalorder %s165, %s167
      %p171 = scmp.eq.s32.totalorder %s26, 0
      %p172 = por %p170, %p171
      %p173 = scmp.ne.s32.totalorder %s165, %s167
      %p174 = scmp.eq.s32.totalorder %s31, 1
      %p175 = por %p173, %p174
      %p176 = scmp.ne.s32.totalorder %s167, %s168
      %p177 = scmp.eq.s32.totalorder %s31, 0
      %p178 = por %p176, %p177
      %p179 = scmp.ne.s32.totalorder %s167, %s168
      %p180 = scmp.eq.s32.totalorder %s32, 1
      %p181 = por %p179, %p180
      %p183 = scmp.ne.s32.totalorder %s168, %s182
      %p184 = scmp.eq.s32.totalorder %s32, 0
      %p185 = por %p183, %p184
      %s187 = sadd.s32 %s186, 1
      %p190 = scmp.eq.s32.totalorder %s26, 1
      %p191 = scmp.ne.s32.totalorder %s186, %s188
      %p192 = scmp.eq.s32.totalorder %s26, 0
      %p193 = por %p191, %p192
      %p194 = scmp.ne.s32.totalorder %s186, %s188
      %p195 = scmp.eq.s32.totalorder %s31, 1
      %p196 = por %p194, %p195
      %p197 = scmp.ne.s32.totalorder %s188, %s189
      %p198 = scmp.eq.s32.totalorder %s31, 0
      %p199 = por %p197, %p198
      %p200 = scmp.ne.s32.totalorder %s188, %s189
      %p201 = scmp.eq.s32.totalorder %s32, 1
      %p202 = por %p200, %p201
      %p204 = scmp.ne.s32.totalorder %s189, %s203
      %p205 = scmp.eq.s32.totalorder %s32, 0
      %p206 = por %p204, %p205
      %s208 = sadd.s32 %s207, 1
      %p211 = scmp.eq.s32.totalorder %s26, 1
      %p212 = scmp.ne.s32.totalorder %s207, %s209
      %p213 = scmp.eq.s32.totalorder %s26, 0
      %p214 = por %p212, %p213
      %p215 = scmp.ne.s32.totalorder %s207, %s209
      %p216 = scmp.eq.s32.totalorder %s31, 1
      %p217 = por %p215, %p216
      %p218 = scmp.ne.s32.totalorder %s209, %s210
      %p219 = scmp.eq.s32.totalorder %s31, 0
      %p220 = por %p218, %p219
      %p221 = scmp.ne.s32.totalorder %s209, %s210
      %p222 = scmp.eq.s32.totalorder %s32, 1
      %p223 = por %p221, %p222
      %p225 = scmp.ne.s32.totalorder %s210, %s224
      %p226 = scmp.eq.s32.totalorder %s32, 0
      %p227 = por %p225, %p226
      %s229 = sadd.s32 %s228, 1
      %p232 = scmp.eq.s32.totalorder %s26, 1
      %p233 = scmp.ne.s32.totalorder %s228, %s230
      %p234 = scmp.eq.s32.totalorder %s26, 0
      %p235 = por %p233, %p234
      %p236 = scmp.ne.s32.totalorder %s228, %s230
      %p237 = scmp.eq.s32.totalorder %s31, 1
      %p238 = por %p236, %p237
      %p239 = scmp.ne.s32.totalorder %s230, %s231
      %p240 = scmp.eq.s32.totalorder %s31, 0
      %p241 = por %p239, %p240
      %p242 = scmp.ne.s32.totalorder %s230, %s231
      %p243 = scmp.eq.s32.totalorder %s32, 1
      %p244 = por %p242, %p243
      %p246 = scmp.ne.s32.totalorder %s231, %s245
      %p247 = scmp.eq.s32.totalorder %s32, 0
      %p248 = por %p246, %p247
      %s250 = sadd.s32 %s249, 1
      %p253 = scmp.eq.s32.totalorder %s26, 1
      %p254 = scmp.ne.s32.totalorder %s249, %s251
      %p255 = scmp.eq.s32.totalorder %s26, 0
      %p256 = por %p254, %p255
      %p257 = scmp.ne.s32.totalorder %s249, %s251
      %p258 = scmp.eq.s32.totalorder %s31, 1
      %p259 = por %p257, %p258
      %p260 = scmp.ne.s32.totalorder %s251, %s252
      %p261 = scmp.eq.s32.totalorder %s31, 0
      %p262 = por %p260, %p261
      %p263 = scmp.ne.s32.totalorder %s251, %s252
      %p264 = scmp.eq.s32.totalorder %s32, 1
      %p265 = por %p263, %p264
      %p267 = scmp.ne.s32.totalorder %s252, %s266
      %p268 = scmp.eq.s32.totalorder %s32, 0
      %p269 = por %p267, %p268
      %s271 = sadd.s32 %s270, 1
      %p274 = scmp.eq.s32.totalorder %s26, 1
      %p275 = scmp.ne.s32.totalorder %s270, %s272
      %p276 = scmp.eq.s32.totalorder %s26, 0
      %p277 = por %p275, %p276
      %p278 = scmp.ne.s32.totalorder %s270, %s272
      %p279 = scmp.eq.s32.totalorder %s31, 1
      %p280 = por %p278, %p279
      %p281 = scmp.ne.s32.totalorder %s272, %s273
      %p282 = scmp.eq.s32.totalorder %s31, 0
      %p283 = por %p281, %p282
      %p284 = scmp.ne.s32.totalorder %s272, %s273
      %p285 = scmp.eq.s32.totalorder %s32, 1
      %p286 = por %p284, %p285
      %p288 = scmp.ne.s32.totalorder %s273, %s287
      %p289 = scmp.eq.s32.totalorder %s32, 0
      %p290 = por %p288, %p289
      %s292 = sadd.s32 %s291, 1
      %p295 = scmp.eq.s32.totalorder %s26, 1
      %p296 = scmp.ne.s32.totalorder %s291, %s293
      %p297 = scmp.eq.s32.totalorder %s26, 0
      %p298 = por %p296, %p297
      %p299 = scmp.ne.s32.totalorder %s291, %s293
      %p300 = scmp.eq.s32.totalorder %s31, 1
      %p301 = por %p299, %p300
      %p302 = scmp.ne.s32.totalorder %s293, %s294
      %p303 = scmp.eq.s32.totalorder %s31, 0
      %p304 = por %p302, %p303
      %p305 = scmp.ne.s32.totalorder %s293, %s294
      %p306 = scmp.eq.s32.totalorder %s32, 1
      %p307 = por %p305, %p306
      %p309 = scmp.ne.s32.totalorder %s294, %s308
      %p310 = scmp.eq.s32.totalorder %s32, 0
      %p311 = por %p309, %p310
      %s313 = sadd.s32 %s312, 1
      %p316 = scmp.eq.s32.totalorder %s26, 1
      %p317 = scmp.ne.s32.totalorder %s312, %s314
      %p318 = scmp.eq.s32.totalorder %s26, 0
      %p319 = por %p317, %p318
      %p320 = scmp.ne.s32.totalorder %s312, %s314
      %p321 = scmp.eq.s32.totalorder %s31, 1
      %p322 = por %p320, %p321
      %p323 = scmp.ne.s32.totalorder %s314, %s315
      %p324 = scmp.eq.s32.totalorder %s31, 0
      %p325 = por %p323, %p324
      %p326 = scmp.ne.s32.totalorder %s314, %s315
      %p327 = scmp.eq.s32.totalorder %s32, 1
      %p328 = por %p326, %p327
      %p330 = scmp.ne.s32.totalorder %s315, %s329
      %p331 = scmp.eq.s32.totalorder %s32, 0
      %p332 = por %p330, %p331
      %s334 = sadd.s32 %s333, 1
      %p337 = scmp.eq.s32.totalorder %s26, 1
      %p338 = scmp.ne.s32.totalorder %s333, %s335
      %p339 = scmp.eq.s32.totalorder %s26, 0
      %p340 = por %p338, %p339
      %p341 = scmp.ne.s32.totalorder %s333, %s335
      %p342 = scmp.eq.s32.totalorder %s31, 1
      %p343 = por %p341, %p342
      %p344 = scmp.ne.s32.totalorder %s335, %s336
      %p345 = scmp.eq.s32.totalorder %s31, 0
      %p346 = por %p344, %p345
      %p347 = scmp.ne.s32.totalorder %s335, %s336
      %p348 = scmp.eq.s32.totalorder %s32, 1
      %p349 = por %p347, %p348
      %p351 = scmp.ne.s32.totalorder %s336, %s350
      %p352 = scmp.eq.s32.totalorder %s32, 0
      %p353 = por %p351, %p352
      %s354 = ssub.s32 %s26, %s33
      %p355 = scmp.eq.s32.totalorder %s354, 0
      %s357 = sadd.s32 %s356, 1
      %s358 = scalar_select %p355, %s356, %s357
      %p361 = pneg %p355
      %p362 = scmp.eq.s32.totalorder %s26, 1
      %p363 = por %p361, %p362
      %p364 = scmp.ne.s32.totalorder %s356, %s359
      %p365 = scmp.eq.s32.totalorder %s26, 0
      %p366 = por %p364, %p365
      %p367 = scmp.ne.s32.totalorder %s356, %s359
      %p368 = scmp.eq.s32.totalorder %s31, 1
      %p369 = por %p367, %p368
      %p370 = scmp.ne.s32.totalorder %s359, %s360
      %p371 = scmp.eq.s32.totalorder %s31, 0
      %p372 = por %p370, %p371
      %p373 = scmp.ne.s32.totalorder %s359, %s360
      %p374 = scmp.eq.s32.totalorder %s32, 1
      %p375 = por %p373, %p374
      %p377 = scmp.ne.s32.totalorder %s360, %s376
      %p378 = scmp.eq.s32.totalorder %s32, 0
      %p379 = por %p377, %p378
      %p380 = scmp.le.s32.totalorder 1, %s26
      %p381 = scmp.lt.s32.totalorder %s26, 3
      %p382 = pnand %p380, %p381
      %p383 = pneg %p382
      // Predicated region
      $region9: #{tpu_custom_call.1} parent=5 // pred_check
        _
      $region10: #{tpu_custom_call.1} parent=5 // pred_check_branch
        %385 = sbr.rel (%p382) target = $region12
      $region11: #{tpu_custom_call.1} parent=5 // pred_region
        %s386 = ssub.s32 %s26, 1
        // Predicated region
        $region13: #{tpu_custom_call.1} parent=11 // pred_check
          %p387 = pneg %p73
        $region14: #{tpu_custom_call.1} parent=11 // pred_check_branch
          %389 = sbr.rel (%p387) target = $region16
        $region15: #{tpu_custom_call.1} parent=11 // pred_region
          _
        $region16: #{tpu_custom_call.1} parent=11 // pred_fallthru
          _
        // Predicated region
        $region17: #{tpu_custom_call.1} parent=11 // pred_check
          %p390 = pneg %p94
        $region18: #{tpu_custom_call.1} parent=11 // pred_check_branch
          %392 = sbr.rel (%p390) target = $region20
        $region19: #{tpu_custom_call.1} parent=11 // pred_region
          _
        $region20: #{tpu_custom_call.1} parent=11 // pred_fallthru
          _
        // Predicated region
        $region21: #{tpu_custom_call.1} parent=11 // pred_check
          %p393 = pneg %p115
        $region22: #{tpu_custom_call.1} parent=11 // pred_check_branch
          %395 = sbr.rel (%p393) target = $region24
        $region23: #{tpu_custom_call.1} parent=11 // pred_region
          _
        $region24: #{tpu_custom_call.1} parent=11 // pred_fallthru
          _
        // Predicated region
        $region25: #{tpu_custom_call.1} parent=11 // pred_check
          %p396 = pneg %p136
        $region26: #{tpu_custom_call.1} parent=11 // pred_check_branch
          %398 = sbr.rel (%p396) target = $region28
        $region27: #{tpu_custom_call.1} parent=11 // pred_region
          _
        $region28: #{tpu_custom_call.1} parent=11 // pred_fallthru
          _
        // Predicated region
        $region29: #{tpu_custom_call.1} parent=11 // pred_check
          %p399 = pneg %p157
        $region30: #{tpu_custom_call.1} parent=11 // pred_check_branch
          %401 = sbr.rel (%p399) target = $region32
        $region31: #{tpu_custom_call.1} parent=11 // pred_region
          %s403 = ssub.s32 12288, 12288
          %404 = vsyncadd [#allocation3], %s403
          %s405 = sshll.u32 [#allocation2], 4
          %s406 = int_to_ptr.vmem [resolvable:$true] %s405
          %411 = dma.hbm_to_vmem [thread:$0]  %s5, 12288, %s406, [#allocation3], 256, 256, 16
        $region32: #{tpu_custom_call.1} parent=11 // pred_fallthru
          _
        // Predicated region
        $region33: #{tpu_custom_call.1} parent=11 // pred_check
          %p412 = pneg %p178
        $region34: #{tpu_custom_call.1} parent=11 // pred_check_branch
          %414 = sbr.rel (%p412) target = $region36
        $region35: #{tpu_custom_call.1} parent=11 // pred_region
          _
        $region36: #{tpu_custom_call.1} parent=11 // pred_fallthru
          _
        // Predicated region
        $region37: #{tpu_custom_call.1} parent=11 // pred_check
          %p415 = pneg %p199
        $region38: #{tpu_custom_call.1} parent=11 // pred_check_branch
          %417 = sbr.rel (%p415) target = $region40
        $region39: #{tpu_custom_call.1} parent=11 // pred_region
          _
        $region40: #{tpu_custom_call.1} parent=11 // pred_fallthru
          _
        // Predicated region
        $region41: #{tpu_custom_call.1} parent=11 // pred_check
          %p418 = pneg %p220
        $region42: #{tpu_custom_call.1} parent=11 // pred_check_branch
          %420 = sbr.rel (%p418) target = $region44
        $region43: #{tpu_custom_call.1} parent=11 // pred_region
          _
        $region44: #{tpu_custom_call.1} parent=11 // pred_fallthru
          _
        // Predicated region
        $region45: #{tpu_custom_call.1} parent=11 // pred_check
          %p421 = pneg %p241
        $region46: #{tpu_custom_call.1} parent=11 // pred_check_branch
          %423 = sbr.rel (%p421) target = $region48
        $region47: #{tpu_custom_call.1} parent=11 // pred_region
          _
        $region48: #{tpu_custom_call.1} parent=11 // pred_fallthru
          _
        // Predicated region
        $region49: #{tpu_custom_call.1} parent=11 // pred_check
          %p424 = pneg %p262
        $region50: #{tpu_custom_call.1} parent=11 // pred_check_branch
          %426 = sbr.rel (%p424) target = $region52
        $region51: #{tpu_custom_call.1} parent=11 // pred_region
          _
        $region52: #{tpu_custom_call.1} parent=11 // pred_fallthru
          _
        // Predicated region
        $region53: #{tpu_custom_call.1} parent=11 // pred_check
          %p427 = pneg %p283
        $region54: #{tpu_custom_call.1} parent=11 // pred_check_branch
          %429 = sbr.rel (%p427) target = $region56
        $region55: #{tpu_custom_call.1} parent=11 // pred_region
          %s431 = ssub.s32 24576, 24576
          %432 = vsyncadd [#allocation6], %s431
          %s433 = sshll.u32 [#allocation5], 4
          %s434 = int_to_ptr.vmem [resolvable:$true] %s433
          %439 = dma.hbm_to_vmem [thread:$0]  %s11, 24576, %s434, [#allocation6], 256, 256, 16
        $region56: #{tpu_custom_call.1} parent=11 // pred_fallthru
          _
        // Predicated region
        $region57: #{tpu_custom_call.1} parent=11 // pred_check
          %p440 = pneg %p304
        $region58: #{tpu_custom_call.1} parent=11 // pred_check_branch
          %442 = sbr.rel (%p440) target = $region60
        $region59: #{tpu_custom_call.1} parent=11 // pred_region
          _
        $region60: #{tpu_custom_call.1} parent=11 // pred_fallthru
          _
        // Predicated region
        $region61: #{tpu_custom_call.1} parent=11 // pred_check
          %p443 = pneg %p325
        $region62: #{tpu_custom_call.1} parent=11 // pred_check_branch
          %445 = sbr.rel (%p443) target = $region64
        $region63: #{tpu_custom_call.1} parent=11 // pred_region
          %s447 = ssub.s32 4096, 4096
          %448 = vsyncadd [#allocation6], %s447
          %s449 = sshll.u32 [#allocation7], 4
          %s450 = int_to_ptr.vmem [resolvable:$true] %s449
          %455 = dma.hbm_to_vmem [thread:$0]  %s13, 4096, %s450, [#allocation6], 256, 256, 16
        $region64: #{tpu_custom_call.1} parent=11 // pred_fallthru
          _
        // Predicated region
        $region65: #{tpu_custom_call.1} parent=11 // pred_check
          %p456 = pneg %p346
        $region66: #{tpu_custom_call.1} parent=11 // pred_check_branch
          %458 = sbr.rel (%p456) target = $region68
        $region67: #{tpu_custom_call.1} parent=11 // pred_region
          _
        $region68: #{tpu_custom_call.1} parent=11 // pred_fallthru
          _
      $region12: #{tpu_custom_call.1} parent=5 // pred_fallthru
        _
      %p459 = scmp.lt.s32.totalorder %s26, 2
      // Predicated region
      $region69: #{tpu_custom_call.1} parent=5 // pred_check
        %p460 = pneg %p459
      $region70: #{tpu_custom_call.1} parent=5 // pred_check_branch
        %462 = sbr.rel (%p460) target = $region72
      $region71: #{tpu_custom_call.1} parent=5 // pred_region
        // Predicated region
        $region73: #{tpu_custom_call.1} parent=71 // pred_check
          %p463 = pneg %p46
        $region74: #{tpu_custom_call.1} parent=71 // pred_check_branch
          %465 = sbr.rel (%p463) target = $region76
        $region75: #{tpu_custom_call.1} parent=71 // pred_region
          %s466 = smul.u32 8, %s26
          %p467 = scmp.lt.s32.totalorder %s466, 15
          %s468 = scalar_select %p467, %s466, 15
          %s469 = smul.addr %s468, 2
          %s470 = smul.addr %s469, 8
          %s471 = scalar_lea.vmem %s0, %s470
          %s472 = smul.u32 8, %s26
        $region76: #{tpu_custom_call.1} parent=71 // pred_fallthru
          _
      $region72: #{tpu_custom_call.1} parent=5 // pred_fallthru
        _
      %p473 = scmp.le.s32.totalorder 1, %s26
      %p474 = scmp.lt.s32.totalorder %s26, 3
      %p475 = pnand %p473, %p474
      %p476 = pneg %p475
      // Predicated region
      $region77: #{tpu_custom_call.1} parent=5 // pred_check
        _
      $region78: #{tpu_custom_call.1} parent=5 // pred_check_branch
        %478 = sbr.rel (%p475) target = $region80
      $region79: #{tpu_custom_call.1} parent=5 // pred_region
        %s479 = ssub.s32 %s26, 1
        // Predicated region
        $region81: #{tpu_custom_call.1} parent=79 // pred_check
          %p480 = pneg %p157
        $region82: #{tpu_custom_call.1} parent=79 // pred_check_branch
          %482 = sbr.rel (%p480) target = $region84
        $region83: #{tpu_custom_call.1} parent=79 // pred_region
          %483 = dma.done [#allocation3], 12288
        $region84: #{tpu_custom_call.1} parent=79 // pred_fallthru
          _
        // Predicated region
        $region85: #{tpu_custom_call.1} parent=79 // pred_check
          %p484 = pneg %p283
        $region86: #{tpu_custom_call.1} parent=79 // pred_check_branch
          %486 = sbr.rel (%p484) target = $region88
        $region87: #{tpu_custom_call.1} parent=79 // pred_region
          %487 = dma.done [#allocation6], 24576
        $region88: #{tpu_custom_call.1} parent=79 // pred_fallthru
          _
        // Predicated region
        $region89: #{tpu_custom_call.1} parent=79 // pred_check
          %p488 = pneg %p325
        $region90: #{tpu_custom_call.1} parent=79 // pred_check_branch
          %490 = sbr.rel (%p488) target = $region92
        $region91: #{tpu_custom_call.1} parent=79 // pred_region
          %491 = dma.done [#allocation6], 4096
        $region92: #{tpu_custom_call.1} parent=79 // pred_fallthru
          _
        %s492 = smul.u32 8, %s31
        %p493 = scmp.lt.s32.totalorder %s492, 15
        %s494 = scalar_select %p493, %s492, 15
        %s495 = smul.addr %s494, 2
        %s496 = smul.addr %s495, 8
        %s497 = scalar_lea.vmem %s0, %s496
        %p498 = pneg %p52
        %p499 = pneg %p49
        %p500 = pneg %p73
        %p501 = pneg %p70
        %p502 = pneg %p94
        %p503 = pneg %p91
        %p504 = pneg %p115
        %p505 = pneg %p112
        %p506 = pneg %p136
        %p507 = pneg %p133
        %p508 = pneg %p157
        %p509 = pneg %p154
        %p510 = pneg %p178
        %p511 = pneg %p175
        %p512 = pneg %p199
        %p513 = pneg %p196
        %p514 = pneg %p220
        %p515 = pneg %p217
        %p516 = pneg %p241
        %p517 = pneg %p238
        %p518 = pneg %p262
        %p519 = pneg %p259
        %p520 = pneg %p283
        %p521 = pneg %p280
        %p522 = pneg %p304
        %p523 = pneg %p301
        %p524 = pneg %p325
        %p525 = pneg %p322
        %p526 = pneg %p346
        %p527 = pneg %p343
        %p528 = pneg %p372
        %p529 = pneg %p369
        %s530 = sand.u32 %s359, 1
        %s531 = scalar_lea.sflag [#allocation4], %s530
        %s532 = sand.u32 %s359, 1
        %s533 = smul.addr %s532, 256
        %s534 = scalar_lea.vmem [#allocation8], %s533
        %s535 = smul.u32 8, %s31
        %p536 = scmp.lt.s32.totalorder %s535, 15
        %s537 = scalar_select %p536, %s535, 15
        %s538 = smul.addr %s537, 2
        %s539 = smul.addr %s538, 8
        %s540 = scalar_lea.vmem %s0, %s539
        %s541 = smul.u32 8, %s31
        %s542 = smul.u32 8, %s31
        %v543 = vld [vmem:[%s540] sm:$0xff]
        %v544 = vld [vmem:[%s540 + $0x8] sm:$0xff]
        %v545 = vld [vmem:[%s540 + $0x10] sm:$0xff]
        %v546 = vld [vmem:[%s540 + $0x18] sm:$0xff]
        %v547 = vld [vmem:[%s540 + $0x20] sm:$0xff]
        %v548 = vld [vmem:[%s540 + $0x28] sm:$0xff]
        %v549 = vld [vmem:[%s540 + $0x30] sm:$0xff]
        %v550 = vld [vmem:[%s540 + $0x38] sm:$0xff]
        %v551 = vld [vmem:[%s540 + $0x40] sm:$0xff]
        %v552 = vld [vmem:[%s540 + $0x48] sm:$0xff]
        %v553 = vld [vmem:[%s540 + $0x50] sm:$0xff]
        %v554 = vld [vmem:[%s540 + $0x58] sm:$0xff]
        %v555 = vld [vmem:[%s540 + $0x60] sm:$0xff]
        %v556 = vld [vmem:[%s540 + $0x68] sm:$0xff]
        %v557 = vld [vmem:[%s540 + $0x70] sm:$0xff]
        %v558 = vld [vmem:[%s540 + $0x78] sm:$0xff]
        %v559 = vld [vmem:[%s3] sm:$0xff]
        %v560 = vld [vmem:[%s3 + $0x8] sm:$0xff]
        %v561 = vld [vmem:[%s3 + $0x10] sm:$0xff]
        %v562 = vld [vmem:[%s3 + $0x18] sm:$0xff]
        %v563 = vld [vmem:[%s3 + $0x20] sm:$0xff]
        %v564 = vld [vmem:[%s3 + $0x28] sm:$0xff]
        %v565 = vld [vmem:[%s3 + $0x30] sm:$0xff]
        %v566 = vld [vmem:[%s3 + $0x38] sm:$0xff]
        %v567 = vld [vmem:[%s3 + $0x40] sm:$0xff]
        %v568 = vld [vmem:[%s3 + $0x48] sm:$0xff]
        %v569 = vld [vmem:[%s3 + $0x50] sm:$0xff]
        %v570 = vld [vmem:[%s3 + $0x58] sm:$0xff]
        %v571 = vld [vmem:[%s3 + $0x60] sm:$0xff]
        %v572 = vld [vmem:[%s3 + $0x68] sm:$0xff]
        %v573 = vld [vmem:[%s3 + $0x70] sm:$0xff]
        %v574 = vld [vmem:[%s3 + $0x78] sm:$0xff]
        %v575 = vld [vmem:[%s4] sm:$0xf]
        %v576 = vld [vmem:[%s1] sm:$0x1]
        %v577 = vld [vmem:[%s2] sm:$0x1]
        %v578 = vadd.f32 %v543, %v544
        %v579 = vrot.slane %v578, 4
        %v580 = vadd.f32 %v578, %v579
        %v581 = vrot.slane %v580, 2
        %v582 = vadd.f32 %v580, %v581
        %v583 = vrot.slane %v582, 1
        %v584 = vadd.f32 %v582, %v583
        %v585 = vadd.f32 %v545, %v546
        %v586 = vrot.slane %v585, 4
        %v587 = vadd.f32 %v585, %v586
        %v588 = vrot.slane %v587, 2
        %v589 = vadd.f32 %v587, %v588
        %v590 = vrot.slane %v589, 1
        %v591 = vadd.f32 %v589, %v590
        %v592 = vadd.f32 %v547, %v548
        %v593 = vrot.slane %v592, 4
        %v594 = vadd.f32 %v592, %v593
        %v595 = vrot.slane %v594, 2
        %v596 = vadd.f32 %v594, %v595
        %v597 = vrot.slane %v596, 1
        %v598 = vadd.f32 %v596, %v597
        %v599 = vadd.f32 %v549, %v550
        %v600 = vrot.slane %v599, 4
        %v601 = vadd.f32 %v599, %v600
        %v602 = vrot.slane %v601, 2
        %v603 = vadd.f32 %v601, %v602
        %v604 = vrot.slane %v603, 1
        %v605 = vadd.f32 %v603, %v604
        %v606 = vadd.f32 %v551, %v552
        %v607 = vrot.slane %v606, 4
        %v608 = vadd.f32 %v606, %v607
        %v609 = vrot.slane %v608, 2
        %v610 = vadd.f32 %v608, %v609
        %v611 = vrot.slane %v610, 1
        %v612 = vadd.f32 %v610, %v611
        %v613 = vadd.f32 %v553, %v554
        %v614 = vrot.slane %v613, 4
        %v615 = vadd.f32 %v613, %v614
        %v616 = vrot.slane %v615, 2
        %v617 = vadd.f32 %v615, %v616
        %v618 = vrot.slane %v617, 1
        %v619 = vadd.f32 %v617, %v618
        %v620 = vadd.f32 %v555, %v556
        %v621 = vrot.slane %v620, 4
        %v622 = vadd.f32 %v620, %v621
        %v623 = vrot.slane %v622, 2
        %v624 = vadd.f32 %v622, %v623
        %v625 = vrot.slane %v624, 1
        %v626 = vadd.f32 %v624, %v625
        %v627 = vadd.f32 %v557, %v558
        %v628 = vrot.slane %v627, 4
        %v629 = vadd.f32 %v627, %v628
        %v630 = vrot.slane %v629, 2
        %v631 = vadd.f32 %v629, %v630
        %v632 = vrot.slane %v631, 1
        %v633 = vadd.f32 %v631, %v632
        %v634 = vmul.f32 %v543, %v543
        %v635 = vmul.f32 %v544, %v544
        %v636 = vmul.f32 %v545, %v545
        %v637 = vmul.f32 %v546, %v546
        %v638 = vmul.f32 %v547, %v547
        %v639 = vmul.f32 %v548, %v548
        %v640 = vmul.f32 %v549, %v549
        %v641 = vmul.f32 %v550, %v550
        %v642 = vmul.f32 %v551, %v551
        %v643 = vmul.f32 %v552, %v552
        %v644 = vmul.f32 %v553, %v553
        %v645 = vmul.f32 %v554, %v554
        %v646 = vmul.f32 %v555, %v555
        %v647 = vmul.f32 %v556, %v556
        %v648 = vmul.f32 %v557, %v557
        %v649 = vmul.f32 %v558, %v558
        %v650 = vadd.f32 %v634, %v635
        %v651 = vrot.slane %v650, 4
        %v652 = vadd.f32 %v650, %v651
        %v653 = vrot.slane %v652, 2
        %v654 = vadd.f32 %v652, %v653
        %v655 = vrot.slane %v654, 1
        %v656 = vadd.f32 %v654, %v655
        %v657 = vadd.f32 %v636, %v637
        %v658 = vrot.slane %v657, 4
        %v659 = vadd.f32 %v657, %v658
        %v660 = vrot.slane %v659, 2
        %v661 = vadd.f32 %v659, %v660
        %v662 = vrot.slane %v661, 1
        %v663 = vadd.f32 %v661, %v662
        %v664 = vadd.f32 %v638, %v639
        %v665 = vrot.slane %v664, 4
        %v666 = vadd.f32 %v664, %v665
        %v667 = vrot.slane %v666, 2
        %v668 = vadd.f32 %v666, %v667
        %v669 = vrot.slane %v668, 1
        %v670 = vadd.f32 %v668, %v669
        %v671 = vadd.f32 %v640, %v641
        %v672 = vrot.slane %v671, 4
        %v673 = vadd.f32 %v671, %v672
        %v674 = vrot.slane %v673, 2
        %v675 = vadd.f32 %v673, %v674
        %v676 = vrot.slane %v675, 1
        %v677 = vadd.f32 %v675, %v676
        %v678 = vadd.f32 %v642, %v643
        %v679 = vrot.slane %v678, 4
        %v680 = vadd.f32 %v678, %v679
        %v681 = vrot.slane %v680, 2
        %v682 = vadd.f32 %v680, %v681
        %v683 = vrot.slane %v682, 1
        %v684 = vadd.f32 %v682, %v683
        %v685 = vadd.f32 %v644, %v645
        %v686 = vrot.slane %v685, 4
        %v687 = vadd.f32 %v685, %v686
        %v688 = vrot.slane %v687, 2
        %v689 = vadd.f32 %v687, %v688
        %v690 = vrot.slane %v689, 1
        %v691 = vadd.f32 %v689, %v690
        %v692 = vadd.f32 %v646, %v647
        %v693 = vrot.slane %v692, 4
        %v694 = vadd.f32 %v692, %v693
        %v695 = vrot.slane %v694, 2
        %v696 = vadd.f32 %v694, %v695
        %v697 = vrot.slane %v696, 1
        %v698 = vadd.f32 %v696, %v697
        %v699 = vadd.f32 %v648, %v649
        %v700 = vrot.slane %v699, 4
        %v701 = vadd.f32 %v699, %v700
        %v702 = vrot.slane %v701, 2
        %v703 = vadd.f32 %v701, %v702
        %v704 = vrot.slane %v703, 1
        %v705 = vadd.f32 %v703, %v704
        %vm714 = vcmask 1041409
        %v715 = vsel %vm714, %v591, %v584
        %vm716 = vcmask 1042434
        %v717 = vsel %vm716, %v598, %v715
        %vm718 = vcmask 1043459
        %v719 = vsel %vm718, %v605, %v717
        %vm720 = vcmask 1044484
        %v721 = vsel %vm720, %v612, %v719
        %vm722 = vcmask 1045509
        %v723 = vsel %vm722, %v619, %v721
        %vm724 = vcmask 1046534
        %v725 = vsel %vm724, %v626, %v723
        %vm726 = vcmask 1047559
        %v727 = vsel %vm726, %v633, %v725
        %729 = vmatprep.subr.mxu0 0.0
        %730 = vmatpush1.msra.mxu0 %v559
        %731 = vmatprep.subr.mxu0 0.0
        %732 = vmatpush1.msra.mxu0 %v560
        %733 = vmatprep.subr.mxu0 0.0
        %734 = vmatpush1.msra.mxu0 %v561
        %735 = vmatprep.subr.mxu0 0.0
        %736 = vmatpush1.msra.mxu0 %v562
        %737 = vmatprep.subr.mxu0 0.0
        %738 = vmatpush1.msra.mxu0 %v563
        %739 = vmatprep.subr.mxu0 0.0
        %740 = vmatpush1.msra.mxu0 %v564
        %741 = vmatprep.subr.mxu0 0.0
        %742 = vmatpush1.msra.mxu0 %v565
        %743 = vmatprep.subr.mxu0 0.0
        %744 = vmatpush1.msra.mxu0 %v566
        %745 = vmatprep.subr.mxu0 0.0
        %746 = vmatpush1.msra.mxu0 %v567
        %747 = vmatprep.subr.mxu0 0.0
        %748 = vmatpush1.msra.mxu0 %v568
        %749 = vmatprep.subr.mxu0 0.0
        %750 = vmatpush1.msra.mxu0 %v569
        %751 = vmatprep.subr.mxu0 0.0
        %752 = vmatpush1.msra.mxu0 %v570
        %753 = vmatprep.subr.mxu0 0.0
        %754 = vmatpush1.msra.mxu0 %v571
        %755 = vmatprep.subr.mxu0 0.0
        %756 = vmatpush1.msra.mxu0 %v572
        %757 = vmatprep.subr.mxu0 0.0
        %758 = vmatpush1.msra.mxu0 %v573
        %759 = vmatprep.subr.mxu0 0.0
        %760 = vmatpush1.msra.mxu0 %v574
        %761 = vmatprep.subr.mxu0 0.0
        %762 = vmatpush1.msra.mxu0 0.0
        %763 = vmatprep.subr.mxu0 0.0
        %764 = vmatpush1.msra.mxu0 0.0
        %765 = vmatprep.subr.mxu0 0.0
        %766 = vmatpush1.msra.mxu0 0.0
        %767 = vmatprep.subr.mxu0 0.0
        %768 = vmatpush1.msra.mxu0 0.0
        %769 = vmatprep.subr.mxu0 0.0
        %770 = vmatpush1.msra.mxu0 0.0
        %771 = vmatprep.subr.mxu0 0.0
        %772 = vmatpush1.msra.mxu0 0.0
        %773 = vmatprep.subr.mxu0 0.0
        %774 = vmatpush1.msra.mxu0 0.0
        %775 = vmatprep.subr.mxu0 0.0
        %776 = vmatpush1.msra.mxu0 0.0
        %777 = vmatprep.subr.mxu0 0.0
        %778 = vmatpush1.msra.mxu0 0.0
        %779 = vmatprep.subr.mxu0 0.0
        %780 = vmatpush1.msra.mxu0 0.0
        %781 = vmatprep.subr.mxu0 0.0
        %782 = vmatpush1.msra.mxu0 0.0
        %783 = vmatprep.subr.mxu0 0.0
        %784 = vmatpush1.msra.mxu0 0.0
        %785 = vmatprep.subr.mxu0 0.0
        %786 = vmatpush1.msra.mxu0 0.0
        %787 = vmatprep.subr.mxu0 0.0
        %788 = vmatpush1.msra.mxu0 0.0
        %789 = vmatprep.subr.mxu0 0.0
        %790 = vmatpush1.msra.mxu0 0.0
        %791 = vmatprep.subr.mxu0 0.0
        %792 = vmatpush1.msra.mxu0 0.0
        %793 = vmatprep.mubr.f32.mxu0 0.0
        %794 = vmatmul.mubr.f32.gmra.mrb[0].mxu0 %v727
        %v795 = vpop.f32.mrb[0].mxu0
        %v796 = vadd.f32 0.0, %v795
        %v797 = vpop.f32.mrb[0].mxu0
        %798 = vdwg.mxu0
        %v807 = vsel %vm714, %v663, %v656
        %v808 = vsel %vm716, %v670, %v807
        %v809 = vsel %vm718, %v677, %v808
        %v810 = vsel %vm720, %v684, %v809
        %v811 = vsel %vm722, %v691, %v810
        %v812 = vsel %vm724, %v698, %v811
        %v813 = vsel %vm726, %v705, %v812
        %815 = vmatprep.subr.mxu0 0.0
        %816 = vmatpush1.msra.mxu0 %v559
        %817 = vmatprep.subr.mxu0 0.0
        %818 = vmatpush1.msra.mxu0 %v560
        %819 = vmatprep.subr.mxu0 0.0
        %820 = vmatpush1.msra.mxu0 %v561
        %821 = vmatprep.subr.mxu0 0.0
        %822 = vmatpush1.msra.mxu0 %v562
        %823 = vmatprep.subr.mxu0 0.0
        %824 = vmatpush1.msra.mxu0 %v563
        %825 = vmatprep.subr.mxu0 0.0
        %826 = vmatpush1.msra.mxu0 %v564
        %827 = vmatprep.subr.mxu0 0.0
        %828 = vmatpush1.msra.mxu0 %v565
        %829 = vmatprep.subr.mxu0 0.0
        %830 = vmatpush1.msra.mxu0 %v566
        %831 = vmatprep.subr.mxu0 0.0
        %832 = vmatpush1.msra.mxu0 %v567
        %833 = vmatprep.subr.mxu0 0.0
        %834 = vmatpush1.msra.mxu0 %v568
        %835 = vmatprep.subr.mxu0 0.0
        %836 = vmatpush1.msra.mxu0 %v569
        %837 = vmatprep.subr.mxu0 0.0
        %838 = vmatpush1.msra.mxu0 %v570
        %839 = vmatprep.subr.mxu0 0.0
        %840 = vmatpush1.msra.mxu0 %v571
        %841 = vmatprep.subr.mxu0 0.0
        %842 = vmatpush1.msra.mxu0 %v572
        %843 = vmatprep.subr.mxu0 0.0
        %844 = vmatpush1.msra.mxu0 %v573
        %845 = vmatprep.subr.mxu0 0.0
        %846 = vmatpush1.msra.mxu0 %v574
        %847 = vmatprep.subr.mxu0 0.0
        %848 = vmatpush1.msra.mxu0 0.0
        %849 = vmatprep.subr.mxu0 0.0
        %850 = vmatpush1.msra.mxu0 0.0
        %851 = vmatprep.subr.mxu0 0.0
        %852 = vmatpush1.msra.mxu0 0.0
        %853 = vmatprep.subr.mxu0 0.0
        %854 = vmatpush1.msra.mxu0 0.0
        %855 = vmatprep.subr.mxu0 0.0
        %856 = vmatpush1.msra.mxu0 0.0
        %857 = vmatprep.subr.mxu0 0.0
        %858 = vmatpush1.msra.mxu0 0.0
        %859 = vmatprep.subr.mxu0 0.0
        %860 = vmatpush1.msra.mxu0 0.0
        %861 = vmatprep.subr.mxu0 0.0
        %862 = vmatpush1.msra.mxu0 0.0
        %863 = vmatprep.subr.mxu0 0.0
        %864 = vmatpush1.msra.mxu0 0.0
        %865 = vmatprep.subr.mxu0 0.0
        %866 = vmatpush1.msra.mxu0 0.0
        %867 = vmatprep.subr.mxu0 0.0
        %868 = vmatpush1.msra.mxu0 0.0
        %869 = vmatprep.subr.mxu0 0.0
        %870 = vmatpush1.msra.mxu0 0.0
        %871 = vmatprep.subr.mxu0 0.0
        %872 = vmatpush1.msra.mxu0 0.0
        %873 = vmatprep.subr.mxu0 0.0
        %874 = vmatpush1.msra.mxu0 0.0
        %875 = vmatprep.subr.mxu0 0.0
        %876 = vmatpush1.msra.mxu0 0.0
        %877 = vmatprep.subr.mxu0 0.0
        %878 = vmatpush1.msra.mxu0 0.0
        %879 = vmatprep.mubr.f32.mxu0 0.0
        %880 = vmatmul.mubr.f32.gmra.mrb[0].mxu0 %v813
        %v881 = vpop.f32.mrb[0].mxu0
        %v882 = vadd.f32 0.0, %v881
        %v883 = vpop.f32.mrb[0].mxu0
        %884 = vdwg.mxu0
        %v885 = vmul.f32 %v796, 0.001953125
        %v886 = vmul.f32 %v882, 0.001953125
        %v887 = vmul.f32 %v885, %v885
        %v888 = vsub.f32 %v886, %v887
        %v889 = vmax.f32 %v888, 0.0
        %v890 = vadd.f32 %v889, 1e-05
        %v891 = vrsqrt.pop %v890
        %vm892 = vcmask 31744
        %v894 = vsel %vm892, %v885, 0
        %vm896 = vcmask 1043456
        %v898 = vsel %vm896, %v575, 0
        %900 = vmatprep.subr.mxu0 0.0
        %901 = vmatpush1.msra.mxu0 %v898
        %902 = vmatprep.subr.mxu0 0.0
        %903 = vmatpush1.msra.mxu0 0.0
        %904 = vmatprep.subr.mxu0 0.0
        %905 = vmatpush1.msra.mxu0 0.0
        %906 = vmatprep.subr.mxu0 0.0
        %907 = vmatpush1.msra.mxu0 0.0
        %908 = vmatprep.subr.mxu0 0.0
        %909 = vmatpush1.msra.mxu0 0.0
        %910 = vmatprep.subr.mxu0 0.0
        %911 = vmatpush1.msra.mxu0 0.0
        %912 = vmatprep.subr.mxu0 0.0
        %913 = vmatpush1.msra.mxu0 0.0
        %914 = vmatprep.subr.mxu0 0.0
        %915 = vmatpush1.msra.mxu0 0.0
        %916 = vmatprep.subr.mxu0 0.0
        %917 = vmatpush1.msra.mxu0 0.0
        %918 = vmatprep.subr.mxu0 0.0
        %919 = vmatpush1.msra.mxu0 0.0
        %920 = vmatprep.subr.mxu0 0.0
        %921 = vmatpush1.msra.mxu0 0.0
        %922 = vmatprep.subr.mxu0 0.0
        %923 = vmatpush1.msra.mxu0 0.0
        %924 = vmatprep.subr.mxu0 0.0
        %925 = vmatpush1.msra.mxu0 0.0
        %926 = vmatprep.subr.mxu0 0.0
        %927 = vmatpush1.msra.mxu0 0.0
        %928 = vmatprep.subr.mxu0 0.0
        %929 = vmatpush1.msra.mxu0 0.0
        %930 = vmatprep.subr.mxu0 0.0
        %931 = vmatpush1.msra.mxu0 0.0
        %932 = vmatprep.subr.mxu0 0.0
        %933 = vmatpush1.msra.mxu0 0.0
        %934 = vmatprep.subr.mxu0 0.0
        %935 = vmatpush1.msra.mxu0 0.0
        %936 = vmatprep.subr.mxu0 0.0
        %937 = vmatpush1.msra.mxu0 0.0
        %938 = vmatprep.subr.mxu0 0.0
        %939 = vmatpush1.msra.mxu0 0.0
        %940 = vmatprep.subr.mxu0 0.0
        %941 = vmatpush1.msra.mxu0 0.0
        %942 = vmatprep.subr.mxu0 0.0
        %943 = vmatpush1.msra.mxu0 0.0
        %944 = vmatprep.subr.mxu0 0.0
        %945 = vmatpush1.msra.mxu0 0.0
        %946 = vmatprep.subr.mxu0 0.0
        %947 = vmatpush1.msra.mxu0 0.0
        %948 = vmatprep.subr.mxu0 0.0
        %949 = vmatpush1.msra.mxu0 0.0
        %950 = vmatprep.subr.mxu0 0.0
        %951 = vmatpush1.msra.mxu0 0.0
        %952 = vmatprep.subr.mxu0 0.0
        %953 = vmatpush1.msra.mxu0 0.0
        %954 = vmatprep.subr.mxu0 0.0
        %955 = vmatpush1.msra.mxu0 0.0
        %956 = vmatprep.subr.mxu0 0.0
        %957 = vmatpush1.msra.mxu0 0.0
        %958 = vmatprep.subr.mxu0 0.0
        %959 = vmatpush1.msra.mxu0 0.0
        %960 = vmatprep.subr.mxu0 0.0
        %961 = vmatpush1.msra.mxu0 0.0
        %962 = vmatprep.subr.mxu0 0.0
        %963 = vmatpush1.msra.mxu0 0.0
        %964 = vmatprep.mubr.f32.mxu0 0.0
        %965 = vmatmul.mubr.f32.gmra.mrb[0].mxu0 %v894
        %v966 = vpop.f32.mrb[0].mxu0
        %v967 = vadd.f32 0.0, %v966
        %v968 = vpop.f32.mrb[0].mxu0
        %969 = vdwg.mxu0
        %v971 = vsel %vm892, %v891, 0
        %973 = vmatprep.subr.mxu0 0.0
        %974 = vmatpush1.msra.mxu0 %v898
        %975 = vmatprep.subr.mxu0 0.0
        %976 = vmatpush1.msra.mxu0 0.0
        %977 = vmatprep.subr.mxu0 0.0
        %978 = vmatpush1.msra.mxu0 0.0
        %979 = vmatprep.subr.mxu0 0.0
        %980 = vmatpush1.msra.mxu0 0.0
        %981 = vmatprep.subr.mxu0 0.0
        %982 = vmatpush1.msra.mxu0 0.0
        %983 = vmatprep.subr.mxu0 0.0
        %984 = vmatpush1.msra.mxu0 0.0
        %985 = vmatprep.subr.mxu0 0.0
        %986 = vmatpush1.msra.mxu0 0.0
        %987 = vmatprep.subr.mxu0 0.0
        %988 = vmatpush1.msra.mxu0 0.0
        %989 = vmatprep.subr.mxu0 0.0
        %990 = vmatpush1.msra.mxu0 0.0
        %991 = vmatprep.subr.mxu0 0.0
        %992 = vmatpush1.msra.mxu0 0.0
        %993 = vmatprep.subr.mxu0 0.0
        %994 = vmatpush1.msra.mxu0 0.0
        %995 = vmatprep.subr.mxu0 0.0
        %996 = vmatpush1.msra.mxu0 0.0
        %997 = vmatprep.subr.mxu0 0.0
        %998 = vmatpush1.msra.mxu0 0.0
        %999 = vmatprep.subr.mxu0 0.0
        %1000 = vmatpush1.msra.mxu0 0.0
        %1001 = vmatprep.subr.mxu0 0.0
        %1002 = vmatpush1.msra.mxu0 0.0
        %1003 = vmatprep.subr.mxu0 0.0
        %1004 = vmatpush1.msra.mxu0 0.0
        %1005 = vmatprep.subr.mxu0 0.0
        %1006 = vmatpush1.msra.mxu0 0.0
        %1007 = vmatprep.subr.mxu0 0.0
        %1008 = vmatpush1.msra.mxu0 0.0
        %1009 = vmatprep.subr.mxu0 0.0
        %1010 = vmatpush1.msra.mxu0 0.0
        %1011 = vmatprep.subr.mxu0 0.0
        %1012 = vmatpush1.msra.mxu0 0.0
        %1013 = vmatprep.subr.mxu0 0.0
        %1014 = vmatpush1.msra.mxu0 0.0
        %1015 = vmatprep.subr.mxu0 0.0
        %1016 = vmatpush1.msra.mxu0 0.0
        %1017 = vmatprep.subr.mxu0 0.0
        %1018 = vmatpush1.msra.mxu0 0.0
        %1019 = vmatprep.subr.mxu0 0.0
        %1020 = vmatpush1.msra.mxu0 0.0
        %1021 = vmatprep.subr.mxu0 0.0
        %1022 = vmatpush1.msra.mxu0 0.0
        %1023 = vmatprep.subr.mxu0 0.0
        %1024 = vmatpush1.msra.mxu0 0.0
        %1025 = vmatprep.subr.mxu0 0.0
        %1026 = vmatpush1.msra.mxu0 0.0
        %1027 = vmatprep.subr.mxu0 0.0
        %1028 = vmatpush1.msra.mxu0 0.0
        %1029 = vmatprep.subr.mxu0 0.0
        %1030 = vmatpush1.msra.mxu0 0.0
        %1031 = vmatprep.subr.mxu0 0.0
        %1032 = vmatpush1.msra.mxu0 0.0
        %1033 = vmatprep.subr.mxu0 0.0
        %1034 = vmatpush1.msra.mxu0 0.0
        %1035 = vmatprep.subr.mxu0 0.0
        %1036 = vmatpush1.msra.mxu0 0.0
        %1037 = vmatprep.mubr.f32.mxu0 0.0
        %1038 = vmatmul.mubr.f32.gmra.mrb[0].mxu0 %v971
        %v1039 = vpop.f32.mrb[0].mxu0
        %v1040 = vadd.f32 0.0, %v1039
        %v1041 = vpop.f32.mrb[0].mxu0
        %1042 = vdwg.mxu0
        %v1044 = vcombine.high %v967, %v967
        %v1046 = vunpack.c.l.s4 1966171168
        %v1047 = vunpack.c.0.s8 %v1046
        %v1048 = vlaneseq
        %v1049 = vshrl.u32 %v1048, 7
        %v1050 = vsub.s32 %v1047, %v1049
        %v1051 = vrot.slane %v967, %v1050
        %v1053 = vunpack.c.l.s4 1966171168
        %v1054 = vunpack.c.0.s8 %v1053
        %v1055 = vlaneseq
        %v1056 = vshrl.u32 %v1055, 7
        %v1057 = vsub.s32 %v1054, %v1056
        %v1058 = vrot.slane %v1044, %v1057
        %v1059 = vcombine.high %v1051, %v1051
        %v1060 = vcombine.high %v1058, %v1058
        %v1062 = vunpack.c.l.s4 1966171168
        %v1063 = vunpack.c.0.s8 %v1062
        %v1064 = vlaneseq
        %v1065 = vshrl.u32 %v1064, 7
        %v1066 = vsub.s32 %v1063, %v1065
        %v1067 = vrot.slane %v1051, %v1066
        %v1069 = vunpack.c.l.s4 1966171168
        %v1070 = vunpack.c.0.s8 %v1069
        %v1071 = vlaneseq
        %v1072 = vshrl.u32 %v1071, 7
        %v1073 = vsub.s32 %v1070, %v1072
        %v1074 = vrot.slane %v1058, %v1073
        %v1076 = vunpack.c.l.s4 1966171168
        %v1077 = vunpack.c.0.s8 %v1076
        %v1078 = vlaneseq
        %v1079 = vshrl.u32 %v1078, 7
        %v1080 = vsub.s32 %v1077, %v1079
        %v1081 = vrot.slane %v1059, %v1080
        %v1083 = vunpack.c.l.s4 1966171168
        %v1084 = vunpack.c.0.s8 %v1083
        %v1085 = vlaneseq
        %v1086 = vshrl.u32 %v1085, 7
        %v1087 = vsub.s32 %v1084, %v1086
        %v1088 = vrot.slane %v1060, %v1087
        %v1089 = vcombine.high %v1067, %v1067
        %v1090 = vcombine.high %v1074, %v1074
        %v1091 = vcombine.high %v1081, %v1081
        %v1092 = vcombine.high %v1088, %v1088
        %v1093 = vlaneseq
        %v1094 = vshrl.u32 %v1093, 7
        %v1095 = vsub.s32 0, %v1094
        %v1096 = vrot.slane %v1067, %v1095
        %v1097 = vlaneseq
        %v1098 = vshrl.u32 %v1097, 7
        %v1099 = vsub.s32 0, %v1098
        %v1100 = vrot.slane %v1081, %v1099
        %v1101 = vlaneseq
        %v1102 = vshrl.u32 %v1101, 7
        %v1103 = vsub.s32 0, %v1102
        %v1104 = vrot.slane %v1089, %v1103
        %v1105 = vlaneseq
        %v1106 = vshrl.u32 %v1105, 7
        %v1107 = vsub.s32 0, %v1106
        %v1108 = vrot.slane %v1091, %v1107
        %v1109 = vlaneseq
        %v1110 = vshrl.u32 %v1109, 7
        %v1111 = vsub.s32 0, %v1110
        %v1112 = vrot.slane %v1074, %v1111
        %v1113 = vlaneseq
        %v1114 = vshrl.u32 %v1113, 7
        %v1115 = vsub.s32 0, %v1114
        %v1116 = vrot.slane %v1088, %v1115
        %v1117 = vlaneseq
        %v1118 = vshrl.u32 %v1117, 7
        %v1119 = vsub.s32 0, %v1118
        %v1120 = vrot.slane %v1090, %v1119
        %v1121 = vlaneseq
        %v1122 = vshrl.u32 %v1121, 7
        %v1123 = vsub.s32 0, %v1122
        %v1124 = vrot.slane %v1092, %v1123
        %v1133 = vsub.f32 %v543, %v1096
        %v1134 = vsub.f32 %v544, %v1096
        %v1135 = vsub.f32 %v545, %v1100
        %v1136 = vsub.f32 %v546, %v1100
        %v1137 = vsub.f32 %v547, %v1104
        %v1138 = vsub.f32 %v548, %v1104
        %v1139 = vsub.f32 %v549, %v1108
        %v1140 = vsub.f32 %v550, %v1108
        %v1141 = vsub.f32 %v551, %v1112
        %v1142 = vsub.f32 %v552, %v1112
        %v1143 = vsub.f32 %v553, %v1116
        %v1144 = vsub.f32 %v554, %v1116
        %v1145 = vsub.f32 %v555, %v1120
        %v1146 = vsub.f32 %v556, %v1120
        %v1147 = vsub.f32 %v557, %v1124
        %v1148 = vsub.f32 %v558, %v1124
        %v1150 = vcombine.high %v1040, %v1040
        %v1152 = vunpack.c.l.s4 1966171168
        %v1153 = vunpack.c.0.s8 %v1152
        %v1154 = vlaneseq
        %v1155 = vshrl.u32 %v1154, 7
        %v1156 = vsub.s32 %v1153, %v1155
        %v1157 = vrot.slane %v1040, %v1156
        %v1159 = vunpack.c.l.s4 1966171168
        %v1160 = vunpack.c.0.s8 %v1159
        %v1161 = vlaneseq
        %v1162 = vshrl.u32 %v1161, 7
        %v1163 = vsub.s32 %v1160, %v1162
        %v1164 = vrot.slane %v1150, %v1163
        %v1165 = vcombine.high %v1157, %v1157
        %v1166 = vcombine.high %v1164, %v1164
        %v1168 = vunpack.c.l.s4 1966171168
        %v1169 = vunpack.c.0.s8 %v1168
        %v1170 = vlaneseq
        %v1171 = vshrl.u32 %v1170, 7
        %v1172 = vsub.s32 %v1169, %v1171
        %v1173 = vrot.slane %v1157, %v1172
        %v1175 = vunpack.c.l.s4 1966171168
        %v1176 = vunpack.c.0.s8 %v1175
        %v1177 = vlaneseq
        %v1178 = vshrl.u32 %v1177, 7
        %v1179 = vsub.s32 %v1176, %v1178
        %v1180 = vrot.slane %v1164, %v1179
        %v1182 = vunpack.c.l.s4 1966171168
        %v1183 = vunpack.c.0.s8 %v1182
        %v1184 = vlaneseq
        %v1185 = vshrl.u32 %v1184, 7
        %v1186 = vsub.s32 %v1183, %v1185
        %v1187 = vrot.slane %v1165, %v1186
        %v1189 = vunpack.c.l.s4 1966171168
        %v1190 = vunpack.c.0.s8 %v1189
        %v1191 = vlaneseq
        %v1192 = vshrl.u32 %v1191, 7
        %v1193 = vsub.s32 %v1190, %v1192
        %v1194 = vrot.slane %v1166, %v1193
        %v1195 = vcombine.high %v1173, %v1173
        %v1196 = vcombine.high %v1180, %v1180
        %v1197 = vcombine.high %v1187, %v1187
        %v1198 = vcombine.high %v1194, %v1194
        %v1199 = vlaneseq
        %v1200 = vshrl.u32 %v1199, 7
        %v1201 = vsub.s32 0, %v1200
        %v1202 = vrot.slane %v1173, %v1201
        %v1203 = vlaneseq
        %v1204 = vshrl.u32 %v1203, 7
        %v1205 = vsub.s32 0, %v1204
        %v1206 = vrot.slane %v1187, %v1205
        %v1207 = vlaneseq
        %v1208 = vshrl.u32 %v1207, 7
        %v1209 = vsub.s32 0, %v1208
        %v1210 = vrot.slane %v1195, %v1209
        %v1211 = vlaneseq
        %v1212 = vshrl.u32 %v1211, 7
        %v1213 = vsub.s32 0, %v1212
        %v1214 = vrot.slane %v1197, %v1213
        %v1215 = vlaneseq
        %v1216 = vshrl.u32 %v1215, 7
        %v1217 = vsub.s32 0, %v1216
        %v1218 = vrot.slane %v1180, %v1217
        %v1219 = vlaneseq
        %v1220 = vshrl.u32 %v1219, 7
        %v1221 = vsub.s32 0, %v1220
        %v1222 = vrot.slane %v1194, %v1221
        %v1223 = vlaneseq
        %v1224 = vshrl.u32 %v1223, 7
        %v1225 = vsub.s32 0, %v1224
        %v1226 = vrot.slane %v1196, %v1225
        %v1227 = vlaneseq
        %v1228 = vshrl.u32 %v1227, 7
        %v1229 = vsub.s32 0, %v1228
        %v1230 = vrot.slane %v1198, %v1229
        %v1239 = vmul.f32 %v1133, %v1202
        %v1240 = vmul.f32 %v1134, %v1202
        %v1241 = vmul.f32 %v1135, %v1206
        %v1242 = vmul.f32 %v1136, %v1206
        %v1243 = vmul.f32 %v1137, %v1210
        %v1244 = vmul.f32 %v1138, %v1210
        %v1245 = vmul.f32 %v1139, %v1214
        %v1246 = vmul.f32 %v1140, %v1214
        %v1247 = vmul.f32 %v1141, %v1218
        %v1248 = vmul.f32 %v1142, %v1218
        %v1249 = vmul.f32 %v1143, %v1222
        %v1250 = vmul.f32 %v1144, %v1222
        %v1251 = vmul.f32 %v1145, %v1226
        %v1252 = vmul.f32 %v1146, %v1226
        %v1253 = vmul.f32 %v1147, %v1230
        %v1254 = vmul.f32 %v1148, %v1230
        %v1256 = vlaneseq
        %v1257 = vshrl.u32 %v1256, 7
        %v1258 = vsub.s32 0, %v1257
        %v1259 = vrot.slane %v576, %v1258
        %v1261 = vmul.f32 %v1239, %v1259
        %v1262 = vmul.f32 %v1240, %v1259
        %v1263 = vmul.f32 %v1241, %v1259
        %v1264 = vmul.f32 %v1242, %v1259
        %v1265 = vmul.f32 %v1243, %v1259
        %v1266 = vmul.f32 %v1244, %v1259
        %v1267 = vmul.f32 %v1245, %v1259
        %v1268 = vmul.f32 %v1246, %v1259
        %v1269 = vmul.f32 %v1247, %v1259
        %v1270 = vmul.f32 %v1248, %v1259
        %v1271 = vmul.f32 %v1249, %v1259
        %v1272 = vmul.f32 %v1250, %v1259
        %v1273 = vmul.f32 %v1251, %v1259
        %v1274 = vmul.f32 %v1252, %v1259
        %v1275 = vmul.f32 %v1253, %v1259
        %v1276 = vmul.f32 %v1254, %v1259
        %v1278 = vlaneseq
        %v1279 = vshrl.u32 %v1278, 7
        %v1280 = vsub.s32 0, %v1279
        %v1281 = vrot.slane %v577, %v1280
        %v1283 = vadd.f32 %v1261, %v1281
        %v1284 = vadd.f32 %v1262, %v1281
        %v1285 = vadd.f32 %v1263, %v1281
        %v1286 = vadd.f32 %v1264, %v1281
        %v1287 = vadd.f32 %v1265, %v1281
        %v1288 = vadd.f32 %v1266, %v1281
        %v1289 = vadd.f32 %v1267, %v1281
        %v1290 = vadd.f32 %v1268, %v1281
        %v1291 = vadd.f32 %v1269, %v1281
        %v1292 = vadd.f32 %v1270, %v1281
        %v1293 = vadd.f32 %v1271, %v1281
        %v1294 = vadd.f32 %v1272, %v1281
        %v1295 = vadd.f32 %v1273, %v1281
        %v1296 = vadd.f32 %v1274, %v1281
        %v1297 = vadd.f32 %v1275, %v1281
        %v1298 = vadd.f32 %v1276, %v1281
        %v1299 = vxor.u32 %v1283, 2147483648
        %v1300 = vxor.u32 %v1284, 2147483648
        %v1301 = vxor.u32 %v1285, 2147483648
        %v1302 = vxor.u32 %v1286, 2147483648
        %v1303 = vxor.u32 %v1287, 2147483648
        %v1304 = vxor.u32 %v1288, 2147483648
        %v1305 = vxor.u32 %v1289, 2147483648
        %v1306 = vxor.u32 %v1290, 2147483648
        %v1307 = vxor.u32 %v1291, 2147483648
        %v1308 = vxor.u32 %v1292, 2147483648
        %v1309 = vxor.u32 %v1293, 2147483648
        %v1310 = vxor.u32 %v1294, 2147483648
        %v1311 = vxor.u32 %v1295, 2147483648
        %v1312 = vxor.u32 %v1296, 2147483648
        %v1313 = vxor.u32 %v1297, 2147483648
        %v1314 = vxor.u32 %v1298, 2147483648
        %v1315 = vmul.f32 %v1299, 1.442695
        %v1316 = vpow.pop %v1315
        %v1317 = vmul.f32 %v1300, 1.442695
        %v1318 = vpow.pop %v1317
        %v1319 = vmul.f32 %v1301, 1.442695
        %v1320 = vpow.pop %v1319
        %v1321 = vmul.f32 %v1302, 1.442695
        %v1322 = vpow.pop %v1321
        %v1323 = vmul.f32 %v1303, 1.442695
        %v1324 = vpow.pop %v1323
        %v1325 = vmul.f32 %v1304, 1.442695
        %v1326 = vpow.pop %v1325
        %v1327 = vmul.f32 %v1305, 1.442695
        %v1328 = vpow.pop %v1327
        %v1329 = vmul.f32 %v1306, 1.442695
        %v1330 = vpow.pop %v1329
        %v1331 = vmul.f32 %v1307, 1.442695
        %v1332 = vpow.pop %v1331
        %v1333 = vmul.f32 %v1308, 1.442695
        %v1334 = vpow.pop %v1333
        %v1335 = vmul.f32 %v1309, 1.442695
        %v1336 = vpow.pop %v1335
        %v1337 = vmul.f32 %v1310, 1.442695
        %v1338 = vpow.pop %v1337
        %v1339 = vmul.f32 %v1311, 1.442695
        %v1340 = vpow.pop %v1339
        %v1341 = vmul.f32 %v1312, 1.442695
        %v1342 = vpow.pop %v1341
        %v1343 = vmul.f32 %v1313, 1.442695
        %v1344 = vpow.pop %v1343
        %v1345 = vmul.f32 %v1314, 1.442695
        %v1346 = vpow.pop %v1345
        %v1347 = vadd.f32 %v1316, 1.0
        %v1348 = vadd.f32 %v1318, 1.0
        %v1349 = vadd.f32 %v1320, 1.0
        %v1350 = vadd.f32 %v1322, 1.0
        %v1351 = vadd.f32 %v1324, 1.0
        %v1352 = vadd.f32 %v1326, 1.0
        %v1353 = vadd.f32 %v1328, 1.0
        %v1354 = vadd.f32 %v1330, 1.0
        %v1355 = vadd.f32 %v1332, 1.0
        %v1356 = vadd.f32 %v1334, 1.0
        %v1357 = vadd.f32 %v1336, 1.0
        %v1358 = vadd.f32 %v1338, 1.0
        %v1359 = vadd.f32 %v1340, 1.0
        %v1360 = vadd.f32 %v1342, 1.0
        %v1361 = vadd.f32 %v1344, 1.0
        %v1362 = vadd.f32 %v1346, 1.0
        %v1363 = vrcp.pop %v1347
        %v1364 = vmul.f32 1.0, %v1363
        %v1365 = vrcp.pop %v1348
        %v1366 = vmul.f32 1.0, %v1365
        %v1367 = vrcp.pop %v1349
        %v1368 = vmul.f32 1.0, %v1367
        %v1369 = vrcp.pop %v1350
        %v1370 = vmul.f32 1.0, %v1369
        %v1371 = vrcp.pop %v1351
        %v1372 = vmul.f32 1.0, %v1371
        %v1373 = vrcp.pop %v1352
        %v1374 = vmul.f32 1.0, %v1373
        %v1375 = vrcp.pop %v1353
        %v1376 = vmul.f32 1.0, %v1375
        %v1377 = vrcp.pop %v1354
        %v1378 = vmul.f32 1.0, %v1377
        %v1379 = vrcp.pop %v1355
        %v1380 = vmul.f32 1.0, %v1379
        %v1381 = vrcp.pop %v1356
        %v1382 = vmul.f32 1.0, %v1381
        %v1383 = vrcp.pop %v1357
        %v1384 = vmul.f32 1.0, %v1383
        %v1385 = vrcp.pop %v1358
        %v1386 = vmul.f32 1.0, %v1385
        %v1387 = vrcp.pop %v1359
        %v1388 = vmul.f32 1.0, %v1387
        %v1389 = vrcp.pop %v1360
        %v1390 = vmul.f32 1.0, %v1389
        %v1391 = vrcp.pop %v1361
        %v1392 = vmul.f32 1.0, %v1391
        %v1393 = vrcp.pop %v1362
        %v1394 = vmul.f32 1.0, %v1393
        %v1395 = vmul.f32 %v1283, %v1364
        %v1396 = vmul.f32 %v1284, %v1366
        %v1397 = vmul.f32 %v1285, %v1368
        %v1398 = vmul.f32 %v1286, %v1370
        %v1399 = vmul.f32 %v1287, %v1372
        %v1400 = vmul.f32 %v1288, %v1374
        %v1401 = vmul.f32 %v1289, %v1376
        %v1402 = vmul.f32 %v1290, %v1378
        %v1403 = vmul.f32 %v1291, %v1380
        %v1404 = vmul.f32 %v1292, %v1382
        %v1405 = vmul.f32 %v1293, %v1384
        %v1406 = vmul.f32 %v1294, %v1386
        %v1407 = vmul.f32 %v1295, %v1388
        %v1408 = vmul.f32 %v1296, %v1390
        %v1409 = vmul.f32 %v1297, %v1392
        %v1410 = vmul.f32 %v1298, %v1394
        %v1411 = vld [vmem:[%s6] sm:$0x3]
        %v1412 = vlaneseq
        %v1413 = vshrl.u32 %v1412, 7
        %v1414 = vadd.s32 %v1413, 8
        %v1415 = vadd.s32 %v1413, 16
        %v1416 = vadd.s32 %v1413, 24
        %v1417 = vadd.s32 %v1413, 32
        %v1418 = vadd.s32 %v1413, 40
        %v1419 = vadd.s32 %v1413, 48
        %v1420 = vadd.s32 %v1413, 56
        %v1421 = vadd.s32 %v1413, 64
        %v1422 = vadd.s32 %v1413, 72
        %v1423 = vadd.s32 %v1413, 80
        %v1424 = vadd.s32 %v1413, 88
        %v1425 = vadd.s32 %v1413, 96
        %v1426 = vadd.s32 %v1413, 104
        %v1427 = vadd.s32 %v1413, 112
        %v1428 = vadd.s32 %v1413, 120
        %vm1429 = vcmp.lt.s32.totalorder %v1413, 0
        %v1430 = vsub.s32 0, %v1413
        %v1431 = vsel %vm1429, %v1430, %v1413
        %v1432 = vshrl.u32 %v1431, 4
        %v1433 = vand.u32 %v1431, 15
        %v1434 = vsub.s32 0, %v1433
        %v1435 = vsel %vm1429, %v1434, %v1433
        %vm1436 = vcmp.lt.s32.totalorder %v1414, 0
        %v1437 = vsub.s32 0, %v1414
        %v1438 = vsel %vm1436, %v1437, %v1414
        %v1439 = vshrl.u32 %v1438, 4
        %v1440 = vand.u32 %v1438, 15
        %v1441 = vsub.s32 0, %v1440
        %v1442 = vsel %vm1436, %v1441, %v1440
        %vm1443 = vcmp.lt.s32.totalorder %v1415, 0
        %v1444 = vsub.s32 0, %v1415
        %v1445 = vsel %vm1443, %v1444, %v1415
        %v1446 = vshrl.u32 %v1445, 4
        %v1447 = vand.u32 %v1445, 15
        %v1448 = vsub.s32 0, %v1447
        %v1449 = vsel %vm1443, %v1448, %v1447
        %vm1450 = vcmp.lt.s32.totalorder %v1416, 0
        %v1451 = vsub.s32 0, %v1416
        %v1452 = vsel %vm1450, %v1451, %v1416
        %v1453 = vshrl.u32 %v1452, 4
        %v1454 = vand.u32 %v1452, 15
        %v1455 = vsub.s32 0, %v1454
        %v1456 = vsel %vm1450, %v1455, %v1454
        %vm1457 = vcmp.lt.s32.totalorder %v1417, 0
        %v1458 = vsub.s32 0, %v1417
        %v1459 = vsel %vm1457, %v1458, %v1417
        %v1460 = vshrl.u32 %v1459, 4
        %v1461 = vand.u32 %v1459, 15
        %v1462 = vsub.s32 0, %v1461
        %v1463 = vsel %vm1457, %v1462, %v1461
        %vm1464 = vcmp.lt.s32.totalorder %v1418, 0
        %v1465 = vsub.s32 0, %v1418
        %v1466 = vsel %vm1464, %v1465, %v1418
        %v1467 = vshrl.u32 %v1466, 4
        %v1468 = vand.u32 %v1466, 15
        %v1469 = vsub.s32 0, %v1468
        %v1470 = vsel %vm1464, %v1469, %v1468
        %vm1471 = vcmp.lt.s32.totalorder %v1419, 0
        %v1472 = vsub.s32 0, %v1419
        %v1473 = vsel %vm1471, %v1472, %v1419
        %v1474 = vshrl.u32 %v1473, 4
        %v1475 = vand.u32 %v1473, 15
        %v1476 = vsub.s32 0, %v1475
        %v1477 = vsel %vm1471, %v1476, %v1475
        %vm1478 = vcmp.lt.s32.totalorder %v1420, 0
        %v1479 = vsub.s32 0, %v1420
        %v1480 = vsel %vm1478, %v1479, %v1420
        %v1481 = vshrl.u32 %v1480, 4
        %v1482 = vand.u32 %v1480, 15
        %v1483 = vsub.s32 0, %v1482
        %v1484 = vsel %vm1478, %v1483, %v1482
        %vm1485 = vcmp.lt.s32.totalorder %v1421, 0
        %v1486 = vsub.s32 0, %v1421
        %v1487 = vsel %vm1485, %v1486, %v1421
        %v1488 = vshrl.u32 %v1487, 4
        %v1489 = vand.u32 %v1487, 15
        %v1490 = vsub.s32 0, %v1489
        %v1491 = vsel %vm1485, %v1490, %v1489
        %vm1492 = vcmp.lt.s32.totalorder %v1422, 0
        %v1493 = vsub.s32 0, %v1422
        %v1494 = vsel %vm1492, %v1493, %v1422
        %v1495 = vshrl.u32 %v1494, 4
        %v1496 = vand.u32 %v1494, 15
        %v1497 = vsub.s32 0, %v1496
        %v1498 = vsel %vm1492, %v1497, %v1496
        %vm1499 = vcmp.lt.s32.totalorder %v1423, 0
        %v1500 = vsub.s32 0, %v1423
        %v1501 = vsel %vm1499, %v1500, %v1423
        %v1502 = vshrl.u32 %v1501, 4
        %v1503 = vand.u32 %v1501, 15
        %v1504 = vsub.s32 0, %v1503
        %v1505 = vsel %vm1499, %v1504, %v1503
        %vm1506 = vcmp.lt.s32.totalorder %v1424, 0
        %v1507 = vsub.s32 0, %v1424
        %v1508 = vsel %vm1506, %v1507, %v1424
        %v1509 = vshrl.u32 %v1508, 4
        %v1510 = vand.u32 %v1508, 15
        %v1511 = vsub.s32 0, %v1510
        %v1512 = vsel %vm1506, %v1511, %v1510
        %vm1513 = vcmp.lt.s32.totalorder %v1425, 0
        %v1514 = vsub.s32 0, %v1425
        %v1515 = vsel %vm1513, %v1514, %v1425
        %v1516 = vshrl.u32 %v1515, 4
        %v1517 = vand.u32 %v1515, 15
        %v1518 = vsub.s32 0, %v1517
        %v1519 = vsel %vm1513, %v1518, %v1517
        %vm1520 = vcmp.lt.s32.totalorder %v1426, 0
        %v1521 = vsub.s32 0, %v1426
        %v1522 = vsel %vm1520, %v1521, %v1426
        %v1523 = vshrl.u32 %v1522, 4
        %v1524 = vand.u32 %v1522, 15
        %v1525 = vsub.s32 0, %v1524
        %v1526 = vsel %vm1520, %v1525, %v1524
        %vm1527 = vcmp.lt.s32.totalorder %v1427, 0
        %v1528 = vsub.s32 0, %v1427
        %v1529 = vsel %vm1527, %v1528, %v1427
        %v1530 = vshrl.u32 %v1529, 4
        %v1531 = vand.u32 %v1529, 15
        %v1532 = vsub.s32 0, %v1531
        %v1533 = vsel %vm1527, %v1532, %v1531
        %vm1534 = vcmp.lt.s32.totalorder %v1428, 0
        %v1535 = vsub.s32 0, %v1428
        %v1536 = vsel %vm1534, %v1535, %v1428
        %v1537 = vshrl.u32 %v1536, 4
        %v1538 = vand.u32 %v1536, 15
        %v1539 = vsub.s32 0, %v1538
        %v1540 = vsel %vm1534, %v1539, %v1538
        %vm1541 = vcmp.ne.s32.totalorder %v1435, 0
        %vm1542 = vcmp.ne.s32.totalorder %v1442, 0
        %vm1543 = vcmp.ne.s32.totalorder %v1449, 0
        %vm1544 = vcmp.ne.s32.totalorder %v1456, 0
        %vm1545 = vcmp.ne.s32.totalorder %v1463, 0
        %vm1546 = vcmp.ne.s32.totalorder %v1470, 0
        %vm1547 = vcmp.ne.s32.totalorder %v1477, 0
        %vm1548 = vcmp.ne.s32.totalorder %v1484, 0
        %vm1549 = vcmp.ne.s32.totalorder %v1491, 0
        %vm1550 = vcmp.ne.s32.totalorder %v1498, 0
        %vm1551 = vcmp.ne.s32.totalorder %v1505, 0
        %vm1552 = vcmp.ne.s32.totalorder %v1512, 0
        %vm1553 = vcmp.ne.s32.totalorder %v1519, 0
        %vm1554 = vcmp.ne.s32.totalorder %v1526, 0
        %vm1555 = vcmp.ne.s32.totalorder %v1533, 0
        %vm1556 = vcmp.ne.s32.totalorder %v1540, 0
        %vm1557 = vcmp.lt.s32.totalorder %v1435, 0
        %vm1558 = vcmp.lt.s32.totalorder %v1442, 0
        %vm1559 = vcmp.lt.s32.totalorder %v1449, 0
        %vm1560 = vcmp.lt.s32.totalorder %v1456, 0
        %vm1561 = vcmp.lt.s32.totalorder %v1463, 0
        %vm1562 = vcmp.lt.s32.totalorder %v1470, 0
        %vm1563 = vcmp.lt.s32.totalorder %v1477, 0
        %vm1564 = vcmp.lt.s32.totalorder %v1484, 0
        %vm1565 = vcmp.lt.s32.totalorder %v1491, 0
        %vm1566 = vcmp.lt.s32.totalorder %v1498, 0
        %vm1567 = vcmp.lt.s32.totalorder %v1505, 0
        %vm1568 = vcmp.lt.s32.totalorder %v1512, 0
        %vm1569 = vcmp.lt.s32.totalorder %v1519, 0
        %vm1570 = vcmp.lt.s32.totalorder %v1526, 0
        %vm1571 = vcmp.lt.s32.totalorder %v1533, 0
        %vm1572 = vcmp.lt.s32.totalorder %v1540, 0
        %vm1573 = vmand %vm1557, %vm1541
        %vm1574 = vmand %vm1558, %vm1542
        %vm1575 = vmand %vm1559, %vm1543
        %vm1576 = vmand %vm1560, %vm1544
        %vm1577 = vmand %vm1561, %vm1545
        %vm1578 = vmand %vm1562, %vm1546
        %vm1579 = vmand %vm1563, %vm1547
        %vm1580 = vmand %vm1564, %vm1548
        %vm1581 = vmand %vm1565, %vm1549
        %vm1582 = vmand %vm1566, %vm1550
        %vm1583 = vmand %vm1567, %vm1551
        %vm1584 = vmand %vm1568, %vm1552
        %vm1585 = vmand %vm1569, %vm1553
        %vm1586 = vmand %vm1570, %vm1554
        %vm1587 = vmand %vm1571, %vm1555
        %vm1588 = vmand %vm1572, %vm1556
        %v1589 = vadd.s32 %v1435, 16
        %v1590 = vadd.s32 %v1442, 16
        %v1591 = vadd.s32 %v1449, 16
        %v1592 = vadd.s32 %v1456, 16
        %v1593 = vadd.s32 %v1463, 16
        %v1594 = vadd.s32 %v1470, 16
        %v1595 = vadd.s32 %v1477, 16
        %v1596 = vadd.s32 %v1484, 16
        %v1597 = vadd.s32 %v1491, 16
        %v1598 = vadd.s32 %v1498, 16
        %v1599 = vadd.s32 %v1505, 16
        %v1600 = vadd.s32 %v1512, 16
        %v1601 = vadd.s32 %v1519, 16
        %v1602 = vadd.s32 %v1526, 16
        %v1603 = vadd.s32 %v1533, 16
        %v1604 = vadd.s32 %v1540, 16
        %v1605 = vsel %vm1573, %v1589, %v1435
        %v1606 = vsel %vm1574, %v1590, %v1442
        %v1607 = vsel %vm1575, %v1591, %v1449
        %v1608 = vsel %vm1576, %v1592, %v1456
        %v1609 = vsel %vm1577, %v1593, %v1463
        %v1610 = vsel %vm1578, %v1594, %v1470
        %v1611 = vsel %vm1579, %v1595, %v1477
        %v1612 = vsel %vm1580, %v1596, %v1484
        %v1613 = vsel %vm1581, %v1597, %v1491
        %v1614 = vsel %vm1582, %v1598, %v1498
        %v1615 = vsel %vm1583, %v1599, %v1505
        %v1616 = vsel %vm1584, %v1600, %v1512
        %v1617 = vsel %vm1585, %v1601, %v1519
        %v1618 = vsel %vm1586, %v1602, %v1526
        %v1619 = vsel %vm1587, %v1603, %v1533
        %v1620 = vsel %vm1588, %v1604, %v1540
        %vm1621 = vcmp.eq.s32.totalorder %v1605, 0
        %vm1622 = vcmp.eq.s32.totalorder %v1606, 0
        %vm1623 = vcmp.eq.s32.totalorder %v1607, 0
        %vm1624 = vcmp.eq.s32.totalorder %v1608, 0
        %vm1625 = vcmp.eq.s32.totalorder %v1609, 0
        %vm1626 = vcmp.eq.s32.totalorder %v1610, 0
        %vm1627 = vcmp.eq.s32.totalorder %v1611, 0
        %vm1628 = vcmp.eq.s32.totalorder %v1612, 0
        %vm1629 = vcmp.eq.s32.totalorder %v1613, 0
        %vm1630 = vcmp.eq.s32.totalorder %v1614, 0
        %vm1631 = vcmp.eq.s32.totalorder %v1615, 0
        %vm1632 = vcmp.eq.s32.totalorder %v1616, 0
        %vm1633 = vcmp.eq.s32.totalorder %v1617, 0
        %vm1634 = vcmp.eq.s32.totalorder %v1618, 0
        %vm1635 = vcmp.eq.s32.totalorder %v1619, 0
        %vm1636 = vcmp.eq.s32.totalorder %v1620, 0
        %v1637 = vrot.slane %v1395, 7
        %v1638 = vrot.slane %v1396, 7
        %v1639 = vrot.slane %v1397, 7
        %v1640 = vrot.slane %v1398, 7
        %v1641 = vrot.slane %v1399, 7
        %v1642 = vrot.slane %v1400, 7
        %v1643 = vrot.slane %v1401, 7
        %v1644 = vrot.slane %v1402, 7
        %v1645 = vrot.slane %v1403, 7
        %v1646 = vrot.slane %v1404, 7
        %v1647 = vrot.slane %v1405, 7
        %v1648 = vrot.slane %v1406, 7
        %v1649 = vrot.slane %v1407, 7
        %v1650 = vrot.slane %v1408, 7
        %v1651 = vrot.slane %v1409, 7
        %v1652 = vrot.slane %v1410, 7
        %vm1653 = vcmp.lt.s32.totalorder %v1413, 1
        %v1654 = vsel %vm1653, %v1651, %v1652
        %v1655 = vsel %vm1653, %v1650, %v1651
        %v1656 = vsel %vm1653, %v1649, %v1650
        %v1657 = vsel %vm1653, %v1648, %v1649
        %v1658 = vsel %vm1653, %v1647, %v1648
        %v1659 = vsel %vm1653, %v1646, %v1647
        %v1660 = vsel %vm1653, %v1645, %v1646
        %v1661 = vsel %vm1653, %v1644, %v1645
        %v1662 = vsel %vm1653, %v1643, %v1644
        %v1663 = vsel %vm1653, %v1642, %v1643
        %v1664 = vsel %vm1653, %v1641, %v1642
        %v1665 = vsel %vm1653, %v1640, %v1641
        %v1666 = vsel %vm1653, %v1639, %v1640
        %v1667 = vsel %vm1653, %v1638, %v1639
        %v1668 = vsel %vm1653, %v1637, %v1638
        %v1669 = vsel %vm1653, %v1652, %v1637
        %v1670 = vsel %vm1621, 1, 0
        %v1671 = vsel %vm1622, 1, 0
        %v1672 = vsel %vm1623, 1, 0
        %v1673 = vsel %vm1624, 1, 0
        %v1674 = vsel %vm1625, 1, 0
        %v1675 = vsel %vm1626, 1, 0
        %v1676 = vsel %vm1627, 1, 0
        %v1677 = vsel %vm1628, 1, 0
        %v1678 = vsel %vm1629, 1, 0
        %v1679 = vsel %vm1630, 1, 0
        %v1680 = vsel %vm1631, 1, 0
        %v1681 = vsel %vm1632, 1, 0
        %v1682 = vsel %vm1633, 1, 0
        %v1683 = vsel %vm1634, 1, 0
        %v1684 = vsel %vm1635, 1, 0
        %v1685 = vsel %vm1636, 1, 0
        %vm1686 = vcmp.eq.s32.totalorder %v1670, 1
        %vm1687 = vcmp.eq.s32.totalorder %v1671, 1
        %vm1688 = vcmp.eq.s32.totalorder %v1672, 1
        %vm1689 = vcmp.eq.s32.totalorder %v1673, 1
        %vm1690 = vcmp.eq.s32.totalorder %v1674, 1
        %vm1691 = vcmp.eq.s32.totalorder %v1675, 1
        %vm1692 = vcmp.eq.s32.totalorder %v1676, 1
        %vm1693 = vcmp.eq.s32.totalorder %v1677, 1
        %vm1694 = vcmp.eq.s32.totalorder %v1678, 1
        %vm1695 = vcmp.eq.s32.totalorder %v1679, 1
        %vm1696 = vcmp.eq.s32.totalorder %v1680, 1
        %vm1697 = vcmp.eq.s32.totalorder %v1681, 1
        %vm1698 = vcmp.eq.s32.totalorder %v1682, 1
        %vm1699 = vcmp.eq.s32.totalorder %v1683, 1
        %vm1700 = vcmp.eq.s32.totalorder %v1684, 1
        %vm1701 = vcmp.eq.s32.totalorder %v1685, 1
        %v1702 = vsel %vm1686, 0.0, %v1669
        %v1703 = vsel %vm1687, 0.0, %v1668
        %v1704 = vsel %vm1688, 0.0, %v1667
        %v1705 = vsel %vm1689, 0.0, %v1666
        %v1706 = vsel %vm1690, 0.0, %v1665
        %v1707 = vsel %vm1691, 0.0, %v1664
        %v1708 = vsel %vm1692, 0.0, %v1663
        %v1709 = vsel %vm1693, 0.0, %v1662
        %v1710 = vsel %vm1694, 0.0, %v1661
        %v1711 = vsel %vm1695, 0.0, %v1660
        %v1712 = vsel %vm1696, 0.0, %v1659
        %v1713 = vsel %vm1697, 0.0, %v1658
        %v1714 = vsel %vm1698, 0.0, %v1657
        %v1715 = vsel %vm1699, 0.0, %v1656
        %v1716 = vsel %vm1700, 0.0, %v1655
        %v1717 = vsel %vm1701, 0.0, %v1654
        %vm1718 = vcmp.eq.s32.totalorder %v1605, 15
        %vm1719 = vcmp.eq.s32.totalorder %v1606, 15
        %vm1720 = vcmp.eq.s32.totalorder %v1607, 15
        %vm1721 = vcmp.eq.s32.totalorder %v1608, 15
        %vm1722 = vcmp.eq.s32.totalorder %v1609, 15
        %vm1723 = vcmp.eq.s32.totalorder %v1610, 15
        %vm1724 = vcmp.eq.s32.totalorder %v1611, 15
        %vm1725 = vcmp.eq.s32.totalorder %v1612, 15
        %vm1726 = vcmp.eq.s32.totalorder %v1613, 15
        %vm1727 = vcmp.eq.s32.totalorder %v1614, 15
        %vm1728 = vcmp.eq.s32.totalorder %v1615, 15
        %vm1729 = vcmp.eq.s32.totalorder %v1616, 15
        %vm1730 = vcmp.eq.s32.totalorder %v1617, 15
        %vm1731 = vcmp.eq.s32.totalorder %v1618, 15
        %vm1732 = vcmp.eq.s32.totalorder %v1619, 15
        %vm1733 = vcmp.eq.s32.totalorder %v1620, 15
        %v1734 = vrot.slane %v1395, 1
        %v1735 = vrot.slane %v1396, 1
        %v1736 = vrot.slane %v1397, 1
        %v1737 = vrot.slane %v1398, 1
        %v1738 = vrot.slane %v1399, 1
        %v1739 = vrot.slane %v1400, 1
        %v1740 = vrot.slane %v1401, 1
        %v1741 = vrot.slane %v1402, 1
        %v1742 = vrot.slane %v1403, 1
        %v1743 = vrot.slane %v1404, 1
        %v1744 = vrot.slane %v1405, 1
        %v1745 = vrot.slane %v1406, 1
        %v1746 = vrot.slane %v1407, 1
        %v1747 = vrot.slane %v1408, 1
        %v1748 = vrot.slane %v1409, 1
        %v1749 = vrot.slane %v1410, 1
        %vm1750 = vcmp.lt.s32.totalorder %v1413, 7
        %v1751 = vsel %vm1750, %v1748, %v1749
        %v1752 = vsel %vm1750, %v1747, %v1748
        %v1753 = vsel %vm1750, %v1746, %v1747
        %v1754 = vsel %vm1750, %v1745, %v1746
        %v1755 = vsel %vm1750, %v1744, %v1745
        %v1756 = vsel %vm1750, %v1743, %v1744
        %v1757 = vsel %vm1750, %v1742, %v1743
        %v1758 = vsel %vm1750, %v1741, %v1742
        %v1759 = vsel %vm1750, %v1740, %v1741
        %v1760 = vsel %vm1750, %v1739, %v1740
        %v1761 = vsel %vm1750, %v1738, %v1739
        %v1762 = vsel %vm1750, %v1737, %v1738
        %v1763 = vsel %vm1750, %v1736, %v1737
        %v1764 = vsel %vm1750, %v1735, %v1736
        %v1765 = vsel %vm1750, %v1734, %v1735
        %v1766 = vsel %vm1750, %v1749, %v1734
        %v1767 = vsel %vm1718, 1, 0
        %v1768 = vsel %vm1719, 1, 0
        %v1769 = vsel %vm1720, 1, 0
        %v1770 = vsel %vm1721, 1, 0
        %v1771 = vsel %vm1722, 1, 0
        %v1772 = vsel %vm1723, 1, 0
        %v1773 = vsel %vm1724, 1, 0
        %v1774 = vsel %vm1725, 1, 0
        %v1775 = vsel %vm1726, 1, 0
        %v1776 = vsel %vm1727, 1, 0
        %v1777 = vsel %vm1728, 1, 0
        %v1778 = vsel %vm1729, 1, 0
        %v1779 = vsel %vm1730, 1, 0
        %v1780 = vsel %vm1731, 1, 0
        %v1781 = vsel %vm1732, 1, 0
        %v1782 = vsel %vm1733, 1, 0
        %vm1783 = vcmp.eq.s32.totalorder %v1767, 1
        %vm1784 = vcmp.eq.s32.totalorder %v1768, 1
        %vm1785 = vcmp.eq.s32.totalorder %v1769, 1
        %vm1786 = vcmp.eq.s32.totalorder %v1770, 1
        %vm1787 = vcmp.eq.s32.totalorder %v1771, 1
        %vm1788 = vcmp.eq.s32.totalorder %v1772, 1
        %vm1789 = vcmp.eq.s32.totalorder %v1773, 1
        %vm1790 = vcmp.eq.s32.totalorder %v1774, 1
        %vm1791 = vcmp.eq.s32.totalorder %v1775, 1
        %vm1792 = vcmp.eq.s32.totalorder %v1776, 1
        %vm1793 = vcmp.eq.s32.totalorder %v1777, 1
        %vm1794 = vcmp.eq.s32.totalorder %v1778, 1
        %vm1795 = vcmp.eq.s32.totalorder %v1779, 1
        %vm1796 = vcmp.eq.s32.totalorder %v1780, 1
        %vm1797 = vcmp.eq.s32.totalorder %v1781, 1
        %vm1798 = vcmp.eq.s32.totalorder %v1782, 1
        %v1799 = vsel %vm1783, 0.0, %v1765
        %v1800 = vsel %vm1784, 0.0, %v1764
        %v1801 = vsel %vm1785, 0.0, %v1763
        %v1802 = vsel %vm1786, 0.0, %v1762
        %v1803 = vsel %vm1787, 0.0, %v1761
        %v1804 = vsel %vm1788, 0.0, %v1760
        %v1805 = vsel %vm1789, 0.0, %v1759
        %v1806 = vsel %vm1790, 0.0, %v1758
        %v1807 = vsel %vm1791, 0.0, %v1757
        %v1808 = vsel %vm1792, 0.0, %v1756
        %v1809 = vsel %vm1793, 0.0, %v1755
        %v1810 = vsel %vm1794, 0.0, %v1754
        %v1811 = vsel %vm1795, 0.0, %v1753
        %v1812 = vsel %vm1796, 0.0, %v1752
        %v1813 = vsel %vm1797, 0.0, %v1751
        %v1814 = vsel %vm1798, 0.0, %v1766
        %v1815 = vld [vmem:[#allocation2] sm:$0xff]
        %v1816 = vld [vmem:[#allocation2 + $0x8] sm:$0xff]
        %v1817 = vld [vmem:[#allocation2 + $0x10] sm:$0xff]
        %v1818 = vld [vmem:[#allocation2 + $0x18] sm:$0xff]
        %v1819 = vld [vmem:[#allocation2 + $0x20] sm:$0xff]
        %v1820 = vld [vmem:[#allocation2 + $0x28] sm:$0xff]
        %v1821 = vld [vmem:[#allocation2 + $0x30] sm:$0xff]
        %v1822 = vld [vmem:[#allocation2 + $0x38] sm:$0xff]
        %v1823 = vld [vmem:[#allocation2 + $0x40] sm:$0xff]
        %v1824 = vld [vmem:[#allocation2 + $0x48] sm:$0xff]
        %v1825 = vld [vmem:[#allocation2 + $0x50] sm:$0xff]
        %v1826 = vld [vmem:[#allocation2 + $0x58] sm:$0xff]
        %v1827 = vld [vmem:[#allocation2 + $0x60] sm:$0xff]
        %v1828 = vld [vmem:[#allocation2 + $0x68] sm:$0xff]
        %v1829 = vld [vmem:[#allocation2 + $0x70] sm:$0xff]
        %v1830 = vld [vmem:[#allocation2 + $0x78] sm:$0xff]
        %v1831 = vld [vmem:[#allocation2 + $0x80] sm:$0xff]
        %v1832 = vld [vmem:[#allocation2 + $0x88] sm:$0xff]
        %v1833 = vld [vmem:[#allocation2 + $0x90] sm:$0xff]
        %v1834 = vld [vmem:[#allocation2 + $0x98] sm:$0xff]
        %v1835 = vld [vmem:[#allocation2 + $0xa0] sm:$0xff]
        %v1836 = vld [vmem:[#allocation2 + $0xa8] sm:$0xff]
        %v1837 = vld [vmem:[#allocation2 + $0xb0] sm:$0xff]
        %v1838 = vld [vmem:[#allocation2 + $0xb8] sm:$0xff]
        %v1839 = vld [vmem:[#allocation2 + $0xc0] sm:$0xff]
        %v1840 = vld [vmem:[#allocation2 + $0xc8] sm:$0xff]
        %v1841 = vld [vmem:[#allocation2 + $0xd0] sm:$0xff]
        %v1842 = vld [vmem:[#allocation2 + $0xd8] sm:$0xff]
        %v1843 = vld [vmem:[#allocation2 + $0xe0] sm:$0xff]
        %v1844 = vld [vmem:[#allocation2 + $0xe8] sm:$0xff]
        %v1845 = vld [vmem:[#allocation2 + $0xf0] sm:$0xff]
        %v1846 = vld [vmem:[#allocation2 + $0xf8] sm:$0xff]
        %s1847 = scalar_lea.vmem [#allocation2], 256
        %v1848 = vld [vmem:[%s1847] sm:$0xff]
        %v1849 = vld [vmem:[%s1847 + $0x8] sm:$0xff]
        %v1850 = vld [vmem:[%s1847 + $0x10] sm:$0xff]
        %v1851 = vld [vmem:[%s1847 + $0x18] sm:$0xff]
        %v1852 = vld [vmem:[%s1847 + $0x20] sm:$0xff]
        %v1853 = vld [vmem:[%s1847 + $0x28] sm:$0xff]
        %v1854 = vld [vmem:[%s1847 + $0x30] sm:$0xff]
        %v1855 = vld [vmem:[%s1847 + $0x38] sm:$0xff]
        %v1856 = vld [vmem:[%s1847 + $0x40] sm:$0xff]
        %v1857 = vld [vmem:[%s1847 + $0x48] sm:$0xff]
        %v1858 = vld [vmem:[%s1847 + $0x50] sm:$0xff]
        %v1859 = vld [vmem:[%s1847 + $0x58] sm:$0xff]
        %v1860 = vld [vmem:[%s1847 + $0x60] sm:$0xff]
        %v1861 = vld [vmem:[%s1847 + $0x68] sm:$0xff]
        %v1862 = vld [vmem:[%s1847 + $0x70] sm:$0xff]
        %v1863 = vld [vmem:[%s1847 + $0x78] sm:$0xff]
        %v1864 = vld [vmem:[%s1847 + $0x80] sm:$0xff]
        %v1865 = vld [vmem:[%s1847 + $0x88] sm:$0xff]
        %v1866 = vld [vmem:[%s1847 + $0x90] sm:$0xff]
        %v1867 = vld [vmem:[%s1847 + $0x98] sm:$0xff]
        %v1868 = vld [vmem:[%s1847 + $0xa0] sm:$0xff]
        %v1869 = vld [vmem:[%s1847 + $0xa8] sm:$0xff]
        %v1870 = vld [vmem:[%s1847 + $0xb0] sm:$0xff]
        %v1871 = vld [vmem:[%s1847 + $0xb8] sm:$0xff]
        %v1872 = vld [vmem:[%s1847 + $0xc0] sm:$0xff]
        %v1873 = vld [vmem:[%s1847 + $0xc8] sm:$0xff]
        %v1874 = vld [vmem:[%s1847 + $0xd0] sm:$0xff]
        %v1875 = vld [vmem:[%s1847 + $0xd8] sm:$0xff]
        %v1876 = vld [vmem:[%s1847 + $0xe0] sm:$0xff]
        %v1877 = vld [vmem:[%s1847 + $0xe8] sm:$0xff]
        %v1878 = vld [vmem:[%s1847 + $0xf0] sm:$0xff]
        %v1879 = vld [vmem:[%s1847 + $0xf8] sm:$0xff]
        %s1880 = scalar_lea.vmem [#allocation2], 512
        %v1881 = vld [vmem:[%s1880] sm:$0xff]
        %v1882 = vld [vmem:[%s1880 + $0x8] sm:$0xff]
        %v1883 = vld [vmem:[%s1880 + $0x10] sm:$0xff]
        %v1884 = vld [vmem:[%s1880 + $0x18] sm:$0xff]
        %v1885 = vld [vmem:[%s1880 + $0x20] sm:$0xff]
        %v1886 = vld [vmem:[%s1880 + $0x28] sm:$0xff]
        %v1887 = vld [vmem:[%s1880 + $0x30] sm:$0xff]
        %v1888 = vld [vmem:[%s1880 + $0x38] sm:$0xff]
        %v1889 = vld [vmem:[%s1880 + $0x40] sm:$0xff]
        %v1890 = vld [vmem:[%s1880 + $0x48] sm:$0xff]
        %v1891 = vld [vmem:[%s1880 + $0x50] sm:$0xff]
        %v1892 = vld [vmem:[%s1880 + $0x58] sm:$0xff]
        %v1893 = vld [vmem:[%s1880 + $0x60] sm:$0xff]
        %v1894 = vld [vmem:[%s1880 + $0x68] sm:$0xff]
        %v1895 = vld [vmem:[%s1880 + $0x70] sm:$0xff]
        %v1896 = vld [vmem:[%s1880 + $0x78] sm:$0xff]
        %v1897 = vld [vmem:[%s1880 + $0x80] sm:$0xff]
        %v1898 = vld [vmem:[%s1880 + $0x88] sm:$0xff]
        %v1899 = vld [vmem:[%s1880 + $0x90] sm:$0xff]
        %v1900 = vld [vmem:[%s1880 + $0x98] sm:$0xff]
        %v1901 = vld [vmem:[%s1880 + $0xa0] sm:$0xff]
        %v1902 = vld [vmem:[%s1880 + $0xa8] sm:$0xff]
        %v1903 = vld [vmem:[%s1880 + $0xb0] sm:$0xff]
        %v1904 = vld [vmem:[%s1880 + $0xb8] sm:$0xff]
        %v1905 = vld [vmem:[%s1880 + $0xc0] sm:$0xff]
        %v1906 = vld [vmem:[%s1880 + $0xc8] sm:$0xff]
        %v1907 = vld [vmem:[%s1880 + $0xd0] sm:$0xff]
        %v1908 = vld [vmem:[%s1880 + $0xd8] sm:$0xff]
        %v1909 = vld [vmem:[%s1880 + $0xe0] sm:$0xff]
        %v1910 = vld [vmem:[%s1880 + $0xe8] sm:$0xff]
        %v1911 = vld [vmem:[%s1880 + $0xf0] sm:$0xff]
        %v1912 = vld [vmem:[%s1880 + $0xf8] sm:$0xff]
        %1913 = vmatprep.subr.mxu0 %v1849
        %1914 = vmatpush1.msra.mxu0 %v1848
        %1915 = vmatprep.subr.mxu0 %v1851
        %1916 = vmatpush1.msra.mxu0 %v1850
        %1917 = vmatprep.subr.mxu0 %v1853
        %1918 = vmatpush1.msra.mxu0 %v1852
        %1919 = vmatprep.subr.mxu0 %v1855
        %1920 = vmatpush1.msra.mxu0 %v1854
        %1921 = vmatprep.subr.mxu0 %v1857
        %1922 = vmatpush1.msra.mxu0 %v1856
        %1923 = vmatprep.subr.mxu0 %v1859
        %1924 = vmatpush1.msra.mxu0 %v1858
        %1925 = vmatprep.subr.mxu0 %v1861
        %1926 = vmatpush1.msra.mxu0 %v1860
        %1927 = vmatprep.subr.mxu0 %v1863
        %1928 = vmatpush1.msra.mxu0 %v1862
        %1929 = vmatprep.subr.mxu0 %v1865
        %1930 = vmatpush1.msra.mxu0 %v1864
        %1931 = vmatprep.subr.mxu0 %v1867
        %1932 = vmatpush1.msra.mxu0 %v1866
        %1933 = vmatprep.subr.mxu0 %v1869
        %1934 = vmatpush1.msra.mxu0 %v1868
        %1935 = vmatprep.subr.mxu0 %v1871
        %1936 = vmatpush1.msra.mxu0 %v1870
        %1937 = vmatprep.subr.mxu0 %v1873
        %1938 = vmatpush1.msra.mxu0 %v1872
        %1939 = vmatprep.subr.mxu0 %v1875
        %1940 = vmatpush1.msra.mxu0 %v1874
        %1941 = vmatprep.subr.mxu0 %v1877
        %1942 = vmatpush1.msra.mxu0 %v1876
        %1943 = vmatprep.subr.mxu0 %v1879
        %1944 = vmatpush1.msra.mxu0 %v1878
        %1945 = vmatprep.subr.mxu0 0.0
        %1946 = vmatpush1.msra.mxu0 0.0
        %1947 = vmatprep.subr.mxu0 0.0
        %1948 = vmatpush1.msra.mxu0 0.0
        %1949 = vmatprep.subr.mxu0 0.0
        %1950 = vmatpush1.msra.mxu0 0.0
        %1951 = vmatprep.subr.mxu0 0.0
        %1952 = vmatpush1.msra.mxu0 0.0
        %1953 = vmatprep.subr.mxu0 0.0
        %1954 = vmatpush1.msra.mxu0 0.0
        %1955 = vmatprep.subr.mxu0 0.0
        %1956 = vmatpush1.msra.mxu0 0.0
        %1957 = vmatprep.subr.mxu0 0.0
        %1958 = vmatpush1.msra.mxu0 0.0
        %1959 = vmatprep.subr.mxu0 0.0
        %1960 = vmatpush1.msra.mxu0 0.0
        %1961 = vmatprep.subr.mxu0 0.0
        %1962 = vmatpush1.msra.mxu0 0.0
        %1963 = vmatprep.subr.mxu0 0.0
        %1964 = vmatpush1.msra.mxu0 0.0
        %1965 = vmatprep.subr.mxu0 0.0
        %1966 = vmatpush1.msra.mxu0 0.0
        %1967 = vmatprep.subr.mxu0 0.0
        %1968 = vmatpush1.msra.mxu0 0.0
        %1969 = vmatprep.subr.mxu0 0.0
        %1970 = vmatpush1.msra.mxu0 0.0
        %1971 = vmatprep.subr.mxu0 0.0
        %1972 = vmatpush1.msra.mxu0 0.0
        %1973 = vmatprep.subr.mxu0 0.0
        %1974 = vmatpush1.msra.mxu0 0.0
        %1975 = vmatprep.subr.mxu0 0.0
        %1976 = vmatpush1.msra.mxu0 0.0
        %1977 = vmatprep.mubr.f32.mxu0 0.0
        %1978 = vmatmul.mubr.f32.gmra.mrb[0].mxu0 %v1395
        %v1979 = vpop.f32.mrb[0].mxu0
        %v1980 = vadd.f32 0.0, %v1979
        %v1981 = vpop.f32.mrb[0].mxu0
        %v1982 = vadd.f32 0.0, %v1981
        %1983 = vmatprep.mubr.f32.mxu0 0.0
        %1984 = vmatmul.mubr.f32.gmra.mrb[0].mxu0 %v1396
        %v1985 = vpop.f32.mrb[0].mxu0
        %v1986 = vadd.f32 0.0, %v1985
        %v1987 = vpop.f32.mrb[0].mxu0
        %v1988 = vadd.f32 0.0, %v1987
        %1989 = vmatprep.mubr.f32.mxu0 0.0
        %1990 = vmatmul.mubr.f32.gmra.mrb[0].mxu0 %v1397
        %v1991 = vpop.f32.mrb[0].mxu0
        %v1992 = vadd.f32 0.0, %v1991
        %v1993 = vpop.f32.mrb[0].mxu0
        %v1994 = vadd.f32 0.0, %v1993
        %1995 = vmatprep.mubr.f32.mxu0 0.0
        %1996 = vmatmul.mubr.f32.gmra.mrb[0].mxu0 %v1398
        %v1997 = vpop.f32.mrb[0].mxu0
        %v1998 = vadd.f32 0.0, %v1997
        %v1999 = vpop.f32.mrb[0].mxu0
        %v2000 = vadd.f32 0.0, %v1999
        %2001 = vmatprep.mubr.f32.mxu0 0.0
        %2002 = vmatmul.mubr.f32.gmra.mrb[0].mxu0 %v1399
        %v2003 = vpop.f32.mrb[0].mxu0
        %v2004 = vadd.f32 0.0, %v2003
        %v2005 = vpop.f32.mrb[0].mxu0
        %v2006 = vadd.f32 0.0, %v2005
        %2007 = vmatprep.mubr.f32.mxu0 0.0
        %2008 = vmatmul.mubr.f32.gmra.mrb[0].mxu0 %v1400
        %v2009 = vpop.f32.mrb[0].mxu0
        %v2010 = vadd.f32 0.0, %v2009
        %v2011 = vpop.f32.mrb[0].mxu0
        %v2012 = vadd.f32 0.0, %v2011
        %2013 = vmatprep.mubr.f32.mxu0 0.0
        %2014 = vmatmul.mubr.f32.gmra.mrb[0].mxu0 %v1401
        %v2015 = vpop.f32.mrb[0].mxu0
        %v2016 = vadd.f32 0.0, %v2015
        %v2017 = vpop.f32.mrb[0].mxu0
        %v2018 = vadd.f32 0.0, %v2017
        %2019 = vmatprep.mubr.f32.mxu0 0.0
        %2020 = vmatmul.mubr.f32.gmra.mrb[0].mxu0 %v1402
        %v2021 = vpop.f32.mrb[0].mxu0
        %v2022 = vadd.f32 0.0, %v2021
        %v2023 = vpop.f32.mrb[0].mxu0
        %v2024 = vadd.f32 0.0, %v2023
        %2025 = vmatprep.mubr.f32.mxu0 0.0
        %2026 = vmatmul.mubr.f32.gmra.mrb[0].mxu0 %v1403
        %v2027 = vpop.f32.mrb[0].mxu0
        %v2028 = vadd.f32 0.0, %v2027
        %v2029 = vpop.f32.mrb[0].mxu0
        %v2030 = vadd.f32 0.0, %v2029
        %2031 = vmatprep.mubr.f32.mxu0 0.0
        %2032 = vmatmul.mubr.f32.gmra.mrb[0].mxu0 %v1404
        %v2033 = vpop.f32.mrb[0].mxu0
        %v2034 = vadd.f32 0.0, %v2033
        %v2035 = vpop.f32.mrb[0].mxu0
        %v2036 = vadd.f32 0.0, %v2035
        %2037 = vmatprep.mubr.f32.mxu0 0.0
        %2038 = vmatmul.mubr.f32.gmra.mrb[0].mxu0 %v1405
        %v2039 = vpop.f32.mrb[0].mxu0
        %v2040 = vadd.f32 0.0, %v2039
        %v2041 = vpop.f32.mrb[0].mxu0
        %v2042 = vadd.f32 0.0, %v2041
        %2043 = vmatprep.mubr.f32.mxu0 0.0
        %2044 = vmatmul.mubr.f32.gmra.mrb[0].mxu0 %v1406
        %v2045 = vpop.f32.mrb[0].mxu0
        %v2046 = vadd.f32 0.0, %v2045
        %v2047 = vpop.f32.mrb[0].mxu0
        %v2048 = vadd.f32 0.0, %v2047
        %2049 = vmatprep.mubr.f32.mxu0 0.0
        %2050 = vmatmul.mubr.f32.gmra.mrb[0].mxu0 %v1407
        %v2051 = vpop.f32.mrb[0].mxu0
        %v2052 = vadd.f32 0.0, %v2051
        %v2053 = vpop.f32.mrb[0].mxu0
        %v2054 = vadd.f32 0.0, %v2053
        %2055 = vmatprep.mubr.f32.mxu0 0.0
        %2056 = vmatmul.mubr.f32.gmra.mrb[0].mxu0 %v1408
        %v2057 = vpop.f32.mrb[0].mxu0
        %v2058 = vadd.f32 0.0, %v2057
        %v2059 = vpop.f32.mrb[0].mxu0
        %v2060 = vadd.f32 0.0, %v2059
        %2061 = vmatprep.mubr.f32.mxu0 0.0
        %2062 = vmatmul.mubr.f32.gmra.mrb[0].mxu0 %v1409
        %v2063 = vpop.f32.mrb[0].mxu0
        %v2064 = vadd.f32 0.0, %v2063
        %v2065 = vpop.f32.mrb[0].mxu0
        %v2066 = vadd.f32 0.0, %v2065
        %2067 = vmatprep.mubr.f32.mxu0 0.0
        %2068 = vmatmul.mubr.f32.gmra.mrb[0].mxu0 %v1410
        %v2069 = vpop.f32.mrb[0].mxu0
        %v2070 = vadd.f32 0.0, %v2069
        %v2071 = vpop.f32.mrb[0].mxu0
        %v2072 = vadd.f32 0.0, %v2071
        %2073 = vdwg.mxu0
        %2074 = vmatprep.subr.mxu0 %v1816
        %2075 = vmatpush1.msra.mxu0 %v1815
        %2076 = vmatprep.subr.mxu0 %v1818
        %2077 = vmatpush1.msra.mxu0 %v1817
        %2078 = vmatprep.subr.mxu0 %v1820
        %2079 = vmatpush1.msra.mxu0 %v1819
        %2080 = vmatprep.subr.mxu0 %v1822
        %2081 = vmatpush1.msra.mxu0 %v1821
        %2082 = vmatprep.subr.mxu0 %v1824
        %2083 = vmatpush1.msra.mxu0 %v1823
        %2084 = vmatprep.subr.mxu0 %v1826
        %2085 = vmatpush1.msra.mxu0 %v1825
        %2086 = vmatprep.subr.mxu0 %v1828
        %2087 = vmatpush1.msra.mxu0 %v1827
        %2088 = vmatprep.subr.mxu0 %v1830
        %2089 = vmatpush1.msra.mxu0 %v1829
        %2090 = vmatprep.subr.mxu0 %v1832
        %2091 = vmatpush1.msra.mxu0 %v1831
        %2092 = vmatprep.subr.mxu0 %v1834
        %2093 = vmatpush1.msra.mxu0 %v1833
        %2094 = vmatprep.subr.mxu0 %v1836
        %2095 = vmatpush1.msra.mxu0 %v1835
        %2096 = vmatprep.subr.mxu0 %v1838
        %2097 = vmatpush1.msra.mxu0 %v1837
        %2098 = vmatprep.subr.mxu0 %v1840
        %2099 = vmatpush1.msra.mxu0 %v1839
        %2100 = vmatprep.subr.mxu0 %v1842
        %2101 = vmatpush1.msra.mxu0 %v1841
        %2102 = vmatprep.subr.mxu0 %v1844
        %2103 = vmatpush1.msra.mxu0 %v1843
        %2104 = vmatprep.subr.mxu0 %v1846
        %2105 = vmatpush1.msra.mxu0 %v1845
        %2106 = vmatprep.subr.mxu0 0.0
        %2107 = vmatpush1.msra.mxu0 0.0
        %2108 = vmatprep.subr.mxu0 0.0
        %2109 = vmatpush1.msra.mxu0 0.0
        %2110 = vmatprep.subr.mxu0 0.0
        %2111 = vmatpush1.msra.mxu0 0.0
        %2112 = vmatprep.subr.mxu0 0.0
        %2113 = vmatpush1.msra.mxu0 0.0
        %2114 = vmatprep.subr.mxu0 0.0
        %2115 = vmatpush1.msra.mxu0 0.0
        %2116 = vmatprep.subr.mxu0 0.0
        %2117 = vmatpush1.msra.mxu0 0.0
        %2118 = vmatprep.subr.mxu0 0.0
        %2119 = vmatpush1.msra.mxu0 0.0
        %2120 = vmatprep.subr.mxu0 0.0
        %2121 = vmatpush1.msra.mxu0 0.0
        %2122 = vmatprep.subr.mxu0 0.0
        %2123 = vmatpush1.msra.mxu0 0.0
        %2124 = vmatprep.subr.mxu0 0.0
        %2125 = vmatpush1.msra.mxu0 0.0
        %2126 = vmatprep.subr.mxu0 0.0
        %2127 = vmatpush1.msra.mxu0 0.0
        %2128 = vmatprep.subr.mxu0 0.0
        %2129 = vmatpush1.msra.mxu0 0.0
        %2130 = vmatprep.subr.mxu0 0.0
        %2131 = vmatpush1.msra.mxu0 0.0
        %2132 = vmatprep.subr.mxu0 0.0
        %2133 = vmatpush1.msra.mxu0 0.0
        %2134 = vmatprep.subr.mxu0 0.0
        %2135 = vmatpush1.msra.mxu0 0.0
        %2136 = vmatprep.subr.mxu0 0.0
        %2137 = vmatpush1.msra.mxu0 0.0
        %2138 = vmatprep.mubr.f32.mxu0 0.0
        %2139 = vmatmul.mubr.f32.gmra.mrb[0].mxu0 %v1702
        %v2140 = vpop.f32.mrb[0].mxu0
        %v2141 = vadd.f32 %v1980, %v2140
        %v2142 = vpop.f32.mrb[0].mxu0
        %v2143 = vadd.f32 %v1982, %v2142
        %2144 = vmatprep.mubr.f32.mxu0 0.0
        %2145 = vmatmul.mubr.f32.gmra.mrb[0].mxu0 %v1703
        %v2146 = vpop.f32.mrb[0].mxu0
        %v2147 = vadd.f32 %v1986, %v2146
        %v2148 = vpop.f32.mrb[0].mxu0
        %v2149 = vadd.f32 %v1988, %v2148
        %2150 = vmatprep.mubr.f32.mxu0 0.0
        %2151 = vmatmul.mubr.f32.gmra.mrb[0].mxu0 %v1704
        %v2152 = vpop.f32.mrb[0].mxu0
        %v2153 = vadd.f32 %v1992, %v2152
        %v2154 = vpop.f32.mrb[0].mxu0
        %v2155 = vadd.f32 %v1994, %v2154
        %2156 = vmatprep.mubr.f32.mxu0 0.0
        %2157 = vmatmul.mubr.f32.gmra.mrb[0].mxu0 %v1705
        %v2158 = vpop.f32.mrb[0].mxu0
        %v2159 = vadd.f32 %v1998, %v2158
        %v2160 = vpop.f32.mrb[0].mxu0
        %v2161 = vadd.f32 %v2000, %v2160
        %2162 = vmatprep.mubr.f32.mxu0 0.0
        %2163 = vmatmul.mubr.f32.gmra.mrb[0].mxu0 %v1706
        %v2164 = vpop.f32.mrb[0].mxu0
        %v2165 = vadd.f32 %v2004, %v2164
        %v2166 = vpop.f32.mrb[0].mxu0
        %v2167 = vadd.f32 %v2006, %v2166
        %2168 = vmatprep.mubr.f32.mxu0 0.0
        %2169 = vmatmul.mubr.f32.gmra.mrb[0].mxu0 %v1707
        %v2170 = vpop.f32.mrb[0].mxu0
        %v2171 = vadd.f32 %v2010, %v2170
        %v2172 = vpop.f32.mrb[0].mxu0
        %v2173 = vadd.f32 %v2012, %v2172
        %2174 = vmatprep.mubr.f32.mxu0 0.0
        %2175 = vmatmul.mubr.f32.gmra.mrb[0].mxu0 %v1708
        %v2176 = vpop.f32.mrb[0].mxu0
        %v2177 = vadd.f32 %v2016, %v2176
        %v2178 = vpop.f32.mrb[0].mxu0
        %v2179 = vadd.f32 %v2018, %v2178
        %2180 = vmatprep.mubr.f32.mxu0 0.0
        %2181 = vmatmul.mubr.f32.gmra.mrb[0].mxu0 %v1709
        %v2182 = vpop.f32.mrb[0].mxu0
        %v2183 = vadd.f32 %v2022, %v2182
        %v2184 = vpop.f32.mrb[0].mxu0
        %v2185 = vadd.f32 %v2024, %v2184
        %2186 = vmatprep.mubr.f32.mxu0 0.0
        %2187 = vmatmul.mubr.f32.gmra.mrb[0].mxu0 %v1710
        %v2188 = vpop.f32.mrb[0].mxu0
        %v2189 = vadd.f32 %v2028, %v2188
        %v2190 = vpop.f32.mrb[0].mxu0
        %v2191 = vadd.f32 %v2030, %v2190
        %2192 = vmatprep.mubr.f32.mxu0 0.0
        %2193 = vmatmul.mubr.f32.gmra.mrb[0].mxu0 %v1711
        %v2194 = vpop.f32.mrb[0].mxu0
        %v2195 = vadd.f32 %v2034, %v2194
        %v2196 = vpop.f32.mrb[0].mxu0
        %v2197 = vadd.f32 %v2036, %v2196
        %2198 = vmatprep.mubr.f32.mxu0 0.0
        %2199 = vmatmul.mubr.f32.gmra.mrb[0].mxu0 %v1712
        %v2200 = vpop.f32.mrb[0].mxu0
        %v2201 = vadd.f32 %v2040, %v2200
        %v2202 = vpop.f32.mrb[0].mxu0
        %v2203 = vadd.f32 %v2042, %v2202
        %2204 = vmatprep.mubr.f32.mxu0 0.0
        %2205 = vmatmul.mubr.f32.gmra.mrb[0].mxu0 %v1713
        %v2206 = vpop.f32.mrb[0].mxu0
        %v2207 = vadd.f32 %v2046, %v2206
        %v2208 = vpop.f32.mrb[0].mxu0
        %v2209 = vadd.f32 %v2048, %v2208
        %2210 = vmatprep.mubr.f32.mxu0 0.0
        %2211 = vmatmul.mubr.f32.gmra.mrb[0].mxu0 %v1714
        %v2212 = vpop.f32.mrb[0].mxu0
        %v2213 = vadd.f32 %v2052, %v2212
        %v2214 = vpop.f32.mrb[0].mxu0
        %v2215 = vadd.f32 %v2054, %v2214
        %2216 = vmatprep.mubr.f32.mxu0 0.0
        %2217 = vmatmul.mubr.f32.gmra.mrb[0].mxu0 %v1715
        %v2218 = vpop.f32.mrb[0].mxu0
        %v2219 = vadd.f32 %v2058, %v2218
        %v2220 = vpop.f32.mrb[0].mxu0
        %v2221 = vadd.f32 %v2060, %v2220
        %2222 = vmatprep.mubr.f32.mxu0 0.0
        %2223 = vmatmul.mubr.f32.gmra.mrb[0].mxu0 %v1716
        %v2224 = vpop.f32.mrb[0].mxu0
        %v2225 = vadd.f32 %v2064, %v2224
        %v2226 = vpop.f32.mrb[0].mxu0
        %v2227 = vadd.f32 %v2066, %v2226
        %2228 = vmatprep.mubr.f32.mxu0 0.0
        %2229 = vmatmul.mubr.f32.gmra.mrb[0].mxu0 %v1717
        %v2230 = vpop.f32.mrb[0].mxu0
        %v2231 = vadd.f32 %v2070, %v2230
        %v2232 = vpop.f32.mrb[0].mxu0
        %v2233 = vadd.f32 %v2072, %v2232
        %2234 = vdwg.mxu0
        %2235 = vmatprep.subr.mxu0 %v1882
        %2236 = vmatpush1.msra.mxu0 %v1881
        %2237 = vmatprep.subr.mxu0 %v1884
        %2238 = vmatpush1.msra.mxu0 %v1883
        %2239 = vmatprep.subr.mxu0 %v1886
        %2240 = vmatpush1.msra.mxu0 %v1885
        %2241 = vmatprep.subr.mxu0 %v1888
        %2242 = vmatpush1.msra.mxu0 %v1887
        %2243 = vmatprep.subr.mxu0 %v1890
        %2244 = vmatpush1.msra.mxu0 %v1889
        %2245 = vmatprep.subr.mxu0 %v1892
        %2246 = vmatpush1.msra.mxu0 %v1891
        %2247 = vmatprep.subr.mxu0 %v1894
        %2248 = vmatpush1.msra.mxu0 %v1893
        %2249 = vmatprep.subr.mxu0 %v1896
        %2250 = vmatpush1.msra.mxu0 %v1895
        %2251 = vmatprep.subr.mxu0 %v1898
        %2252 = vmatpush1.msra.mxu0 %v1897
        %2253 = vmatprep.subr.mxu0 %v1900
        %2254 = vmatpush1.msra.mxu0 %v1899
        %2255 = vmatprep.subr.mxu0 %v1902
        %2256 = vmatpush1.msra.mxu0 %v1901
        %2257 = vmatprep.subr.mxu0 %v1904
        %2258 = vmatpush1.msra.mxu0 %v1903
        %2259 = vmatprep.subr.mxu0 %v1906
        %2260 = vmatpush1.msra.mxu0 %v1905
        %2261 = vmatprep.subr.mxu0 %v1908
        %2262 = vmatpush1.msra.mxu0 %v1907
        %2263 = vmatprep.subr.mxu0 %v1910
        %2264 = vmatpush1.msra.mxu0 %v1909
        %2265 = vmatprep.subr.mxu0 %v1912
        %2266 = vmatpush1.msra.mxu0 %v1911
        %2267 = vmatprep.subr.mxu0 0.0
        %2268 = vmatpush1.msra.mxu0 0.0
        %2269 = vmatprep.subr.mxu0 0.0
        %2270 = vmatpush1.msra.mxu0 0.0
        %2271 = vmatprep.subr.mxu0 0.0
        %2272 = vmatpush1.msra.mxu0 0.0
        %2273 = vmatprep.subr.mxu0 0.0
        %2274 = vmatpush1.msra.mxu0 0.0
        %2275 = vmatprep.subr.mxu0 0.0
        %2276 = vmatpush1.msra.mxu0 0.0
        %2277 = vmatprep.subr.mxu0 0.0
        %2278 = vmatpush1.msra.mxu0 0.0
        %2279 = vmatprep.subr.mxu0 0.0
        %2280 = vmatpush1.msra.mxu0 0.0
        %2281 = vmatprep.subr.mxu0 0.0
        %2282 = vmatpush1.msra.mxu0 0.0
        %2283 = vmatprep.subr.mxu0 0.0
        %2284 = vmatpush1.msra.mxu0 0.0
        %2285 = vmatprep.subr.mxu0 0.0
        %2286 = vmatpush1.msra.mxu0 0.0
        %2287 = vmatprep.subr.mxu0 0.0
        %2288 = vmatpush1.msra.mxu0 0.0
        %2289 = vmatprep.subr.mxu0 0.0
        %2290 = vmatpush1.msra.mxu0 0.0
        %2291 = vmatprep.subr.mxu0 0.0
        %2292 = vmatpush1.msra.mxu0 0.0
        %2293 = vmatprep.subr.mxu0 0.0
        %2294 = vmatpush1.msra.mxu0 0.0
        %2295 = vmatprep.subr.mxu0 0.0
        %2296 = vmatpush1.msra.mxu0 0.0
        %2297 = vmatprep.subr.mxu0 0.0
        %2298 = vmatpush1.msra.mxu0 0.0
        %2299 = vmatprep.mubr.f32.mxu0 0.0
        %2300 = vmatmul.mubr.f32.gmra.mrb[0].mxu0 %v1799
        %v2301 = vpop.f32.mrb[0].mxu0
        %v2302 = vadd.f32 0.0, %v2301
        %v2303 = vpop.f32.mrb[0].mxu0
        %v2304 = vadd.f32 0.0, %v2303
        %2305 = vmatprep.mubr.f32.mxu0 0.0
        %2306 = vmatmul.mubr.f32.gmra.mrb[0].mxu0 %v1800
        %v2307 = vpop.f32.mrb[0].mxu0
        %v2308 = vadd.f32 0.0, %v2307
        %v2309 = vpop.f32.mrb[0].mxu0
        %v2310 = vadd.f32 0.0, %v2309
        %2311 = vmatprep.mubr.f32.mxu0 0.0
        %2312 = vmatmul.mubr.f32.gmra.mrb[0].mxu0 %v1801
        %v2313 = vpop.f32.mrb[0].mxu0
        %v2314 = vadd.f32 0.0, %v2313
        %v2315 = vpop.f32.mrb[0].mxu0
        %v2316 = vadd.f32 0.0, %v2315
        %2317 = vmatprep.mubr.f32.mxu0 0.0
        %2318 = vmatmul.mubr.f32.gmra.mrb[0].mxu0 %v1802
        %v2319 = vpop.f32.mrb[0].mxu0
        %v2320 = vadd.f32 0.0, %v2319
        %v2321 = vpop.f32.mrb[0].mxu0
        %v2322 = vadd.f32 0.0, %v2321
        %2323 = vmatprep.mubr.f32.mxu0 0.0
        %2324 = vmatmul.mubr.f32.gmra.mrb[0].mxu0 %v1803
        %v2325 = vpop.f32.mrb[0].mxu0
        %v2326 = vadd.f32 0.0, %v2325
        %v2327 = vpop.f32.mrb[0].mxu0
        %v2328 = vadd.f32 0.0, %v2327
        %2329 = vmatprep.mubr.f32.mxu0 0.0
        %2330 = vmatmul.mubr.f32.gmra.mrb[0].mxu0 %v1804
        %v2331 = vpop.f32.mrb[0].mxu0
        %v2332 = vadd.f32 0.0, %v2331
        %v2333 = vpop.f32.mrb[0].mxu0
        %v2334 = vadd.f32 0.0, %v2333
        %2335 = vmatprep.mubr.f32.mxu0 0.0
        %2336 = vmatmul.mubr.f32.gmra.mrb[0].mxu0 %v1805
        %v2337 = vpop.f32.mrb[0].mxu0
        %v2338 = vadd.f32 0.0, %v2337
        %v2339 = vpop.f32.mrb[0].mxu0
        %v2340 = vadd.f32 0.0, %v2339
        %2341 = vmatprep.mubr.f32.mxu0 0.0
        %2342 = vmatmul.mubr.f32.gmra.mrb[0].mxu0 %v1806
        %v2343 = vpop.f32.mrb[0].mxu0
        %v2344 = vadd.f32 0.0, %v2343
        %v2345 = vpop.f32.mrb[0].mxu0
        %v2346 = vadd.f32 0.0, %v2345
        %2347 = vmatprep.mubr.f32.mxu0 0.0
        %2348 = vmatmul.mubr.f32.gmra.mrb[0].mxu0 %v1807
        %v2349 = vpop.f32.mrb[0].mxu0
        %v2350 = vadd.f32 0.0, %v2349
        %v2351 = vpop.f32.mrb[0].mxu0
        %v2352 = vadd.f32 0.0, %v2351
        %2353 = vmatprep.mubr.f32.mxu0 0.0
        %2354 = vmatmul.mubr.f32.gmra.mrb[0].mxu0 %v1808
        %v2355 = vpop.f32.mrb[0].mxu0
        %v2356 = vadd.f32 0.0, %v2355
        %v2357 = vpop.f32.mrb[0].mxu0
        %v2358 = vadd.f32 0.0, %v2357
        %2359 = vmatprep.mubr.f32.mxu0 0.0
        %2360 = vmatmul.mubr.f32.gmra.mrb[0].mxu0 %v1809
        %v2361 = vpop.f32.mrb[0].mxu0
        %v2362 = vadd.f32 0.0, %v2361
        %v2363 = vpop.f32.mrb[0].mxu0
        %v2364 = vadd.f32 0.0, %v2363
        %2365 = vmatprep.mubr.f32.mxu0 0.0
        %2366 = vmatmul.mubr.f32.gmra.mrb[0].mxu0 %v1810
        %v2367 = vpop.f32.mrb[0].mxu0
        %v2368 = vadd.f32 0.0, %v2367
        %v2369 = vpop.f32.mrb[0].mxu0
        %v2370 = vadd.f32 0.0, %v2369
        %2371 = vmatprep.mubr.f32.mxu0 0.0
        %2372 = vmatmul.mubr.f32.gmra.mrb[0].mxu0 %v1811
        %v2373 = vpop.f32.mrb[0].mxu0
        %v2374 = vadd.f32 0.0, %v2373
        %v2375 = vpop.f32.mrb[0].mxu0
        %v2376 = vadd.f32 0.0, %v2375
        %2377 = vmatprep.mubr.f32.mxu0 0.0
        %2378 = vmatmul.mubr.f32.gmra.mrb[0].mxu0 %v1812
        %v2379 = vpop.f32.mrb[0].mxu0
        %v2380 = vadd.f32 0.0, %v2379
        %v2381 = vpop.f32.mrb[0].mxu0
        %v2382 = vadd.f32 0.0, %v2381
        %2383 = vmatprep.mubr.f32.mxu0 0.0
        %2384 = vmatmul.mubr.f32.gmra.mrb[0].mxu0 %v1813
        %v2385 = vpop.f32.mrb[0].mxu0
        %v2386 = vadd.f32 0.0, %v2385
        %v2387 = vpop.f32.mrb[0].mxu0
        %v2388 = vadd.f32 0.0, %v2387
        %2389 = vmatprep.mubr.f32.mxu0 0.0
        %2390 = vmatmul.mubr.f32.gmra.mrb[0].mxu0 %v1814
        %v2391 = vpop.f32.mrb[0].mxu0
        %v2392 = vadd.f32 0.0, %v2391
        %v2393 = vpop.f32.mrb[0].mxu0
        %v2394 = vadd.f32 0.0, %v2393
        %2395 = vdwg.mxu0
        %v2396 = vadd.f32 %v2141, %v2302
        %v2397 = vadd.f32 %v2143, %v2304
        %v2398 = vadd.f32 %v2147, %v2308
        %v2399 = vadd.f32 %v2149, %v2310
        %v2400 = vadd.f32 %v2153, %v2314
        %v2401 = vadd.f32 %v2155, %v2316
        %v2402 = vadd.f32 %v2159, %v2320
        %v2403 = vadd.f32 %v2161, %v2322
        %v2404 = vadd.f32 %v2165, %v2326
        %v2405 = vadd.f32 %v2167, %v2328
        %v2406 = vadd.f32 %v2171, %v2332
        %v2407 = vadd.f32 %v2173, %v2334
        %v2408 = vadd.f32 %v2177, %v2338
        %v2409 = vadd.f32 %v2179, %v2340
        %v2410 = vadd.f32 %v2183, %v2344
        %v2411 = vadd.f32 %v2185, %v2346
        %v2412 = vadd.f32 %v2189, %v2350
        %v2413 = vadd.f32 %v2191, %v2352
        %v2414 = vadd.f32 %v2195, %v2356
        %v2415 = vadd.f32 %v2197, %v2358
        %v2416 = vadd.f32 %v2201, %v2362
        %v2417 = vadd.f32 %v2203, %v2364
        %v2418 = vadd.f32 %v2207, %v2368
        %v2419 = vadd.f32 %v2209, %v2370
        %v2420 = vadd.f32 %v2213, %v2374
        %v2421 = vadd.f32 %v2215, %v2376
        %v2422 = vadd.f32 %v2219, %v2380
        %v2423 = vadd.f32 %v2221, %v2382
        %v2424 = vadd.f32 %v2225, %v2386
        %v2425 = vadd.f32 %v2227, %v2388
        %v2426 = vadd.f32 %v2231, %v2392
        %v2427 = vadd.f32 %v2233, %v2394
        %v2429 = vlaneseq
        %v2430 = vshrl.u32 %v2429, 7
        %v2431 = vsub.s32 0, %v2430
        %v2432 = vrot.slane %v1411, %v2431
        %v2433 = vlaneseq
        %v2434 = vshrl.u32 %v2433, 7
        %v2435 = vsub.s32 1, %v2434
        %v2436 = vrot.slane %v1411, %v2435
        %v2439 = vadd.f32 %v2396, %v2432
        %v2440 = vadd.f32 %v2397, %v2436
        %v2441 = vadd.f32 %v2398, %v2432
        %v2442 = vadd.f32 %v2399, %v2436
        %v2443 = vadd.f32 %v2400, %v2432
        %v2444 = vadd.f32 %v2401, %v2436
        %v2445 = vadd.f32 %v2402, %v2432
        %v2446 = vadd.f32 %v2403, %v2436
        %v2447 = vadd.f32 %v2404, %v2432
        %v2448 = vadd.f32 %v2405, %v2436
        %v2449 = vadd.f32 %v2406, %v2432
        %v2450 = vadd.f32 %v2407, %v2436
        %v2451 = vadd.f32 %v2408, %v2432
        %v2452 = vadd.f32 %v2409, %v2436
        %v2453 = vadd.f32 %v2410, %v2432
        %v2454 = vadd.f32 %v2411, %v2436
        %v2455 = vadd.f32 %v2412, %v2432
        %v2456 = vadd.f32 %v2413, %v2436
        %v2457 = vadd.f32 %v2414, %v2432
        %v2458 = vadd.f32 %v2415, %v2436
        %v2459 = vadd.f32 %v2416, %v2432
        %v2460 = vadd.f32 %v2417, %v2436
        %v2461 = vadd.f32 %v2418, %v2432
        %v2462 = vadd.f32 %v2419, %v2436
        %v2463 = vadd.f32 %v2420, %v2432
        %v2464 = vadd.f32 %v2421, %v2436
        %v2465 = vadd.f32 %v2422, %v2432
        %v2466 = vadd.f32 %v2423, %v2436
        %v2467 = vadd.f32 %v2424, %v2432
        %v2468 = vadd.f32 %v2425, %v2436
        %v2469 = vadd.f32 %v2426, %v2432
        %v2470 = vadd.f32 %v2427, %v2436
        %v2471 = vld [vmem:[%s9] sm:$0xff]
        %v2472 = vld [vmem:[%s9 + $0x8] sm:$0xff]
        %v2473 = vld [vmem:[%s9 + $0x10] sm:$0xff]
        %v2474 = vld [vmem:[%s9 + $0x18] sm:$0xff]
        %v2475 = vld [vmem:[%s9 + $0x20] sm:$0xff]
        %v2476 = vld [vmem:[%s9 + $0x28] sm:$0xff]
        %v2477 = vld [vmem:[%s9 + $0x30] sm:$0xff]
        %v2478 = vld [vmem:[%s9 + $0x38] sm:$0xff]
        %v2479 = vld [vmem:[%s9 + $0x40] sm:$0xff]
        %v2480 = vld [vmem:[%s9 + $0x48] sm:$0xff]
        %v2481 = vld [vmem:[%s9 + $0x50] sm:$0xff]
        %v2482 = vld [vmem:[%s9 + $0x58] sm:$0xff]
        %v2483 = vld [vmem:[%s9 + $0x60] sm:$0xff]
        %v2484 = vld [vmem:[%s9 + $0x68] sm:$0xff]
        %v2485 = vld [vmem:[%s9 + $0x70] sm:$0xff]
        %v2486 = vld [vmem:[%s9 + $0x78] sm:$0xff]
        %v2487 = vld [vmem:[%s9 + $0x80] sm:$0xff]
        %v2488 = vld [vmem:[%s9 + $0x88] sm:$0xff]
        %v2489 = vld [vmem:[%s9 + $0x90] sm:$0xff]
        %v2490 = vld [vmem:[%s9 + $0x98] sm:$0xff]
        %v2491 = vld [vmem:[%s9 + $0xa0] sm:$0xff]
        %v2492 = vld [vmem:[%s9 + $0xa8] sm:$0xff]
        %v2493 = vld [vmem:[%s9 + $0xb0] sm:$0xff]
        %v2494 = vld [vmem:[%s9 + $0xb8] sm:$0xff]
        %v2495 = vld [vmem:[%s9 + $0xc0] sm:$0xff]
        %v2496 = vld [vmem:[%s9 + $0xc8] sm:$0xff]
        %v2497 = vld [vmem:[%s9 + $0xd0] sm:$0xff]
        %v2498 = vld [vmem:[%s9 + $0xd8] sm:$0xff]
        %v2499 = vld [vmem:[%s9 + $0xe0] sm:$0xff]
        %v2500 = vld [vmem:[%s9 + $0xe8] sm:$0xff]
        %v2501 = vld [vmem:[%s9 + $0xf0] sm:$0xff]
        %v2502 = vld [vmem:[%s9 + $0xf8] sm:$0xff]
        %v2503 = vld [vmem:[%s10] sm:$0xff]
        %v2504 = vld [vmem:[%s7] sm:$0x3]
        %v2505 = vld [vmem:[%s8] sm:$0x3]
        %v2506 = vadd.f32 %v2439, %v2441
        %v2507 = vrot.slane %v2506, 4
        %v2508 = vadd.f32 %v2506, %v2507
        %v2509 = vrot.slane %v2508, 2
        %v2510 = vadd.f32 %v2508, %v2509
        %v2511 = vrot.slane %v2510, 1
        %v2512 = vadd.f32 %v2510, %v2511
        %v2513 = vadd.f32 %v2440, %v2442
        %v2514 = vrot.slane %v2513, 4
        %v2515 = vadd.f32 %v2513, %v2514
        %v2516 = vrot.slane %v2515, 2
        %v2517 = vadd.f32 %v2515, %v2516
        %v2518 = vrot.slane %v2517, 1
        %v2519 = vadd.f32 %v2517, %v2518
        %v2520 = vadd.f32 %v2443, %v2445
        %v2521 = vrot.slane %v2520, 4
        %v2522 = vadd.f32 %v2520, %v2521
        %v2523 = vrot.slane %v2522, 2
        %v2524 = vadd.f32 %v2522, %v2523
        %v2525 = vrot.slane %v2524, 1
        %v2526 = vadd.f32 %v2524, %v2525
        %v2527 = vadd.f32 %v2444, %v2446
        %v2528 = vrot.slane %v2527, 4
        %v2529 = vadd.f32 %v2527, %v2528
        %v2530 = vrot.slane %v2529, 2
        %v2531 = vadd.f32 %v2529, %v2530
        %v2532 = vrot.slane %v2531, 1
        %v2533 = vadd.f32 %v2531, %v2532
        %v2534 = vadd.f32 %v2447, %v2449
        %v2535 = vrot.slane %v2534, 4
        %v2536 = vadd.f32 %v2534, %v2535
        %v2537 = vrot.slane %v2536, 2
        %v2538 = vadd.f32 %v2536, %v2537
        %v2539 = vrot.slane %v2538, 1
        %v2540 = vadd.f32 %v2538, %v2539
        %v2541 = vadd.f32 %v2448, %v2450
        %v2542 = vrot.slane %v2541, 4
        %v2543 = vadd.f32 %v2541, %v2542
        %v2544 = vrot.slane %v2543, 2
        %v2545 = vadd.f32 %v2543, %v2544
        %v2546 = vrot.slane %v2545, 1
        %v2547 = vadd.f32 %v2545, %v2546
        %v2548 = vadd.f32 %v2451, %v2453
        %v2549 = vrot.slane %v2548, 4
        %v2550 = vadd.f32 %v2548, %v2549
        %v2551 = vrot.slane %v2550, 2
        %v2552 = vadd.f32 %v2550, %v2551
        %v2553 = vrot.slane %v2552, 1
        %v2554 = vadd.f32 %v2552, %v2553
        %v2555 = vadd.f32 %v2452, %v2454
        %v2556 = vrot.slane %v2555, 4
        %v2557 = vadd.f32 %v2555, %v2556
        %v2558 = vrot.slane %v2557, 2
        %v2559 = vadd.f32 %v2557, %v2558
        %v2560 = vrot.slane %v2559, 1
        %v2561 = vadd.f32 %v2559, %v2560
        %v2562 = vadd.f32 %v2455, %v2457
        %v2563 = vrot.slane %v2562, 4
        %v2564 = vadd.f32 %v2562, %v2563
        %v2565 = vrot.slane %v2564, 2
        %v2566 = vadd.f32 %v2564, %v2565
        %v2567 = vrot.slane %v2566, 1
        %v2568 = vadd.f32 %v2566, %v2567
        %v2569 = vadd.f32 %v2456, %v2458
        %v2570 = vrot.slane %v2569, 4
        %v2571 = vadd.f32 %v2569, %v2570
        %v2572 = vrot.slane %v2571, 2
        %v2573 = vadd.f32 %v2571, %v2572
        %v2574 = vrot.slane %v2573, 1
        %v2575 = vadd.f32 %v2573, %v2574
        %v2576 = vadd.f32 %v2459, %v2461
        %v2577 = vrot.slane %v2576, 4
        %v2578 = vadd.f32 %v2576, %v2577
        %v2579 = vrot.slane %v2578, 2
        %v2580 = vadd.f32 %v2578, %v2579
        %v2581 = vrot.slane %v2580, 1
        %v2582 = vadd.f32 %v2580, %v2581
        %v2583 = vadd.f32 %v2460, %v2462
        %v2584 = vrot.slane %v2583, 4
        %v2585 = vadd.f32 %v2583, %v2584
        %v2586 = vrot.slane %v2585, 2
        %v2587 = vadd.f32 %v2585, %v2586
        %v2588 = vrot.slane %v2587, 1
        %v2589 = vadd.f32 %v2587, %v2588
        %v2590 = vadd.f32 %v2463, %v2465
        %v2591 = vrot.slane %v2590, 4
        %v2592 = vadd.f32 %v2590, %v2591
        %v2593 = vrot.slane %v2592, 2
        %v2594 = vadd.f32 %v2592, %v2593
        %v2595 = vrot.slane %v2594, 1
        %v2596 = vadd.f32 %v2594, %v2595
        %v2597 = vadd.f32 %v2464, %v2466
        %v2598 = vrot.slane %v2597, 4
        %v2599 = vadd.f32 %v2597, %v2598
        %v2600 = vrot.slane %v2599, 2
        %v2601 = vadd.f32 %v2599, %v2600
        %v2602 = vrot.slane %v2601, 1
        %v2603 = vadd.f32 %v2601, %v2602
        %v2604 = vadd.f32 %v2467, %v2469
        %v2605 = vrot.slane %v2604, 4
        %v2606 = vadd.f32 %v2604, %v2605
        %v2607 = vrot.slane %v2606, 2
        %v2608 = vadd.f32 %v2606, %v2607
        %v2609 = vrot.slane %v2608, 1
        %v2610 = vadd.f32 %v2608, %v2609
        %v2611 = vadd.f32 %v2468, %v2470
        %v2612 = vrot.slane %v2611, 4
        %v2613 = vadd.f32 %v2611, %v2612
        %v2614 = vrot.slane %v2613, 2
        %v2615 = vadd.f32 %v2613, %v2614
        %v2616 = vrot.slane %v2615, 1
        %v2617 = vadd.f32 %v2615, %v2616
        %v2618 = vmul.f32 %v2439, %v2439
        %v2619 = vmul.f32 %v2440, %v2440
        %v2620 = vmul.f32 %v2441, %v2441
        %v2621 = vmul.f32 %v2442, %v2442
        %v2622 = vmul.f32 %v2443, %v2443
        %v2623 = vmul.f32 %v2444, %v2444
        %v2624 = vmul.f32 %v2445, %v2445
        %v2625 = vmul.f32 %v2446, %v2446
        %v2626 = vmul.f32 %v2447, %v2447
        %v2627 = vmul.f32 %v2448, %v2448
        %v2628 = vmul.f32 %v2449, %v2449
        %v2629 = vmul.f32 %v2450, %v2450
        %v2630 = vmul.f32 %v2451, %v2451
        %v2631 = vmul.f32 %v2452, %v2452
        %v2632 = vmul.f32 %v2453, %v2453
        %v2633 = vmul.f32 %v2454, %v2454
        %v2634 = vmul.f32 %v2455, %v2455
        %v2635 = vmul.f32 %v2456, %v2456
        %v2636 = vmul.f32 %v2457, %v2457
        %v2637 = vmul.f32 %v2458, %v2458
        %v2638 = vmul.f32 %v2459, %v2459
        %v2639 = vmul.f32 %v2460, %v2460
        %v2640 = vmul.f32 %v2461, %v2461
        %v2641 = vmul.f32 %v2462, %v2462
        %v2642 = vmul.f32 %v2463, %v2463
        %v2643 = vmul.f32 %v2464, %v2464
        %v2644 = vmul.f32 %v2465, %v2465
        %v2645 = vmul.f32 %v2466, %v2466
        %v2646 = vmul.f32 %v2467, %v2467
        %v2647 = vmul.f32 %v2468, %v2468
        %v2648 = vmul.f32 %v2469, %v2469
        %v2649 = vmul.f32 %v2470, %v2470
        %v2650 = vadd.f32 %v2618, %v2620
        %v2651 = vrot.slane %v2650, 4
        %v2652 = vadd.f32 %v2650, %v2651
        %v2653 = vrot.slane %v2652, 2
        %v2654 = vadd.f32 %v2652, %v2653
        %v2655 = vrot.slane %v2654, 1
        %v2656 = vadd.f32 %v2654, %v2655
        %v2657 = vadd.f32 %v2619, %v2621
        %v2658 = vrot.slane %v2657, 4
        %v2659 = vadd.f32 %v2657, %v2658
        %v2660 = vrot.slane %v2659, 2
        %v2661 = vadd.f32 %v2659, %v2660
        %v2662 = vrot.slane %v2661, 1
        %v2663 = vadd.f32 %v2661, %v2662
        %v2664 = vadd.f32 %v2622, %v2624
        %v2665 = vrot.slane %v2664, 4
        %v2666 = vadd.f32 %v2664, %v2665
        %v2667 = vrot.slane %v2666, 2
        %v2668 = vadd.f32 %v2666, %v2667
        %v2669 = vrot.slane %v2668, 1
        %v2670 = vadd.f32 %v2668, %v2669
        %v2671 = vadd.f32 %v2623, %v2625
        %v2672 = vrot.slane %v2671, 4
        %v2673 = vadd.f32 %v2671, %v2672
        %v2674 = vrot.slane %v2673, 2
        %v2675 = vadd.f32 %v2673, %v2674
        %v2676 = vrot.slane %v2675, 1
        %v2677 = vadd.f32 %v2675, %v2676
        %v2678 = vadd.f32 %v2626, %v2628
        %v2679 = vrot.slane %v2678, 4
        %v2680 = vadd.f32 %v2678, %v2679
        %v2681 = vrot.slane %v2680, 2
        %v2682 = vadd.f32 %v2680, %v2681
        %v2683 = vrot.slane %v2682, 1
        %v2684 = vadd.f32 %v2682, %v2683
        %v2685 = vadd.f32 %v2627, %v2629
        %v2686 = vrot.slane %v2685, 4
        %v2687 = vadd.f32 %v2685, %v2686
        %v2688 = vrot.slane %v2687, 2
        %v2689 = vadd.f32 %v2687, %v2688
        %v2690 = vrot.slane %v2689, 1
        %v2691 = vadd.f32 %v2689, %v2690
        %v2692 = vadd.f32 %v2630, %v2632
        %v2693 = vrot.slane %v2692, 4
        %v2694 = vadd.f32 %v2692, %v2693
        %v2695 = vrot.slane %v2694, 2
        %v2696 = vadd.f32 %v2694, %v2695
        %v2697 = vrot.slane %v2696, 1
        %v2698 = vadd.f32 %v2696, %v2697
        %v2699 = vadd.f32 %v2631, %v2633
        %v2700 = vrot.slane %v2699, 4
        %v2701 = vadd.f32 %v2699, %v2700
        %v2702 = vrot.slane %v2701, 2
        %v2703 = vadd.f32 %v2701, %v2702
        %v2704 = vrot.slane %v2703, 1
        %v2705 = vadd.f32 %v2703, %v2704
        %v2706 = vadd.f32 %v2634, %v2636
        %v2707 = vrot.slane %v2706, 4
        %v2708 = vadd.f32 %v2706, %v2707
        %v2709 = vrot.slane %v2708, 2
        %v2710 = vadd.f32 %v2708, %v2709
        %v2711 = vrot.slane %v2710, 1
        %v2712 = vadd.f32 %v2710, %v2711
        %v2713 = vadd.f32 %v2635, %v2637
        %v2714 = vrot.slane %v2713, 4
        %v2715 = vadd.f32 %v2713, %v2714
        %v2716 = vrot.slane %v2715, 2
        %v2717 = vadd.f32 %v2715, %v2716
        %v2718 = vrot.slane %v2717, 1
        %v2719 = vadd.f32 %v2717, %v2718
        %v2720 = vadd.f32 %v2638, %v2640
        %v2721 = vrot.slane %v2720, 4
        %v2722 = vadd.f32 %v2720, %v2721
        %v2723 = vrot.slane %v2722, 2
        %v2724 = vadd.f32 %v2722, %v2723
        %v2725 = vrot.slane %v2724, 1
        %v2726 = vadd.f32 %v2724, %v2725
        %v2727 = vadd.f32 %v2639, %v2641
        %v2728 = vrot.slane %v2727, 4
        %v2729 = vadd.f32 %v2727, %v2728
        %v2730 = vrot.slane %v2729, 2
        %v2731 = vadd.f32 %v2729, %v2730
        %v2732 = vrot.slane %v2731, 1
        %v2733 = vadd.f32 %v2731, %v2732
        %v2734 = vadd.f32 %v2642, %v2644
        %v2735 = vrot.slane %v2734, 4
        %v2736 = vadd.f32 %v2734, %v2735
        %v2737 = vrot.slane %v2736, 2
        %v2738 = vadd.f32 %v2736, %v2737
        %v2739 = vrot.slane %v2738, 1
        %v2740 = vadd.f32 %v2738, %v2739
        %v2741 = vadd.f32 %v2643, %v2645
        %v2742 = vrot.slane %v2741, 4
        %v2743 = vadd.f32 %v2741, %v2742
        %v2744 = vrot.slane %v2743, 2
        %v2745 = vadd.f32 %v2743, %v2744
        %v2746 = vrot.slane %v2745, 1
        %v2747 = vadd.f32 %v2745, %v2746
        %v2748 = vadd.f32 %v2646, %v2648
        %v2749 = vrot.slane %v2748, 4
        %v2750 = vadd.f32 %v2748, %v2749
        %v2751 = vrot.slane %v2750, 2
        %v2752 = vadd.f32 %v2750, %v2751
        %v2753 = vrot.slane %v2752, 1
        %v2754 = vadd.f32 %v2752, %v2753
        %v2755 = vadd.f32 %v2647, %v2649
        %v2756 = vrot.slane %v2755, 4
        %v2757 = vadd.f32 %v2755, %v2756
        %v2758 = vrot.slane %v2757, 2
        %v2759 = vadd.f32 %v2757, %v2758
        %v2760 = vrot.slane %v2759, 1
        %v2761 = vadd.f32 %v2759, %v2760
        %v2778 = vsel %vm714, %v2526, %v2512
        %v2779 = vsel %vm716, %v2540, %v2778
        %v2780 = vsel %vm718, %v2554, %v2779
        %v2781 = vsel %vm720, %v2568, %v2780
        %v2782 = vsel %vm722, %v2582, %v2781
        %v2783 = vsel %vm724, %v2596, %v2782
        %v2784 = vsel %vm726, %v2610, %v2783
        %v2785 = vsel %vm714, %v2533, %v2519
        %v2786 = vsel %vm716, %v2547, %v2785
        %v2787 = vsel %vm718, %v2561, %v2786
        %v2788 = vsel %vm720, %v2575, %v2787
        %v2789 = vsel %vm722, %v2589, %v2788
        %v2790 = vsel %vm724, %v2603, %v2789
        %v2791 = vsel %vm726, %v2617, %v2790
        %2794 = vmatprep.subr.mxu0 0.0
        %2795 = vmatpush1.msra.mxu0 %v2471
        %2796 = vmatprep.subr.mxu0 0.0
        %2797 = vmatpush1.msra.mxu0 %v2472
        %2798 = vmatprep.subr.mxu0 0.0
        %2799 = vmatpush1.msra.mxu0 %v2473
        %2800 = vmatprep.subr.mxu0 0.0
        %2801 = vmatpush1.msra.mxu0 %v2474
        %2802 = vmatprep.subr.mxu0 0.0
        %2803 = vmatpush1.msra.mxu0 %v2475
        %2804 = vmatprep.subr.mxu0 0.0
        %2805 = vmatpush1.msra.mxu0 %v2476
        %2806 = vmatprep.subr.mxu0 0.0
        %2807 = vmatpush1.msra.mxu0 %v2477
        %2808 = vmatprep.subr.mxu0 0.0
        %2809 = vmatpush1.msra.mxu0 %v2478
        %2810 = vmatprep.subr.mxu0 0.0
        %2811 = vmatpush1.msra.mxu0 %v2479
        %2812 = vmatprep.subr.mxu0 0.0
        %2813 = vmatpush1.msra.mxu0 %v2480
        %2814 = vmatprep.subr.mxu0 0.0
        %2815 = vmatpush1.msra.mxu0 %v2481
        %2816 = vmatprep.subr.mxu0 0.0
        %2817 = vmatpush1.msra.mxu0 %v2482
        %2818 = vmatprep.subr.mxu0 0.0
        %2819 = vmatpush1.msra.mxu0 %v2483
        %2820 = vmatprep.subr.mxu0 0.0
        %2821 = vmatpush1.msra.mxu0 %v2484
        %2822 = vmatprep.subr.mxu0 0.0
        %2823 = vmatpush1.msra.mxu0 %v2485
        %2824 = vmatprep.subr.mxu0 0.0
        %2825 = vmatpush1.msra.mxu0 %v2486
        %2826 = vmatprep.subr.mxu0 0.0
        %2827 = vmatpush1.msra.mxu0 %v2487
        %2828 = vmatprep.subr.mxu0 0.0
        %2829 = vmatpush1.msra.mxu0 %v2488
        %2830 = vmatprep.subr.mxu0 0.0
        %2831 = vmatpush1.msra.mxu0 %v2489
        %2832 = vmatprep.subr.mxu0 0.0
        %2833 = vmatpush1.msra.mxu0 %v2490
        %2834 = vmatprep.subr.mxu0 0.0
        %2835 = vmatpush1.msra.mxu0 %v2491
        %2836 = vmatprep.subr.mxu0 0.0
        %2837 = vmatpush1.msra.mxu0 %v2492
        %2838 = vmatprep.subr.mxu0 0.0
        %2839 = vmatpush1.msra.mxu0 %v2493
        %2840 = vmatprep.subr.mxu0 0.0
        %2841 = vmatpush1.msra.mxu0 %v2494
        %2842 = vmatprep.subr.mxu0 0.0
        %2843 = vmatpush1.msra.mxu0 %v2495
        %2844 = vmatprep.subr.mxu0 0.0
        %2845 = vmatpush1.msra.mxu0 %v2496
        %2846 = vmatprep.subr.mxu0 0.0
        %2847 = vmatpush1.msra.mxu0 %v2497
        %2848 = vmatprep.subr.mxu0 0.0
        %2849 = vmatpush1.msra.mxu0 %v2498
        %2850 = vmatprep.subr.mxu0 0.0
        %2851 = vmatpush1.msra.mxu0 %v2499
        %2852 = vmatprep.subr.mxu0 0.0
        %2853 = vmatpush1.msra.mxu0 %v2500
        %2854 = vmatprep.subr.mxu0 0.0
        %2855 = vmatpush1.msra.mxu0 %v2501
        %2856 = vmatprep.subr.mxu0 0.0
        %2857 = vmatpush1.msra.mxu0 %v2502
        %2858 = vmatprep.mubr.f32.mxu0 %v2791
        %2859 = vmatmul.mubr.f32.gmra.mrb[0].mxu0 %v2784
        %v2860 = vpop.f32.mrb[0].mxu0
        %v2861 = vadd.f32 0.0, %v2860
        %v2862 = vpop.f32.mrb[0].mxu0
        %2863 = vdwg.mxu0
        %v2880 = vsel %vm714, %v2670, %v2656
        %v2881 = vsel %vm716, %v2684, %v2880
        %v2882 = vsel %vm718, %v2698, %v2881
        %v2883 = vsel %vm720, %v2712, %v2882
        %v2884 = vsel %vm722, %v2726, %v2883
        %v2885 = vsel %vm724, %v2740, %v2884
        %v2886 = vsel %vm726, %v2754, %v2885
        %v2887 = vsel %vm714, %v2677, %v2663
        %v2888 = vsel %vm716, %v2691, %v2887
        %v2889 = vsel %vm718, %v2705, %v2888
        %v2890 = vsel %vm720, %v2719, %v2889
        %v2891 = vsel %vm722, %v2733, %v2890
        %v2892 = vsel %vm724, %v2747, %v2891
        %v2893 = vsel %vm726, %v2761, %v2892
        %2896 = vmatprep.subr.mxu0 0.0
        %2897 = vmatpush1.msra.mxu0 %v2471
        %2898 = vmatprep.subr.mxu0 0.0
        %2899 = vmatpush1.msra.mxu0 %v2472
        %2900 = vmatprep.subr.mxu0 0.0
        %2901 = vmatpush1.msra.mxu0 %v2473
        %2902 = vmatprep.subr.mxu0 0.0
        %2903 = vmatpush1.msra.mxu0 %v2474
        %2904 = vmatprep.subr.mxu0 0.0
        %2905 = vmatpush1.msra.mxu0 %v2475
        %2906 = vmatprep.subr.mxu0 0.0
        %2907 = vmatpush1.msra.mxu0 %v2476
        %2908 = vmatprep.subr.mxu0 0.0
        %2909 = vmatpush1.msra.mxu0 %v2477
        %2910 = vmatprep.subr.mxu0 0.0
        %2911 = vmatpush1.msra.mxu0 %v2478
        %2912 = vmatprep.subr.mxu0 0.0
        %2913 = vmatpush1.msra.mxu0 %v2479
        %2914 = vmatprep.subr.mxu0 0.0
        %2915 = vmatpush1.msra.mxu0 %v2480
        %2916 = vmatprep.subr.mxu0 0.0
        %2917 = vmatpush1.msra.mxu0 %v2481
        %2918 = vmatprep.subr.mxu0 0.0
        %2919 = vmatpush1.msra.mxu0 %v2482
        %2920 = vmatprep.subr.mxu0 0.0
        %2921 = vmatpush1.msra.mxu0 %v2483
        %2922 = vmatprep.subr.mxu0 0.0
        %2923 = vmatpush1.msra.mxu0 %v2484
        %2924 = vmatprep.subr.mxu0 0.0
        %2925 = vmatpush1.msra.mxu0 %v2485
        %2926 = vmatprep.subr.mxu0 0.0
        %2927 = vmatpush1.msra.mxu0 %v2486
        %2928 = vmatprep.subr.mxu0 0.0
        %2929 = vmatpush1.msra.mxu0 %v2487
        %2930 = vmatprep.subr.mxu0 0.0
        %2931 = vmatpush1.msra.mxu0 %v2488
        %2932 = vmatprep.subr.mxu0 0.0
        %2933 = vmatpush1.msra.mxu0 %v2489
        %2934 = vmatprep.subr.mxu0 0.0
        %2935 = vmatpush1.msra.mxu0 %v2490
        %2936 = vmatprep.subr.mxu0 0.0
        %2937 = vmatpush1.msra.mxu0 %v2491
        %2938 = vmatprep.subr.mxu0 0.0
        %2939 = vmatpush1.msra.mxu0 %v2492
        %2940 = vmatprep.subr.mxu0 0.0
        %2941 = vmatpush1.msra.mxu0 %v2493
        %2942 = vmatprep.subr.mxu0 0.0
        %2943 = vmatpush1.msra.mxu0 %v2494
        %2944 = vmatprep.subr.mxu0 0.0
        %2945 = vmatpush1.msra.mxu0 %v2495
        %2946 = vmatprep.subr.mxu0 0.0
        %2947 = vmatpush1.msra.mxu0 %v2496
        %2948 = vmatprep.subr.mxu0 0.0
        %2949 = vmatpush1.msra.mxu0 %v2497
        %2950 = vmatprep.subr.mxu0 0.0
        %2951 = vmatpush1.msra.mxu0 %v2498
        %2952 = vmatprep.subr.mxu0 0.0
        %2953 = vmatpush1.msra.mxu0 %v2499
        %2954 = vmatprep.subr.mxu0 0.0
        %2955 = vmatpush1.msra.mxu0 %v2500
        %2956 = vmatprep.subr.mxu0 0.0
        %2957 = vmatpush1.msra.mxu0 %v2501
        %2958 = vmatprep.subr.mxu0 0.0
        %2959 = vmatpush1.msra.mxu0 %v2502
        %2960 = vmatprep.mubr.f32.mxu0 %v2893
        %2961 = vmatmul.mubr.f32.gmra.mrb[0].mxu0 %v2886
        %v2962 = vpop.f32.mrb[0].mxu0
        %v2963 = vadd.f32 0.0, %v2962
        %v2964 = vpop.f32.mrb[0].mxu0
        %2965 = vdwg.mxu0
        %v2966 = vmul.f32 %v2861, 0.0009765625
        %v2967 = vmul.f32 %v2963, 0.0009765625
        %v2968 = vmul.f32 %v2966, %v2966
        %v2969 = vsub.f32 %v2967, %v2968
        %v2970 = vmax.f32 %v2969, 0.0
        %v2971 = vadd.f32 %v2970, 1e-05
        %v2972 = vrsqrt.pop %v2971
        %v2974 = vcombine.high %v2503, %v2503
        %v2976 = vsel %vm892, %v2966, 0
        %v2978 = vsel %vm896, %v2503, 0
        %v2980 = vsel %vm896, %v2974, 0
        %2982 = vmatprep.subr.mxu0 %v2980
        %2983 = vmatpush1.msra.mxu0 %v2978
        %2984 = vmatprep.subr.mxu0 0.0
        %2985 = vmatpush1.msra.mxu0 0.0
        %2986 = vmatprep.subr.mxu0 0.0
        %2987 = vmatpush1.msra.mxu0 0.0
        %2988 = vmatprep.subr.mxu0 0.0
        %2989 = vmatpush1.msra.mxu0 0.0
        %2990 = vmatprep.subr.mxu0 0.0
        %2991 = vmatpush1.msra.mxu0 0.0
        %2992 = vmatprep.subr.mxu0 0.0
        %2993 = vmatpush1.msra.mxu0 0.0
        %2994 = vmatprep.subr.mxu0 0.0
        %2995 = vmatpush1.msra.mxu0 0.0
        %2996 = vmatprep.subr.mxu0 0.0
        %2997 = vmatpush1.msra.mxu0 0.0
        %2998 = vmatprep.subr.mxu0 0.0
        %2999 = vmatpush1.msra.mxu0 0.0
        %3000 = vmatprep.subr.mxu0 0.0
        %3001 = vmatpush1.msra.mxu0 0.0
        %3002 = vmatprep.subr.mxu0 0.0
        %3003 = vmatpush1.msra.mxu0 0.0
        %3004 = vmatprep.subr.mxu0 0.0
        %3005 = vmatpush1.msra.mxu0 0.0
        %3006 = vmatprep.subr.mxu0 0.0
        %3007 = vmatpush1.msra.mxu0 0.0
        %3008 = vmatprep.subr.mxu0 0.0
        %3009 = vmatpush1.msra.mxu0 0.0
        %3010 = vmatprep.subr.mxu0 0.0
        %3011 = vmatpush1.msra.mxu0 0.0
        %3012 = vmatprep.subr.mxu0 0.0
        %3013 = vmatpush1.msra.mxu0 0.0
        %3014 = vmatprep.subr.mxu0 0.0
        %3015 = vmatpush1.msra.mxu0 0.0
        %3016 = vmatprep.subr.mxu0 0.0
        %3017 = vmatpush1.msra.mxu0 0.0
        %3018 = vmatprep.subr.mxu0 0.0
        %3019 = vmatpush1.msra.mxu0 0.0
        %3020 = vmatprep.subr.mxu0 0.0
        %3021 = vmatpush1.msra.mxu0 0.0
        %3022 = vmatprep.subr.mxu0 0.0
        %3023 = vmatpush1.msra.mxu0 0.0
        %3024 = vmatprep.subr.mxu0 0.0
        %3025 = vmatpush1.msra.mxu0 0.0
        %3026 = vmatprep.subr.mxu0 0.0
        %3027 = vmatpush1.msra.mxu0 0.0
        %3028 = vmatprep.subr.mxu0 0.0
        %3029 = vmatpush1.msra.mxu0 0.0
        %3030 = vmatprep.subr.mxu0 0.0
        %3031 = vmatpush1.msra.mxu0 0.0
        %3032 = vmatprep.subr.mxu0 0.0
        %3033 = vmatpush1.msra.mxu0 0.0
        %3034 = vmatprep.subr.mxu0 0.0
        %3035 = vmatpush1.msra.mxu0 0.0
        %3036 = vmatprep.subr.mxu0 0.0
        %3037 = vmatpush1.msra.mxu0 0.0
        %3038 = vmatprep.subr.mxu0 0.0
        %3039 = vmatpush1.msra.mxu0 0.0
        %3040 = vmatprep.subr.mxu0 0.0
        %3041 = vmatpush1.msra.mxu0 0.0
        %3042 = vmatprep.subr.mxu0 0.0
        %3043 = vmatpush1.msra.mxu0 0.0
        %3044 = vmatprep.subr.mxu0 0.0
        %3045 = vmatpush1.msra.mxu0 0.0
        %3046 = vmatprep.mubr.f32.mxu0 0.0
        %3047 = vmatmul.mubr.f32.gmra.mrb[0].mxu0 %v2976
        %v3048 = vpop.f32.mrb[0].mxu0
        %v3049 = vadd.f32 0.0, %v3048
        %v3050 = vpop.f32.mrb[0].mxu0
        %v3051 = vadd.f32 0.0, %v3050
        %3052 = vdwg.mxu0
        %v3054 = vsel %vm892, %v2972, 0
        %3056 = vmatprep.subr.mxu0 %v2980
        %3057 = vmatpush1.msra.mxu0 %v2978
        %3058 = vmatprep.subr.mxu0 0.0
        %3059 = vmatpush1.msra.mxu0 0.0
        %3060 = vmatprep.subr.mxu0 0.0
        %3061 = vmatpush1.msra.mxu0 0.0
        %3062 = vmatprep.subr.mxu0 0.0
        %3063 = vmatpush1.msra.mxu0 0.0
        %3064 = vmatprep.subr.mxu0 0.0
        %3065 = vmatpush1.msra.mxu0 0.0
        %3066 = vmatprep.subr.mxu0 0.0
        %3067 = vmatpush1.msra.mxu0 0.0
        %3068 = vmatprep.subr.mxu0 0.0
        %3069 = vmatpush1.msra.mxu0 0.0
        %3070 = vmatprep.subr.mxu0 0.0
        %3071 = vmatpush1.msra.mxu0 0.0
        %3072 = vmatprep.subr.mxu0 0.0
        %3073 = vmatpush1.msra.mxu0 0.0
        %3074 = vmatprep.subr.mxu0 0.0
        %3075 = vmatpush1.msra.mxu0 0.0
        %3076 = vmatprep.subr.mxu0 0.0
        %3077 = vmatpush1.msra.mxu0 0.0
        %3078 = vmatprep.subr.mxu0 0.0
        %3079 = vmatpush1.msra.mxu0 0.0
        %3080 = vmatprep.subr.mxu0 0.0
        %3081 = vmatpush1.msra.mxu0 0.0
        %3082 = vmatprep.subr.mxu0 0.0
        %3083 = vmatpush1.msra.mxu0 0.0
        %3084 = vmatprep.subr.mxu0 0.0
        %3085 = vmatpush1.msra.mxu0 0.0
        %3086 = vmatprep.subr.mxu0 0.0
        %3087 = vmatpush1.msra.mxu0 0.0
        %3088 = vmatprep.subr.mxu0 0.0
        %3089 = vmatpush1.msra.mxu0 0.0
        %3090 = vmatprep.subr.mxu0 0.0
        %3091 = vmatpush1.msra.mxu0 0.0
        %3092 = vmatprep.subr.mxu0 0.0
        %3093 = vmatpush1.msra.mxu0 0.0
        %3094 = vmatprep.subr.mxu0 0.0
        %3095 = vmatpush1.msra.mxu0 0.0
        %3096 = vmatprep.subr.mxu0 0.0
        %3097 = vmatpush1.msra.mxu0 0.0
        %3098 = vmatprep.subr.mxu0 0.0
        %3099 = vmatpush1.msra.mxu0 0.0
        %3100 = vmatprep.subr.mxu0 0.0
        %3101 = vmatpush1.msra.mxu0 0.0
        %3102 = vmatprep.subr.mxu0 0.0
        %3103 = vmatpush1.msra.mxu0 0.0
        %3104 = vmatprep.subr.mxu0 0.0
        %3105 = vmatpush1.msra.mxu0 0.0
        %3106 = vmatprep.subr.mxu0 0.0
        %3107 = vmatpush1.msra.mxu0 0.0
        %3108 = vmatprep.subr.mxu0 0.0
        %3109 = vmatpush1.msra.mxu0 0.0
        %3110 = vmatprep.subr.mxu0 0.0
        %3111 = vmatpush1.msra.mxu0 0.0
        %3112 = vmatprep.subr.mxu0 0.0
        %3113 = vmatpush1.msra.mxu0 0.0
        %3114 = vmatprep.subr.mxu0 0.0
        %3115 = vmatpush1.msra.mxu0 0.0
        %3116 = vmatprep.subr.mxu0 0.0
        %3117 = vmatpush1.msra.mxu0 0.0
        %3118 = vmatprep.subr.mxu0 0.0
        %3119 = vmatpush1.msra.mxu0 0.0
        %3120 = vmatprep.mubr.f32.mxu0 0.0
        %3121 = vmatmul.mubr.f32.gmra.mrb[0].mxu0 %v3054
        %v3122 = vpop.f32.mrb[0].mxu0
        %v3123 = vadd.f32 0.0, %v3122
        %v3124 = vpop.f32.mrb[0].mxu0
        %v3125 = vadd.f32 0.0, %v3124
        %3126 = vdwg.mxu0
        %v3129 = vcombine.low %v3049, %v3051
        %v3130 = vcombine.high %v3049, %v3051
        %v3132 = vunpack.c.l.s4 1966171168
        %v3133 = vunpack.c.0.s8 %v3132
        %v3134 = vlaneseq
        %v3135 = vshrl.u32 %v3134, 7
        %v3136 = vsub.s32 %v3133, %v3135
        %v3137 = vrot.slane %v3129, %v3136
        %v3139 = vunpack.c.l.s4 1966171168
        %v3140 = vunpack.c.0.s8 %v3139
        %v3141 = vlaneseq
        %v3142 = vshrl.u32 %v3141, 7
        %v3143 = vsub.s32 %v3140, %v3142
        %v3144 = vrot.slane %v3130, %v3143
        %v3145 = vcombine.high %v3137, %v3137
        %v3146 = vcombine.high %v3144, %v3144
        %v3148 = vunpack.c.l.s4 1966171168
        %v3149 = vunpack.c.0.s8 %v3148
        %v3150 = vlaneseq
        %v3151 = vshrl.u32 %v3150, 7
        %v3152 = vsub.s32 %v3149, %v3151
        %v3153 = vrot.slane %v3137, %v3152
        %v3155 = vunpack.c.l.s4 1966171168
        %v3156 = vunpack.c.0.s8 %v3155
        %v3157 = vlaneseq
        %v3158 = vshrl.u32 %v3157, 7
        %v3159 = vsub.s32 %v3156, %v3158
        %v3160 = vrot.slane %v3144, %v3159
        %v3162 = vunpack.c.l.s4 1966171168
        %v3163 = vunpack.c.0.s8 %v3162
        %v3164 = vlaneseq
        %v3165 = vshrl.u32 %v3164, 7
        %v3166 = vsub.s32 %v3163, %v3165
        %v3167 = vrot.slane %v3145, %v3166
        %v3169 = vunpack.c.l.s4 1966171168
        %v3170 = vunpack.c.0.s8 %v3169
        %v3171 = vlaneseq
        %v3172 = vshrl.u32 %v3171, 7
        %v3173 = vsub.s32 %v3170, %v3172
        %v3174 = vrot.slane %v3146, %v3173
        %v3175 = vcombine.high %v3153, %v3153
        %v3176 = vcombine.high %v3160, %v3160
        %v3177 = vcombine.high %v3167, %v3167
        %v3178 = vcombine.high %v3174, %v3174
        %v3179 = vlaneseq
        %v3180 = vshrl.u32 %v3179, 7
        %v3181 = vsub.s32 0, %v3180
        %v3182 = vrot.slane %v3153, %v3181
        %v3183 = vlaneseq
        %v3184 = vshrl.u32 %v3183, 7
        %v3185 = vsub.s32 1, %v3184
        %v3186 = vrot.slane %v3153, %v3185
        %v3187 = vlaneseq
        %v3188 = vshrl.u32 %v3187, 7
        %v3189 = vsub.s32 0, %v3188
        %v3190 = vrot.slane %v3167, %v3189
        %v3191 = vlaneseq
        %v3192 = vshrl.u32 %v3191, 7
        %v3193 = vsub.s32 1, %v3192
        %v3194 = vrot.slane %v3167, %v3193
        %v3195 = vlaneseq
        %v3196 = vshrl.u32 %v3195, 7
        %v3197 = vsub.s32 0, %v3196
        %v3198 = vrot.slane %v3175, %v3197
        %v3199 = vlaneseq
        %v3200 = vshrl.u32 %v3199, 7
        %v3201 = vsub.s32 1, %v3200
        %v3202 = vrot.slane %v3175, %v3201
        %v3203 = vlaneseq
        %v3204 = vshrl.u32 %v3203, 7
        %v3205 = vsub.s32 0, %v3204
        %v3206 = vrot.slane %v3177, %v3205
        %v3207 = vlaneseq
        %v3208 = vshrl.u32 %v3207, 7
        %v3209 = vsub.s32 1, %v3208
        %v3210 = vrot.slane %v3177, %v3209
        %v3211 = vlaneseq
        %v3212 = vshrl.u32 %v3211, 7
        %v3213 = vsub.s32 0, %v3212
        %v3214 = vrot.slane %v3160, %v3213
        %v3215 = vlaneseq
        %v3216 = vshrl.u32 %v3215, 7
        %v3217 = vsub.s32 1, %v3216
        %v3218 = vrot.slane %v3160, %v3217
        %v3219 = vlaneseq
        %v3220 = vshrl.u32 %v3219, 7
        %v3221 = vsub.s32 0, %v3220
        %v3222 = vrot.slane %v3174, %v3221
        %v3223 = vlaneseq
        %v3224 = vshrl.u32 %v3223, 7
        %v3225 = vsub.s32 1, %v3224
        %v3226 = vrot.slane %v3174, %v3225
        %v3227 = vlaneseq
        %v3228 = vshrl.u32 %v3227, 7
        %v3229 = vsub.s32 0, %v3228
        %v3230 = vrot.slane %v3176, %v3229
        %v3231 = vlaneseq
        %v3232 = vshrl.u32 %v3231, 7
        %v3233 = vsub.s32 1, %v3232
        %v3234 = vrot.slane %v3176, %v3233
        %v3235 = vlaneseq
        %v3236 = vshrl.u32 %v3235, 7
        %v3237 = vsub.s32 0, %v3236
        %v3238 = vrot.slane %v3178, %v3237
        %v3239 = vlaneseq
        %v3240 = vshrl.u32 %v3239, 7
        %v3241 = vsub.s32 1, %v3240
        %v3242 = vrot.slane %v3178, %v3241
        %v3259 = vsub.f32 %v2439, %v3182
        %v3260 = vsub.f32 %v2440, %v3186
        %v3261 = vsub.f32 %v2441, %v3182
        %v3262 = vsub.f32 %v2442, %v3186
        %v3263 = vsub.f32 %v2443, %v3190
        %v3264 = vsub.f32 %v2444, %v3194
        %v3265 = vsub.f32 %v2445, %v3190
        %v3266 = vsub.f32 %v2446, %v3194
        %v3267 = vsub.f32 %v2447, %v3198
        %v3268 = vsub.f32 %v2448, %v3202
        %v3269 = vsub.f32 %v2449, %v3198
        %v3270 = vsub.f32 %v2450, %v3202
        %v3271 = vsub.f32 %v2451, %v3206
        %v3272 = vsub.f32 %v2452, %v3210
        %v3273 = vsub.f32 %v2453, %v3206
        %v3274 = vsub.f32 %v2454, %v3210
        %v3275 = vsub.f32 %v2455, %v3214
        %v3276 = vsub.f32 %v2456, %v3218
        %v3277 = vsub.f32 %v2457, %v3214
        %v3278 = vsub.f32 %v2458, %v3218
        %v3279 = vsub.f32 %v2459, %v3222
        %v3280 = vsub.f32 %v2460, %v3226
        %v3281 = vsub.f32 %v2461, %v3222
        %v3282 = vsub.f32 %v2462, %v3226
        %v3283 = vsub.f32 %v2463, %v3230
        %v3284 = vsub.f32 %v2464, %v3234
        %v3285 = vsub.f32 %v2465, %v3230
        %v3286 = vsub.f32 %v2466, %v3234
        %v3287 = vsub.f32 %v2467, %v3238
        %v3288 = vsub.f32 %v2468, %v3242
        %v3289 = vsub.f32 %v2469, %v3238
        %v3290 = vsub.f32 %v2470, %v3242
        %v3293 = vcombine.low %v3123, %v3125
        %v3294 = vcombine.high %v3123, %v3125
        %v3296 = vunpack.c.l.s4 1966171168
        %v3297 = vunpack.c.0.s8 %v3296
        %v3298 = vlaneseq
        %v3299 = vshrl.u32 %v3298, 7
        %v3300 = vsub.s32 %v3297, %v3299
        %v3301 = vrot.slane %v3293, %v3300
        %v3303 = vunpack.c.l.s4 1966171168
        %v3304 = vunpack.c.0.s8 %v3303
        %v3305 = vlaneseq
        %v3306 = vshrl.u32 %v3305, 7
        %v3307 = vsub.s32 %v3304, %v3306
        %v3308 = vrot.slane %v3294, %v3307
        %v3309 = vcombine.high %v3301, %v3301
        %v3310 = vcombine.high %v3308, %v3308
        %v3312 = vunpack.c.l.s4 1966171168
        %v3313 = vunpack.c.0.s8 %v3312
        %v3314 = vlaneseq
        %v3315 = vshrl.u32 %v3314, 7
        %v3316 = vsub.s32 %v3313, %v3315
        %v3317 = vrot.slane %v3301, %v3316
        %v3319 = vunpack.c.l.s4 1966171168
        %v3320 = vunpack.c.0.s8 %v3319
        %v3321 = vlaneseq
        %v3322 = vshrl.u32 %v3321, 7
        %v3323 = vsub.s32 %v3320, %v3322
        %v3324 = vrot.slane %v3308, %v3323
        %v3326 = vunpack.c.l.s4 1966171168
        %v3327 = vunpack.c.0.s8 %v3326
        %v3328 = vlaneseq
        %v3329 = vshrl.u32 %v3328, 7
        %v3330 = vsub.s32 %v3327, %v3329
        %v3331 = vrot.slane %v3309, %v3330
        %v3333 = vunpack.c.l.s4 1966171168
        %v3334 = vunpack.c.0.s8 %v3333
        %v3335 = vlaneseq
        %v3336 = vshrl.u32 %v3335, 7
        %v3337 = vsub.s32 %v3334, %v3336
        %v3338 = vrot.slane %v3310, %v3337
        %v3339 = vcombine.high %v3317, %v3317
        %v3340 = vcombine.high %v3324, %v3324
        %v3341 = vcombine.high %v3331, %v3331
        %v3342 = vcombine.high %v3338, %v3338
        %v3343 = vlaneseq
        %v3344 = vshrl.u32 %v3343, 7
        %v3345 = vsub.s32 0, %v3344
        %v3346 = vrot.slane %v3317, %v3345
        %v3347 = vlaneseq
        %v3348 = vshrl.u32 %v3347, 7
        %v3349 = vsub.s32 1, %v3348
        %v3350 = vrot.slane %v3317, %v3349
        %v3351 = vlaneseq
        %v3352 = vshrl.u32 %v3351, 7
        %v3353 = vsub.s32 0, %v3352
        %v3354 = vrot.slane %v3331, %v3353
        %v3355 = vlaneseq
        %v3356 = vshrl.u32 %v3355, 7
        %v3357 = vsub.s32 1, %v3356
        %v3358 = vrot.slane %v3331, %v3357
        %v3359 = vlaneseq
        %v3360 = vshrl.u32 %v3359, 7
        %v3361 = vsub.s32 0, %v3360
        %v3362 = vrot.slane %v3339, %v3361
        %v3363 = vlaneseq
        %v3364 = vshrl.u32 %v3363, 7
        %v3365 = vsub.s32 1, %v3364
        %v3366 = vrot.slane %v3339, %v3365
        %v3367 = vlaneseq
        %v3368 = vshrl.u32 %v3367, 7
        %v3369 = vsub.s32 0, %v3368
        %v3370 = vrot.slane %v3341, %v3369
        %v3371 = vlaneseq
        %v3372 = vshrl.u32 %v3371, 7
        %v3373 = vsub.s32 1, %v3372
        %v3374 = vrot.slane %v3341, %v3373
        %v3375 = vlaneseq
        %v3376 = vshrl.u32 %v3375, 7
        %v3377 = vsub.s32 0, %v3376
        %v3378 = vrot.slane %v3324, %v3377
        %v3379 = vlaneseq
        %v3380 = vshrl.u32 %v3379, 7
        %v3381 = vsub.s32 1, %v3380
        %v3382 = vrot.slane %v3324, %v3381
        %v3383 = vlaneseq
        %v3384 = vshrl.u32 %v3383, 7
        %v3385 = vsub.s32 0, %v3384
        %v3386 = vrot.slane %v3338, %v3385
        %v3387 = vlaneseq
        %v3388 = vshrl.u32 %v3387, 7
        %v3389 = vsub.s32 1, %v3388
        %v3390 = vrot.slane %v3338, %v3389
        %v3391 = vlaneseq
        %v3392 = vshrl.u32 %v3391, 7
        %v3393 = vsub.s32 0, %v3392
        %v3394 = vrot.slane %v3340, %v3393
        %v3395 = vlaneseq
        %v3396 = vshrl.u32 %v3395, 7
        %v3397 = vsub.s32 1, %v3396
        %v3398 = vrot.slane %v3340, %v3397
        %v3399 = vlaneseq
        %v3400 = vshrl.u32 %v3399, 7
        %v3401 = vsub.s32 0, %v3400
        %v3402 = vrot.slane %v3342, %v3401
        %v3403 = vlaneseq
        %v3404 = vshrl.u32 %v3403, 7
        %v3405 = vsub.s32 1, %v3404
        %v3406 = vrot.slane %v3342, %v3405
        %v3423 = vmul.f32 %v3259, %v3346
        %v3424 = vmul.f32 %v3260, %v3350
        %v3425 = vmul.f32 %v3261, %v3346
        %v3426 = vmul.f32 %v3262, %v3350
        %v3427 = vmul.f32 %v3263, %v3354
        %v3428 = vmul.f32 %v3264, %v3358
        %v3429 = vmul.f32 %v3265, %v3354
        %v3430 = vmul.f32 %v3266, %v3358
        %v3431 = vmul.f32 %v3267, %v3362
        %v3432 = vmul.f32 %v3268, %v3366
        %v3433 = vmul.f32 %v3269, %v3362
        %v3434 = vmul.f32 %v3270, %v3366
        %v3435 = vmul.f32 %v3271, %v3370
        %v3436 = vmul.f32 %v3272, %v3374
        %v3437 = vmul.f32 %v3273, %v3370
        %v3438 = vmul.f32 %v3274, %v3374
        %v3439 = vmul.f32 %v3275, %v3378
        %v3440 = vmul.f32 %v3276, %v3382
        %v3441 = vmul.f32 %v3277, %v3378
        %v3442 = vmul.f32 %v3278, %v3382
        %v3443 = vmul.f32 %v3279, %v3386
        %v3444 = vmul.f32 %v3280, %v3390
        %v3445 = vmul.f32 %v3281, %v3386
        %v3446 = vmul.f32 %v3282, %v3390
        %v3447 = vmul.f32 %v3283, %v3394
        %v3448 = vmul.f32 %v3284, %v3398
        %v3449 = vmul.f32 %v3285, %v3394
        %v3450 = vmul.f32 %v3286, %v3398
        %v3451 = vmul.f32 %v3287, %v3402
        %v3452 = vmul.f32 %v3288, %v3406
        %v3453 = vmul.f32 %v3289, %v3402
        %v3454 = vmul.f32 %v3290, %v3406
        %v3456 = vlaneseq
        %v3457 = vshrl.u32 %v3456, 7
        %v3458 = vsub.s32 0, %v3457
        %v3459 = vrot.slane %v2504, %v3458
        %v3460 = vlaneseq
        %v3461 = vshrl.u32 %v3460, 7
        %v3462 = vsub.s32 1, %v3461
        %v3463 = vrot.slane %v2504, %v3462
        %v3466 = vmul.f32 %v3423, %v3459
        %v3467 = vmul.f32 %v3424, %v3463
        %v3468 = vmul.f32 %v3425, %v3459
        %v3469 = vmul.f32 %v3426, %v3463
        %v3470 = vmul.f32 %v3427, %v3459
        %v3471 = vmul.f32 %v3428, %v3463
        %v3472 = vmul.f32 %v3429, %v3459
        %v3473 = vmul.f32 %v3430, %v3463
        %v3474 = vmul.f32 %v3431, %v3459
        %v3475 = vmul.f32 %v3432, %v3463
        %v3476 = vmul.f32 %v3433, %v3459
        %v3477 = vmul.f32 %v3434, %v3463
        %v3478 = vmul.f32 %v3435, %v3459
        %v3479 = vmul.f32 %v3436, %v3463
        %v3480 = vmul.f32 %v3437, %v3459
        %v3481 = vmul.f32 %v3438, %v3463
        %v3482 = vmul.f32 %v3439, %v3459
        %v3483 = vmul.f32 %v3440, %v3463
        %v3484 = vmul.f32 %v3441, %v3459
        %v3485 = vmul.f32 %v3442, %v3463
        %v3486 = vmul.f32 %v3443, %v3459
        %v3487 = vmul.f32 %v3444, %v3463
        %v3488 = vmul.f32 %v3445, %v3459
        %v3489 = vmul.f32 %v3446, %v3463
        %v3490 = vmul.f32 %v3447, %v3459
        %v3491 = vmul.f32 %v3448, %v3463
        %v3492 = vmul.f32 %v3449, %v3459
        %v3493 = vmul.f32 %v3450, %v3463
        %v3494 = vmul.f32 %v3451, %v3459
        %v3495 = vmul.f32 %v3452, %v3463
        %v3496 = vmul.f32 %v3453, %v3459
        %v3497 = vmul.f32 %v3454, %v3463
        %v3499 = vlaneseq
        %v3500 = vshrl.u32 %v3499, 7
        %v3501 = vsub.s32 0, %v3500
        %v3502 = vrot.slane %v2505, %v3501
        %v3503 = vlaneseq
        %v3504 = vshrl.u32 %v3503, 7
        %v3505 = vsub.s32 1, %v3504
        %v3506 = vrot.slane %v2505, %v3505
        %v3509 = vadd.f32 %v3466, %v3502
        %v3510 = vadd.f32 %v3467, %v3506
        %v3511 = vadd.f32 %v3468, %v3502
        %v3512 = vadd.f32 %v3469, %v3506
        %v3513 = vadd.f32 %v3470, %v3502
        %v3514 = vadd.f32 %v3471, %v3506
        %v3515 = vadd.f32 %v3472, %v3502
        %v3516 = vadd.f32 %v3473, %v3506
        %v3517 = vadd.f32 %v3474, %v3502
        %v3518 = vadd.f32 %v3475, %v3506
        %v3519 = vadd.f32 %v3476, %v3502
        %v3520 = vadd.f32 %v3477, %v3506
        %v3521 = vadd.f32 %v3478, %v3502
        %v3522 = vadd.f32 %v3479, %v3506
        %v3523 = vadd.f32 %v3480, %v3502
        %v3524 = vadd.f32 %v3481, %v3506
        %v3525 = vadd.f32 %v3482, %v3502
        %v3526 = vadd.f32 %v3483, %v3506
        %v3527 = vadd.f32 %v3484, %v3502
        %v3528 = vadd.f32 %v3485, %v3506
        %v3529 = vadd.f32 %v3486, %v3502
        %v3530 = vadd.f32 %v3487, %v3506
        %v3531 = vadd.f32 %v3488, %v3502
        %v3532 = vadd.f32 %v3489, %v3506
        %v3533 = vadd.f32 %v3490, %v3502
        %v3534 = vadd.f32 %v3491, %v3506
        %v3535 = vadd.f32 %v3492, %v3502
        %v3536 = vadd.f32 %v3493, %v3506
        %v3537 = vadd.f32 %v3494, %v3502
        %v3538 = vadd.f32 %v3495, %v3506
        %v3539 = vadd.f32 %v3496, %v3502
        %v3540 = vadd.f32 %v3497, %v3506
        %v3541 = vxor.u32 %v3509, 2147483648
        %v3542 = vxor.u32 %v3510, 2147483648
        %v3543 = vxor.u32 %v3511, 2147483648
        %v3544 = vxor.u32 %v3512, 2147483648
        %v3545 = vxor.u32 %v3513, 2147483648
        %v3546 = vxor.u32 %v3514, 2147483648
        %v3547 = vxor.u32 %v3515, 2147483648
        %v3548 = vxor.u32 %v3516, 2147483648
        %v3549 = vxor.u32 %v3517, 2147483648
        %v3550 = vxor.u32 %v3518, 2147483648
        %v3551 = vxor.u32 %v3519, 2147483648
        %v3552 = vxor.u32 %v3520, 2147483648
        %v3553 = vxor.u32 %v3521, 2147483648
        %v3554 = vxor.u32 %v3522, 2147483648
        %v3555 = vxor.u32 %v3523, 2147483648
        %v3556 = vxor.u32 %v3524, 2147483648
        %v3557 = vxor.u32 %v3525, 2147483648
        %v3558 = vxor.u32 %v3526, 2147483648
        %v3559 = vxor.u32 %v3527, 2147483648
        %v3560 = vxor.u32 %v3528, 2147483648
        %v3561 = vxor.u32 %v3529, 2147483648
        %v3562 = vxor.u32 %v3530, 2147483648
        %v3563 = vxor.u32 %v3531, 2147483648
        %v3564 = vxor.u32 %v3532, 2147483648
        %v3565 = vxor.u32 %v3533, 2147483648
        %v3566 = vxor.u32 %v3534, 2147483648
        %v3567 = vxor.u32 %v3535, 2147483648
        %v3568 = vxor.u32 %v3536, 2147483648
        %v3569 = vxor.u32 %v3537, 2147483648
        %v3570 = vxor.u32 %v3538, 2147483648
        %v3571 = vxor.u32 %v3539, 2147483648
        %v3572 = vxor.u32 %v3540, 2147483648
        %v3573 = vmul.f32 %v3541, 1.442695
        %v3574 = vpow.pop %v3573
        %v3575 = vmul.f32 %v3542, 1.442695
        %v3576 = vpow.pop %v3575
        %v3577 = vmul.f32 %v3543, 1.442695
        %v3578 = vpow.pop %v3577
        %v3579 = vmul.f32 %v3544, 1.442695
        %v3580 = vpow.pop %v3579
        %v3581 = vmul.f32 %v3545, 1.442695
        %v3582 = vpow.pop %v3581
        %v3583 = vmul.f32 %v3546, 1.442695
        %v3584 = vpow.pop %v3583
        %v3585 = vmul.f32 %v3547, 1.442695
        %v3586 = vpow.pop %v3585
        %v3587 = vmul.f32 %v3548, 1.442695
        %v3588 = vpow.pop %v3587
        %v3589 = vmul.f32 %v3549, 1.442695
        %v3590 = vpow.pop %v3589
        %v3591 = vmul.f32 %v3550, 1.442695
        %v3592 = vpow.pop %v3591
        %v3593 = vmul.f32 %v3551, 1.442695
        %v3594 = vpow.pop %v3593
        %v3595 = vmul.f32 %v3552, 1.442695
        %v3596 = vpow.pop %v3595
        %v3597 = vmul.f32 %v3553, 1.442695
        %v3598 = vpow.pop %v3597
        %v3599 = vmul.f32 %v3554, 1.442695
        %v3600 = vpow.pop %v3599
        %v3601 = vmul.f32 %v3555, 1.442695
        %v3602 = vpow.pop %v3601
        %v3603 = vmul.f32 %v3556, 1.442695
        %v3604 = vpow.pop %v3603
        %v3605 = vmul.f32 %v3557, 1.442695
        %v3606 = vpow.pop %v3605
        %v3607 = vmul.f32 %v3558, 1.442695
        %v3608 = vpow.pop %v3607
        %v3609 = vmul.f32 %v3559, 1.442695
        %v3610 = vpow.pop %v3609
        %v3611 = vmul.f32 %v3560, 1.442695
        %v3612 = vpow.pop %v3611
        %v3613 = vmul.f32 %v3561, 1.442695
        %v3614 = vpow.pop %v3613
        %v3615 = vmul.f32 %v3562, 1.442695
        %v3616 = vpow.pop %v3615
        %v3617 = vmul.f32 %v3563, 1.442695
        %v3618 = vpow.pop %v3617
        %v3619 = vmul.f32 %v3564, 1.442695
        %v3620 = vpow.pop %v3619
        %v3621 = vmul.f32 %v3565, 1.442695
        %v3622 = vpow.pop %v3621
        %v3623 = vmul.f32 %v3566, 1.442695
        %v3624 = vpow.pop %v3623
        %v3625 = vmul.f32 %v3567, 1.442695
        %v3626 = vpow.pop %v3625
        %v3627 = vmul.f32 %v3568, 1.442695
        %v3628 = vpow.pop %v3627
        %v3629 = vmul.f32 %v3569, 1.442695
        %v3630 = vpow.pop %v3629
        %v3631 = vmul.f32 %v3570, 1.442695
        %v3632 = vpow.pop %v3631
        %v3633 = vmul.f32 %v3571, 1.442695
        %v3634 = vpow.pop %v3633
        %v3635 = vmul.f32 %v3572, 1.442695
        %v3636 = vpow.pop %v3635
        %v3637 = vadd.f32 %v3574, 1.0
        %v3638 = vadd.f32 %v3576, 1.0
        %v3639 = vadd.f32 %v3578, 1.0
        %v3640 = vadd.f32 %v3580, 1.0
        %v3641 = vadd.f32 %v3582, 1.0
        %v3642 = vadd.f32 %v3584, 1.0
        %v3643 = vadd.f32 %v3586, 1.0
        %v3644 = vadd.f32 %v3588, 1.0
        %v3645 = vadd.f32 %v3590, 1.0
        %v3646 = vadd.f32 %v3592, 1.0
        %v3647 = vadd.f32 %v3594, 1.0
        %v3648 = vadd.f32 %v3596, 1.0
        %v3649 = vadd.f32 %v3598, 1.0
        %v3650 = vadd.f32 %v3600, 1.0
        %v3651 = vadd.f32 %v3602, 1.0
        %v3652 = vadd.f32 %v3604, 1.0
        %v3653 = vadd.f32 %v3606, 1.0
        %v3654 = vadd.f32 %v3608, 1.0
        %v3655 = vadd.f32 %v3610, 1.0
        %v3656 = vadd.f32 %v3612, 1.0
        %v3657 = vadd.f32 %v3614, 1.0
        %v3658 = vadd.f32 %v3616, 1.0
        %v3659 = vadd.f32 %v3618, 1.0
        %v3660 = vadd.f32 %v3620, 1.0
        %v3661 = vadd.f32 %v3622, 1.0
        %v3662 = vadd.f32 %v3624, 1.0
        %v3663 = vadd.f32 %v3626, 1.0
        %v3664 = vadd.f32 %v3628, 1.0
        %v3665 = vadd.f32 %v3630, 1.0
        %v3666 = vadd.f32 %v3632, 1.0
        %v3667 = vadd.f32 %v3634, 1.0
        %v3668 = vadd.f32 %v3636, 1.0
        %v3669 = vrcp.pop %v3637
        %v3670 = vmul.f32 1.0, %v3669
        %v3671 = vrcp.pop %v3638
        %v3672 = vmul.f32 1.0, %v3671
        %v3673 = vrcp.pop %v3639
        %v3674 = vmul.f32 1.0, %v3673
        %v3675 = vrcp.pop %v3640
        %v3676 = vmul.f32 1.0, %v3675
        %v3677 = vrcp.pop %v3641
        %v3678 = vmul.f32 1.0, %v3677
        %v3679 = vrcp.pop %v3642
        %v3680 = vmul.f32 1.0, %v3679
        %v3681 = vrcp.pop %v3643
        %v3682 = vmul.f32 1.0, %v3681
        %v3683 = vrcp.pop %v3644
        %v3684 = vmul.f32 1.0, %v3683
        %v3685 = vrcp.pop %v3645
        %v3686 = vmul.f32 1.0, %v3685
        %v3687 = vrcp.pop %v3646
        %v3688 = vmul.f32 1.0, %v3687
        %v3689 = vrcp.pop %v3647
        %v3690 = vmul.f32 1.0, %v3689
        %v3691 = vrcp.pop %v3648
        %v3692 = vmul.f32 1.0, %v3691
        %v3693 = vrcp.pop %v3649
        %v3694 = vmul.f32 1.0, %v3693
        %v3695 = vrcp.pop %v3650
        %v3696 = vmul.f32 1.0, %v3695
        %v3697 = vrcp.pop %v3651
        %v3698 = vmul.f32 1.0, %v3697
        %v3699 = vrcp.pop %v3652
        %v3700 = vmul.f32 1.0, %v3699
        %v3701 = vrcp.pop %v3653
        %v3702 = vmul.f32 1.0, %v3701
        %v3703 = vrcp.pop %v3654
        %v3704 = vmul.f32 1.0, %v3703
        %v3705 = vrcp.pop %v3655
        %v3706 = vmul.f32 1.0, %v3705
        %v3707 = vrcp.pop %v3656
        %v3708 = vmul.f32 1.0, %v3707
        %v3709 = vrcp.pop %v3657
        %v3710 = vmul.f32 1.0, %v3709
        %v3711 = vrcp.pop %v3658
        %v3712 = vmul.f32 1.0, %v3711
        %v3713 = vrcp.pop %v3659
        %v3714 = vmul.f32 1.0, %v3713
        %v3715 = vrcp.pop %v3660
        %v3716 = vmul.f32 1.0, %v3715
        %v3717 = vrcp.pop %v3661
        %v3718 = vmul.f32 1.0, %v3717
        %v3719 = vrcp.pop %v3662
        %v3720 = vmul.f32 1.0, %v3719
        %v3721 = vrcp.pop %v3663
        %v3722 = vmul.f32 1.0, %v3721
        %v3723 = vrcp.pop %v3664
        %v3724 = vmul.f32 1.0, %v3723
        %v3725 = vrcp.pop %v3665
        %v3726 = vmul.f32 1.0, %v3725
        %v3727 = vrcp.pop %v3666
        %v3728 = vmul.f32 1.0, %v3727
        %v3729 = vrcp.pop %v3667
        %v3730 = vmul.f32 1.0, %v3729
        %v3731 = vrcp.pop %v3668
        %v3732 = vmul.f32 1.0, %v3731
        %v3733 = vmul.f32 %v3509, %v3670
        %v3734 = vmul.f32 %v3510, %v3672
        %v3735 = vmul.f32 %v3511, %v3674
        %v3736 = vmul.f32 %v3512, %v3676
        %v3737 = vmul.f32 %v3513, %v3678
        %v3738 = vmul.f32 %v3514, %v3680
        %v3739 = vmul.f32 %v3515, %v3682
        %v3740 = vmul.f32 %v3516, %v3684
        %v3741 = vmul.f32 %v3517, %v3686
        %v3742 = vmul.f32 %v3518, %v3688
        %v3743 = vmul.f32 %v3519, %v3690
        %v3744 = vmul.f32 %v3520, %v3692
        %v3745 = vmul.f32 %v3521, %v3694
        %v3746 = vmul.f32 %v3522, %v3696
        %v3747 = vmul.f32 %v3523, %v3698
        %v3748 = vmul.f32 %v3524, %v3700
        %v3749 = vmul.f32 %v3525, %v3702
        %v3750 = vmul.f32 %v3526, %v3704
        %v3751 = vmul.f32 %v3527, %v3706
        %v3752 = vmul.f32 %v3528, %v3708
        %v3753 = vmul.f32 %v3529, %v3710
        %v3754 = vmul.f32 %v3530, %v3712
        %v3755 = vmul.f32 %v3531, %v3714
        %v3756 = vmul.f32 %v3532, %v3716
        %v3757 = vmul.f32 %v3533, %v3718
        %v3758 = vmul.f32 %v3534, %v3720
        %v3759 = vmul.f32 %v3535, %v3722
        %v3760 = vmul.f32 %v3536, %v3724
        %v3761 = vmul.f32 %v3537, %v3726
        %v3762 = vmul.f32 %v3538, %v3728
        %v3763 = vmul.f32 %v3539, %v3730
        %v3764 = vmul.f32 %v3540, %v3732
        %v3765 = vld [vmem:[%s12] sm:$0x3]
        %v3766 = vrot.slane %v3733, 7
        %v3767 = vrot.slane %v3734, 7
        %v3768 = vrot.slane %v3735, 7
        %v3769 = vrot.slane %v3736, 7
        %v3770 = vrot.slane %v3737, 7
        %v3771 = vrot.slane %v3738, 7
        %v3772 = vrot.slane %v3739, 7
        %v3773 = vrot.slane %v3740, 7
        %v3774 = vrot.slane %v3741, 7
        %v3775 = vrot.slane %v3742, 7
        %v3776 = vrot.slane %v3743, 7
        %v3777 = vrot.slane %v3744, 7
        %v3778 = vrot.slane %v3745, 7
        %v3779 = vrot.slane %v3746, 7
        %v3780 = vrot.slane %v3747, 7
        %v3781 = vrot.slane %v3748, 7
        %v3782 = vrot.slane %v3749, 7
        %v3783 = vrot.slane %v3750, 7
        %v3784 = vrot.slane %v3751, 7
        %v3785 = vrot.slane %v3752, 7
        %v3786 = vrot.slane %v3753, 7
        %v3787 = vrot.slane %v3754, 7
        %v3788 = vrot.slane %v3755, 7
        %v3789 = vrot.slane %v3756, 7
        %v3790 = vrot.slane %v3757, 7
        %v3791 = vrot.slane %v3758, 7
        %v3792 = vrot.slane %v3759, 7
        %v3793 = vrot.slane %v3760, 7
        %v3794 = vrot.slane %v3761, 7
        %v3795 = vrot.slane %v3762, 7
        %v3796 = vrot.slane %v3763, 7
        %v3797 = vrot.slane %v3764, 7
        %v3798 = vsel %vm1653, %v3794, %v3796
        %v3799 = vsel %vm1653, %v3795, %v3797
        %v3800 = vsel %vm1653, %v3792, %v3794
        %v3801 = vsel %vm1653, %v3793, %v3795
        %v3802 = vsel %vm1653, %v3790, %v3792
        %v3803 = vsel %vm1653, %v3791, %v3793
        %v3804 = vsel %vm1653, %v3788, %v3790
        %v3805 = vsel %vm1653, %v3789, %v3791
        %v3806 = vsel %vm1653, %v3786, %v3788
        %v3807 = vsel %vm1653, %v3787, %v3789
        %v3808 = vsel %vm1653, %v3784, %v3786
        %v3809 = vsel %vm1653, %v3785, %v3787
        %v3810 = vsel %vm1653, %v3782, %v3784
        %v3811 = vsel %vm1653, %v3783, %v3785
        %v3812 = vsel %vm1653, %v3780, %v3782
        %v3813 = vsel %vm1653, %v3781, %v3783
        %v3814 = vsel %vm1653, %v3778, %v3780
        %v3815 = vsel %vm1653, %v3779, %v3781
        %v3816 = vsel %vm1653, %v3776, %v3778
        %v3817 = vsel %vm1653, %v3777, %v3779
        %v3818 = vsel %vm1653, %v3774, %v3776
        %v3819 = vsel %vm1653, %v3775, %v3777
        %v3820 = vsel %vm1653, %v3772, %v3774
        %v3821 = vsel %vm1653, %v3773, %v3775
        %v3822 = vsel %vm1653, %v3770, %v3772
        %v3823 = vsel %vm1653, %v3771, %v3773
        %v3824 = vsel %vm1653, %v3768, %v3770
        %v3825 = vsel %vm1653, %v3769, %v3771
        %v3826 = vsel %vm1653, %v3766, %v3768
        %v3827 = vsel %vm1653, %v3767, %v3769
        %v3828 = vsel %vm1653, %v3796, %v3766
        %v3829 = vsel %vm1653, %v3797, %v3767
        %v3830 = vsel %vm1686, 0.0, %v3828
        %v3831 = vsel %vm1686, 0.0, %v3829
        %v3832 = vsel %vm1687, 0.0, %v3826
        %v3833 = vsel %vm1687, 0.0, %v3827
        %v3834 = vsel %vm1688, 0.0, %v3824
        %v3835 = vsel %vm1688, 0.0, %v3825
        %v3836 = vsel %vm1689, 0.0, %v3822
        %v3837 = vsel %vm1689, 0.0, %v3823
        %v3838 = vsel %vm1690, 0.0, %v3820
        %v3839 = vsel %vm1690, 0.0, %v3821
        %v3840 = vsel %vm1691, 0.0, %v3818
        %v3841 = vsel %vm1691, 0.0, %v3819
        %v3842 = vsel %vm1692, 0.0, %v3816
        %v3843 = vsel %vm1692, 0.0, %v3817
        %v3844 = vsel %vm1693, 0.0, %v3814
        %v3845 = vsel %vm1693, 0.0, %v3815
        %v3846 = vsel %vm1694, 0.0, %v3812
        %v3847 = vsel %vm1694, 0.0, %v3813
        %v3848 = vsel %vm1695, 0.0, %v3810
        %v3849 = vsel %vm1695, 0.0, %v3811
        %v3850 = vsel %vm1696, 0.0, %v3808
        %v3851 = vsel %vm1696, 0.0, %v3809
        %v3852 = vsel %vm1697, 0.0, %v3806
        %v3853 = vsel %vm1697, 0.0, %v3807
        %v3854 = vsel %vm1698, 0.0, %v3804
        %v3855 = vsel %vm1698, 0.0, %v3805
        %v3856 = vsel %vm1699, 0.0, %v3802
        %v3857 = vsel %vm1699, 0.0, %v3803
        %v3858 = vsel %vm1700, 0.0, %v3800
        %v3859 = vsel %vm1700, 0.0, %v3801
        %v3860 = vsel %vm1701, 0.0, %v3798
        %v3861 = vsel %vm1701, 0.0, %v3799
        %v3862 = vrot.slane %v3733, 1
        %v3863 = vrot.slane %v3734, 1
        %v3864 = vrot.slane %v3735, 1
        %v3865 = vrot.slane %v3736, 1
        %v3866 = vrot.slane %v3737, 1
        %v3867 = vrot.slane %v3738, 1
        %v3868 = vrot.slane %v3739, 1
        %v3869 = vrot.slane %v3740, 1
        %v3870 = vrot.slane %v3741, 1
        %v3871 = vrot.slane %v3742, 1
        %v3872 = vrot.slane %v3743, 1
        %v3873 = vrot.slane %v3744, 1
        %v3874 = vrot.slane %v3745, 1
        %v3875 = vrot.slane %v3746, 1
        %v3876 = vrot.slane %v3747, 1
        %v3877 = vrot.slane %v3748, 1
        %v3878 = vrot.slane %v3749, 1
        %v3879 = vrot.slane %v3750, 1
        %v3880 = vrot.slane %v3751, 1
        %v3881 = vrot.slane %v3752, 1
        %v3882 = vrot.slane %v3753, 1
        %v3883 = vrot.slane %v3754, 1
        %v3884 = vrot.slane %v3755, 1
        %v3885 = vrot.slane %v3756, 1
        %v3886 = vrot.slane %v3757, 1
        %v3887 = vrot.slane %v3758, 1
        %v3888 = vrot.slane %v3759, 1
        %v3889 = vrot.slane %v3760, 1
        %v3890 = vrot.slane %v3761, 1
        %v3891 = vrot.slane %v3762, 1
        %v3892 = vrot.slane %v3763, 1
        %v3893 = vrot.slane %v3764, 1
        %v3894 = vsel %vm1750, %v3890, %v3892
        %v3895 = vsel %vm1750, %v3891, %v3893
        %v3896 = vsel %vm1750, %v3888, %v3890
        %v3897 = vsel %vm1750, %v3889, %v3891
        %v3898 = vsel %vm1750, %v3886, %v3888
        %v3899 = vsel %vm1750, %v3887, %v3889
        %v3900 = vsel %vm1750, %v3884, %v3886
        %v3901 = vsel %vm1750, %v3885, %v3887
        %v3902 = vsel %vm1750, %v3882, %v3884
        %v3903 = vsel %vm1750, %v3883, %v3885
        %v3904 = vsel %vm1750, %v3880, %v3882
        %v3905 = vsel %vm1750, %v3881, %v3883
        %v3906 = vsel %vm1750, %v3878, %v3880
        %v3907 = vsel %vm1750, %v3879, %v3881
        %v3908 = vsel %vm1750, %v3876, %v3878
        %v3909 = vsel %vm1750, %v3877, %v3879
        %v3910 = vsel %vm1750, %v3874, %v3876
        %v3911 = vsel %vm1750, %v3875, %v3877
        %v3912 = vsel %vm1750, %v3872, %v3874
        %v3913 = vsel %vm1750, %v3873, %v3875
        %v3914 = vsel %vm1750, %v3870, %v3872
        %v3915 = vsel %vm1750, %v3871, %v3873
        %v3916 = vsel %vm1750, %v3868, %v3870
        %v3917 = vsel %vm1750, %v3869, %v3871
        %v3918 = vsel %vm1750, %v3866, %v3868
        %v3919 = vsel %vm1750, %v3867, %v3869
        %v3920 = vsel %vm1750, %v3864, %v3866
        %v3921 = vsel %vm1750, %v3865, %v3867
        %v3922 = vsel %vm1750, %v3862, %v3864
        %v3923 = vsel %vm1750, %v3863, %v3865
        %v3924 = vsel %vm1750, %v3892, %v3862
        %v3925 = vsel %vm1750, %v3893, %v3863
        %v3926 = vsel %vm1783, 0.0, %v3922
        %v3927 = vsel %vm1783, 0.0, %v3923
        %v3928 = vsel %vm1784, 0.0, %v3920
        %v3929 = vsel %vm1784, 0.0, %v3921
        %v3930 = vsel %vm1785, 0.0, %v3918
        %v3931 = vsel %vm1785, 0.0, %v3919
        %v3932 = vsel %vm1786, 0.0, %v3916
        %v3933 = vsel %vm1786, 0.0, %v3917
        %v3934 = vsel %vm1787, 0.0, %v3914
        %v3935 = vsel %vm1787, 0.0, %v3915
        %v3936 = vsel %vm1788, 0.0, %v3912
        %v3937 = vsel %vm1788, 0.0, %v3913
        %v3938 = vsel %vm1789, 0.0, %v3910
        %v3939 = vsel %vm1789, 0.0, %v3911
        %v3940 = vsel %vm1790, 0.0, %v3908
        %v3941 = vsel %vm1790, 0.0, %v3909
        %v3942 = vsel %vm1791, 0.0, %v3906
        %v3943 = vsel %vm1791, 0.0, %v3907
        %v3944 = vsel %vm1792, 0.0, %v3904
        %v3945 = vsel %vm1792, 0.0, %v3905
        %v3946 = vsel %vm1793, 0.0, %v3902
        %v3947 = vsel %vm1793, 0.0, %v3903
        %v3948 = vsel %vm1794, 0.0, %v3900
        %v3949 = vsel %vm1794, 0.0, %v3901
        %v3950 = vsel %vm1795, 0.0, %v3898
        %v3951 = vsel %vm1795, 0.0, %v3899
        %v3952 = vsel %vm1796, 0.0, %v3896
        %v3953 = vsel %vm1796, 0.0, %v3897
        %v3954 = vsel %vm1797, 0.0, %v3894
        %v3955 = vsel %vm1797, 0.0, %v3895
        %v3956 = vsel %vm1798, 0.0, %v3924
        %v3957 = vsel %vm1798, 0.0, %v3925
        %v3958 = vld [vmem:[#allocation5] sm:$0xff]
        %v3959 = vld [vmem:[#allocation5 + $0x8] sm:$0xff]
        %v3960 = vld [vmem:[#allocation5 + $0x10] sm:$0xff]
        %v3961 = vld [vmem:[#allocation5 + $0x18] sm:$0xff]
        %v3962 = vld [vmem:[#allocation5 + $0x20] sm:$0xff]
        %v3963 = vld [vmem:[#allocation5 + $0x28] sm:$0xff]
        %v3964 = vld [vmem:[#allocation5 + $0x30] sm:$0xff]
        %v3965 = vld [vmem:[#allocation5 + $0x38] sm:$0xff]
        %v3966 = vld [vmem:[#allocation5 + $0x40] sm:$0xff]
        %v3967 = vld [vmem:[#allocation5 + $0x48] sm:$0xff]
        %v3968 = vld [vmem:[#allocation5 + $0x50] sm:$0xff]
        %v3969 = vld [vmem:[#allocation5 + $0x58] sm:$0xff]
        %v3970 = vld [vmem:[#allocation5 + $0x60] sm:$0xff]
        %v3971 = vld [vmem:[#allocation5 + $0x68] sm:$0xff]
        %v3972 = vld [vmem:[#allocation5 + $0x70] sm:$0xff]
        %v3973 = vld [vmem:[#allocation5 + $0x78] sm:$0xff]
        %v3974 = vld [vmem:[#allocation5 + $0x80] sm:$0xff]
        %v3975 = vld [vmem:[#allocation5 + $0x88] sm:$0xff]
        %v3976 = vld [vmem:[#allocation5 + $0x90] sm:$0xff]
        %v3977 = vld [vmem:[#allocation5 + $0x98] sm:$0xff]
        %v3978 = vld [vmem:[#allocation5 + $0xa0] sm:$0xff]
        %v3979 = vld [vmem:[#allocation5 + $0xa8] sm:$0xff]
        %v3980 = vld [vmem:[#allocation5 + $0xb0] sm:$0xff]
        %v3981 = vld [vmem:[#allocation5 + $0xb8] sm:$0xff]
        %v3982 = vld [vmem:[#allocation5 + $0xc0] sm:$0xff]
        %v3983 = vld [vmem:[#allocation5 + $0xc8] sm:$0xff]
        %v3984 = vld [vmem:[#allocation5 + $0xd0] sm:$0xff]
        %v3985 = vld [vmem:[#allocation5 + $0xd8] sm:$0xff]
        %v3986 = vld [vmem:[#allocation5 + $0xe0] sm:$0xff]
        %v3987 = vld [vmem:[#allocation5 + $0xe8] sm:$0xff]
        %v3988 = vld [vmem:[#allocation5 + $0xf0] sm:$0xff]
        %v3989 = vld [vmem:[#allocation5 + $0xf8] sm:$0xff]
        %v3990 = vld [vmem:[#allocation5 + $0x100] sm:$0xff]
        %v3991 = vld [vmem:[#allocation5 + $0x108] sm:$0xff]
        %v3992 = vld [vmem:[#allocation5 + $0x110] sm:$0xff]
        %v3993 = vld [vmem:[#allocation5 + $0x118] sm:$0xff]
        %v3994 = vld [vmem:[#allocation5 + $0x120] sm:$0xff]
        %v3995 = vld [vmem:[#allocation5 + $0x128] sm:$0xff]
        %v3996 = vld [vmem:[#allocation5 + $0x130] sm:$0xff]
        %v3997 = vld [vmem:[#allocation5 + $0x138] sm:$0xff]
        %v3998 = vld [vmem:[#allocation5 + $0x140] sm:$0xff]
        %v3999 = vld [vmem:[#allocation5 + $0x148] sm:$0xff]
        %v4000 = vld [vmem:[#allocation5 + $0x150] sm:$0xff]
        %v4001 = vld [vmem:[#allocation5 + $0x158] sm:$0xff]
        %v4002 = vld [vmem:[#allocation5 + $0x160] sm:$0xff]
        %v4003 = vld [vmem:[#allocation5 + $0x168] sm:$0xff]
        %v4004 = vld [vmem:[#allocation5 + $0x170] sm:$0xff]
        %v4005 = vld [vmem:[#allocation5 + $0x178] sm:$0xff]
        %v4006 = vld [vmem:[#allocation5 + $0x180] sm:$0xff]
        %v4007 = vld [vmem:[#allocation5 + $0x188] sm:$0xff]
        %v4008 = vld [vmem:[#allocation5 + $0x190] sm:$0xff]
        %v4009 = vld [vmem:[#allocation5 + $0x198] sm:$0xff]
        %v4010 = vld [vmem:[#allocation5 + $0x1a0] sm:$0xff]
        %v4011 = vld [vmem:[#allocation5 + $0x1a8] sm:$0xff]
        %v4012 = vld [vmem:[#allocation5 + $0x1b0] sm:$0xff]
        %v4013 = vld [vmem:[#allocation5 + $0x1b8] sm:$0xff]
        %v4014 = vld [vmem:[#allocation5 + $0x1c0] sm:$0xff]
        %v4015 = vld [vmem:[#allocation5 + $0x1c8] sm:$0xff]
        %v4016 = vld [vmem:[#allocation5 + $0x1d0] sm:$0xff]
        %v4017 = vld [vmem:[#allocation5 + $0x1d8] sm:$0xff]
        %v4018 = vld [vmem:[#allocation5 + $0x1e0] sm:$0xff]
        %v4019 = vld [vmem:[#allocation5 + $0x1e8] sm:$0xff]
        %v4020 = vld [vmem:[#allocation5 + $0x1f0] sm:$0xff]
        %v4021 = vld [vmem:[#allocation5 + $0x1f8] sm:$0xff]
        %s4022 = scalar_lea.vmem [#allocation5], 512
        %v4023 = vld [vmem:[%s4022] sm:$0xff]
        %v4024 = vld [vmem:[%s4022 + $0x8] sm:$0xff]
        %v4025 = vld [vmem:[%s4022 + $0x10] sm:$0xff]
        %v4026 = vld [vmem:[%s4022 + $0x18] sm:$0xff]
        %v4027 = vld [vmem:[%s4022 + $0x20] sm:$0xff]
        %v4028 = vld [vmem:[%s4022 + $0x28] sm:$0xff]
        %v4029 = vld [vmem:[%s4022 + $0x30] sm:$0xff]
        %v4030 = vld [vmem:[%s4022 + $0x38] sm:$0xff]
        %v4031 = vld [vmem:[%s4022 + $0x40] sm:$0xff]
        %v4032 = vld [vmem:[%s4022 + $0x48] sm:$0xff]
        %v4033 = vld [vmem:[%s4022 + $0x50] sm:$0xff]
        %v4034 = vld [vmem:[%s4022 + $0x58] sm:$0xff]
        %v4035 = vld [vmem:[%s4022 + $0x60] sm:$0xff]
        %v4036 = vld [vmem:[%s4022 + $0x68] sm:$0xff]
        %v4037 = vld [vmem:[%s4022 + $0x70] sm:$0xff]
        %v4038 = vld [vmem:[%s4022 + $0x78] sm:$0xff]
        %v4039 = vld [vmem:[%s4022 + $0x80] sm:$0xff]
        %v4040 = vld [vmem:[%s4022 + $0x88] sm:$0xff]
        %v4041 = vld [vmem:[%s4022 + $0x90] sm:$0xff]
        %v4042 = vld [vmem:[%s4022 + $0x98] sm:$0xff]
        %v4043 = vld [vmem:[%s4022 + $0xa0] sm:$0xff]
        %v4044 = vld [vmem:[%s4022 + $0xa8] sm:$0xff]
        %v4045 = vld [vmem:[%s4022 + $0xb0] sm:$0xff]
        %v4046 = vld [vmem:[%s4022 + $0xb8] sm:$0xff]
        %v4047 = vld [vmem:[%s4022 + $0xc0] sm:$0xff]
        %v4048 = vld [vmem:[%s4022 + $0xc8] sm:$0xff]
        %v4049 = vld [vmem:[%s4022 + $0xd0] sm:$0xff]
        %v4050 = vld [vmem:[%s4022 + $0xd8] sm:$0xff]
        %v4051 = vld [vmem:[%s4022 + $0xe0] sm:$0xff]
        %v4052 = vld [vmem:[%s4022 + $0xe8] sm:$0xff]
        %v4053 = vld [vmem:[%s4022 + $0xf0] sm:$0xff]
        %v4054 = vld [vmem:[%s4022 + $0xf8] sm:$0xff]
        %v4055 = vld [vmem:[%s4022 + $0x100] sm:$0xff]
        %v4056 = vld [vmem:[%s4022 + $0x108] sm:$0xff]
        %v4057 = vld [vmem:[%s4022 + $0x110] sm:$0xff]
        %v4058 = vld [vmem:[%s4022 + $0x118] sm:$0xff]
        %v4059 = vld [vmem:[%s4022 + $0x120] sm:$0xff]
        %v4060 = vld [vmem:[%s4022 + $0x128] sm:$0xff]
        %v4061 = vld [vmem:[%s4022 + $0x130] sm:$0xff]
        %v4062 = vld [vmem:[%s4022 + $0x138] sm:$0xff]
        %v4063 = vld [vmem:[%s4022 + $0x140] sm:$0xff]
        %v4064 = vld [vmem:[%s4022 + $0x148] sm:$0xff]
        %v4065 = vld [vmem:[%s4022 + $0x150] sm:$0xff]
        %v4066 = vld [vmem:[%s4022 + $0x158] sm:$0xff]
        %v4067 = vld [vmem:[%s4022 + $0x160] sm:$0xff]
        %v4068 = vld [vmem:[%s4022 + $0x168] sm:$0xff]
        %v4069 = vld [vmem:[%s4022 + $0x170] sm:$0xff]
        %v4070 = vld [vmem:[%s4022 + $0x178] sm:$0xff]
        %v4071 = vld [vmem:[%s4022 + $0x180] sm:$0xff]
        %v4072 = vld [vmem:[%s4022 + $0x188] sm:$0xff]
        %v4073 = vld [vmem:[%s4022 + $0x190] sm:$0xff]
        %v4074 = vld [vmem:[%s4022 + $0x198] sm:$0xff]
        %v4075 = vld [vmem:[%s4022 + $0x1a0] sm:$0xff]
        %v4076 = vld [vmem:[%s4022 + $0x1a8] sm:$0xff]
        %v4077 = vld [vmem:[%s4022 + $0x1b0] sm:$0xff]
        %v4078 = vld [vmem:[%s4022 + $0x1b8] sm:$0xff]
        %v4079 = vld [vmem:[%s4022 + $0x1c0] sm:$0xff]
        %v4080 = vld [vmem:[%s4022 + $0x1c8] sm:$0xff]
        %v4081 = vld [vmem:[%s4022 + $0x1d0] sm:$0xff]
        %v4082 = vld [vmem:[%s4022 + $0x1d8] sm:$0xff]
        %v4083 = vld [vmem:[%s4022 + $0x1e0] sm:$0xff]
        %v4084 = vld [vmem:[%s4022 + $0x1e8] sm:$0xff]
        %v4085 = vld [vmem:[%s4022 + $0x1f0] sm:$0xff]
        %v4086 = vld [vmem:[%s4022 + $0x1f8] sm:$0xff]
        %s4087 = scalar_lea.vmem [#allocation5], 1024
        %v4088 = vld [vmem:[%s4087] sm:$0xff]
        %v4089 = vld [vmem:[%s4087 + $0x8] sm:$0xff]
        %v4090 = vld [vmem:[%s4087 + $0x10] sm:$0xff]
        %v4091 = vld [vmem:[%s4087 + $0x18] sm:$0xff]
        %v4092 = vld [vmem:[%s4087 + $0x20] sm:$0xff]
        %v4093 = vld [vmem:[%s4087 + $0x28] sm:$0xff]
        %v4094 = vld [vmem:[%s4087 + $0x30] sm:$0xff]
        %v4095 = vld [vmem:[%s4087 + $0x38] sm:$0xff]
        %v4096 = vld [vmem:[%s4087 + $0x40] sm:$0xff]
        %v4097 = vld [vmem:[%s4087 + $0x48] sm:$0xff]
        %v4098 = vld [vmem:[%s4087 + $0x50] sm:$0xff]
        %v4099 = vld [vmem:[%s4087 + $0x58] sm:$0xff]
        %v4100 = vld [vmem:[%s4087 + $0x60] sm:$0xff]
        %v4101 = vld [vmem:[%s4087 + $0x68] sm:$0xff]
        %v4102 = vld [vmem:[%s4087 + $0x70] sm:$0xff]
        %v4103 = vld [vmem:[%s4087 + $0x78] sm:$0xff]
        %v4104 = vld [vmem:[%s4087 + $0x80] sm:$0xff]
        %v4105 = vld [vmem:[%s4087 + $0x88] sm:$0xff]
        %v4106 = vld [vmem:[%s4087 + $0x90] sm:$0xff]
        %v4107 = vld [vmem:[%s4087 + $0x98] sm:$0xff]
        %v4108 = vld [vmem:[%s4087 + $0xa0] sm:$0xff]
        %v4109 = vld [vmem:[%s4087 + $0xa8] sm:$0xff]
        %v4110 = vld [vmem:[%s4087 + $0xb0] sm:$0xff]
        %v4111 = vld [vmem:[%s4087 + $0xb8] sm:$0xff]
        %v4112 = vld [vmem:[%s4087 + $0xc0] sm:$0xff]
        %v4113 = vld [vmem:[%s4087 + $0xc8] sm:$0xff]
        %v4114 = vld [vmem:[%s4087 + $0xd0] sm:$0xff]
        %v4115 = vld [vmem:[%s4087 + $0xd8] sm:$0xff]
        %v4116 = vld [vmem:[%s4087 + $0xe0] sm:$0xff]
        %v4117 = vld [vmem:[%s4087 + $0xe8] sm:$0xff]
        %v4118 = vld [vmem:[%s4087 + $0xf0] sm:$0xff]
        %v4119 = vld [vmem:[%s4087 + $0xf8] sm:$0xff]
        %v4120 = vld [vmem:[%s4087 + $0x100] sm:$0xff]
        %v4121 = vld [vmem:[%s4087 + $0x108] sm:$0xff]
        %v4122 = vld [vmem:[%s4087 + $0x110] sm:$0xff]
        %v4123 = vld [vmem:[%s4087 + $0x118] sm:$0xff]
        %v4124 = vld [vmem:[%s4087 + $0x120] sm:$0xff]
        %v4125 = vld [vmem:[%s4087 + $0x128] sm:$0xff]
        %v4126 = vld [vmem:[%s4087 + $0x130] sm:$0xff]
        %v4127 = vld [vmem:[%s4087 + $0x138] sm:$0xff]
        %v4128 = vld [vmem:[%s4087 + $0x140] sm:$0xff]
        %v4129 = vld [vmem:[%s4087 + $0x148] sm:$0xff]
        %v4130 = vld [vmem:[%s4087 + $0x150] sm:$0xff]
        %v4131 = vld [vmem:[%s4087 + $0x158] sm:$0xff]
        %v4132 = vld [vmem:[%s4087 + $0x160] sm:$0xff]
        %v4133 = vld [vmem:[%s4087 + $0x168] sm:$0xff]
        %v4134 = vld [vmem:[%s4087 + $0x170] sm:$0xff]
        %v4135 = vld [vmem:[%s4087 + $0x178] sm:$0xff]
        %v4136 = vld [vmem:[%s4087 + $0x180] sm:$0xff]
        %v4137 = vld [vmem:[%s4087 + $0x188] sm:$0xff]
        %v4138 = vld [vmem:[%s4087 + $0x190] sm:$0xff]
        %v4139 = vld [vmem:[%s4087 + $0x198] sm:$0xff]
        %v4140 = vld [vmem:[%s4087 + $0x1a0] sm:$0xff]
        %v4141 = vld [vmem:[%s4087 + $0x1a8] sm:$0xff]
        %v4142 = vld [vmem:[%s4087 + $0x1b0] sm:$0xff]
        %v4143 = vld [vmem:[%s4087 + $0x1b8] sm:$0xff]
        %v4144 = vld [vmem:[%s4087 + $0x1c0] sm:$0xff]
        %v4145 = vld [vmem:[%s4087 + $0x1c8] sm:$0xff]
        %v4146 = vld [vmem:[%s4087 + $0x1d0] sm:$0xff]
        %v4147 = vld [vmem:[%s4087 + $0x1d8] sm:$0xff]
        %v4148 = vld [vmem:[%s4087 + $0x1e0] sm:$0xff]
        %v4149 = vld [vmem:[%s4087 + $0x1e8] sm:$0xff]
        %v4150 = vld [vmem:[%s4087 + $0x1f0] sm:$0xff]
        %v4151 = vld [vmem:[%s4087 + $0x1f8] sm:$0xff]
        %4152 = vmatprep.subr.mxu0 %v4024
        %4153 = vmatpush1.msra.mxu0 %v4023
        %4154 = vmatprep.subr.mxu0 %v4026
        %4155 = vmatpush1.msra.mxu0 %v4025
        %4156 = vmatprep.subr.mxu0 %v4028
        %4157 = vmatpush1.msra.mxu0 %v4027
        %4158 = vmatprep.subr.mxu0 %v4030
        %4159 = vmatpush1.msra.mxu0 %v4029
        %4160 = vmatprep.subr.mxu0 %v4032
        %4161 = vmatpush1.msra.mxu0 %v4031
        %4162 = vmatprep.subr.mxu0 %v4034
        %4163 = vmatpush1.msra.mxu0 %v4033
        %4164 = vmatprep.subr.mxu0 %v4036
        %4165 = vmatpush1.msra.mxu0 %v4035
        %4166 = vmatprep.subr.mxu0 %v4038
        %4167 = vmatpush1.msra.mxu0 %v4037
        %4168 = vmatprep.subr.mxu0 %v4040
        %4169 = vmatpush1.msra.mxu0 %v4039
        %4170 = vmatprep.subr.mxu0 %v4042
        %4171 = vmatpush1.msra.mxu0 %v4041
        %4172 = vmatprep.subr.mxu0 %v4044
        %4173 = vmatpush1.msra.mxu0 %v4043
        %4174 = vmatprep.subr.mxu0 %v4046
        %4175 = vmatpush1.msra.mxu0 %v4045
        %4176 = vmatprep.subr.mxu0 %v4048
        %4177 = vmatpush1.msra.mxu0 %v4047
        %4178 = vmatprep.subr.mxu0 %v4050
        %4179 = vmatpush1.msra.mxu0 %v4049
        %4180 = vmatprep.subr.mxu0 %v4052
        %4181 = vmatpush1.msra.mxu0 %v4051
        %4182 = vmatprep.subr.mxu0 %v4054
        %4183 = vmatpush1.msra.mxu0 %v4053
        %4184 = vmatprep.subr.mxu0 %v4056
        %4185 = vmatpush1.msra.mxu0 %v4055
        %4186 = vmatprep.subr.mxu0 %v4058
        %4187 = vmatpush1.msra.mxu0 %v4057
        %4188 = vmatprep.subr.mxu0 %v4060
        %4189 = vmatpush1.msra.mxu0 %v4059
        %4190 = vmatprep.subr.mxu0 %v4062
        %4191 = vmatpush1.msra.mxu0 %v4061
        %4192 = vmatprep.subr.mxu0 %v4064
        %4193 = vmatpush1.msra.mxu0 %v4063
        %4194 = vmatprep.subr.mxu0 %v4066
        %4195 = vmatpush1.msra.mxu0 %v4065
        %4196 = vmatprep.subr.mxu0 %v4068
        %4197 = vmatpush1.msra.mxu0 %v4067
        %4198 = vmatprep.subr.mxu0 %v4070
        %4199 = vmatpush1.msra.mxu0 %v4069
        %4200 = vmatprep.subr.mxu0 %v4072
        %4201 = vmatpush1.msra.mxu0 %v4071
        %4202 = vmatprep.subr.mxu0 %v4074
        %4203 = vmatpush1.msra.mxu0 %v4073
        %4204 = vmatprep.subr.mxu0 %v4076
        %4205 = vmatpush1.msra.mxu0 %v4075
        %4206 = vmatprep.subr.mxu0 %v4078
        %4207 = vmatpush1.msra.mxu0 %v4077
        %4208 = vmatprep.subr.mxu0 %v4080
        %4209 = vmatpush1.msra.mxu0 %v4079
        %4210 = vmatprep.subr.mxu0 %v4082
        %4211 = vmatpush1.msra.mxu0 %v4081
        %4212 = vmatprep.subr.mxu0 %v4084
        %4213 = vmatpush1.msra.mxu0 %v4083
        %4214 = vmatprep.subr.mxu0 %v4086
        %4215 = vmatpush1.msra.mxu0 %v4085
        %4216 = vmatprep.mubr.f32.mxu0 %v3734
        %4217 = vmatmul.mubr.f32.gmra.mrb[0].mxu0 %v3733
        %v4218 = vpop.f32.mrb[0].mxu0
        %v4219 = vadd.f32 0.0, %v4218
        %v4220 = vpop.f32.mrb[0].mxu0
        %v4221 = vadd.f32 0.0, %v4220
        %4222 = vmatprep.mubr.f32.mxu0 %v3736
        %4223 = vmatmul.mubr.f32.gmra.mrb[0].mxu0 %v3735
        %v4224 = vpop.f32.mrb[0].mxu0
        %v4225 = vadd.f32 0.0, %v4224
        %v4226 = vpop.f32.mrb[0].mxu0
        %v4227 = vadd.f32 0.0, %v4226
        %4228 = vmatprep.mubr.f32.mxu0 %v3738
        %4229 = vmatmul.mubr.f32.gmra.mrb[0].mxu0 %v3737
        %v4230 = vpop.f32.mrb[0].mxu0
        %v4231 = vadd.f32 0.0, %v4230
        %v4232 = vpop.f32.mrb[0].mxu0
        %v4233 = vadd.f32 0.0, %v4232
        %4234 = vmatprep.mubr.f32.mxu0 %v3740
        %4235 = vmatmul.mubr.f32.gmra.mrb[0].mxu0 %v3739
        %v4236 = vpop.f32.mrb[0].mxu0
        %v4237 = vadd.f32 0.0, %v4236
        %v4238 = vpop.f32.mrb[0].mxu0
        %v4239 = vadd.f32 0.0, %v4238
        %4240 = vmatprep.mubr.f32.mxu0 %v3742
        %4241 = vmatmul.mubr.f32.gmra.mrb[0].mxu0 %v3741
        %v4242 = vpop.f32.mrb[0].mxu0
        %v4243 = vadd.f32 0.0, %v4242
        %v4244 = vpop.f32.mrb[0].mxu0
        %v4245 = vadd.f32 0.0, %v4244
        %4246 = vmatprep.mubr.f32.mxu0 %v3744
        %4247 = vmatmul.mubr.f32.gmra.mrb[0].mxu0 %v3743
        %v4248 = vpop.f32.mrb[0].mxu0
        %v4249 = vadd.f32 0.0, %v4248
        %v4250 = vpop.f32.mrb[0].mxu0
        %v4251 = vadd.f32 0.0, %v4250
        %4252 = vmatprep.mubr.f32.mxu0 %v3746
        %4253 = vmatmul.mubr.f32.gmra.mrb[0].mxu0 %v3745
        %v4254 = vpop.f32.mrb[0].mxu0
        %v4255 = vadd.f32 0.0, %v4254
        %v4256 = vpop.f32.mrb[0].mxu0
        %v4257 = vadd.f32 0.0, %v4256
        %4258 = vmatprep.mubr.f32.mxu0 %v3748
        %4259 = vmatmul.mubr.f32.gmra.mrb[0].mxu0 %v3747
        %v4260 = vpop.f32.mrb[0].mxu0
        %v4261 = vadd.f32 0.0, %v4260
        %v4262 = vpop.f32.mrb[0].mxu0
        %v4263 = vadd.f32 0.0, %v4262
        %4264 = vmatprep.mubr.f32.mxu0 %v3750
        %4265 = vmatmul.mubr.f32.gmra.mrb[0].mxu0 %v3749
        %v4266 = vpop.f32.mrb[0].mxu0
        %v4267 = vadd.f32 0.0, %v4266
        %v4268 = vpop.f32.mrb[0].mxu0
        %v4269 = vadd.f32 0.0, %v4268
        %4270 = vmatprep.mubr.f32.mxu0 %v3752
        %4271 = vmatmul.mubr.f32.gmra.mrb[0].mxu0 %v3751
        %v4272 = vpop.f32.mrb[0].mxu0
        %v4273 = vadd.f32 0.0, %v4272
        %v4274 = vpop.f32.mrb[0].mxu0
        %v4275 = vadd.f32 0.0, %v4274
        %4276 = vmatprep.mubr.f32.mxu0 %v3754
        %4277 = vmatmul.mubr.f32.gmra.mrb[0].mxu0 %v3753
        %v4278 = vpop.f32.mrb[0].mxu0
        %v4279 = vadd.f32 0.0, %v4278
        %v4280 = vpop.f32.mrb[0].mxu0
        %v4281 = vadd.f32 0.0, %v4280
        %4282 = vmatprep.mubr.f32.mxu0 %v3756
        %4283 = vmatmul.mubr.f32.gmra.mrb[0].mxu0 %v3755
        %v4284 = vpop.f32.mrb[0].mxu0
        %v4285 = vadd.f32 0.0, %v4284
        %v4286 = vpop.f32.mrb[0].mxu0
        %v4287 = vadd.f32 0.0, %v4286
        %4288 = vmatprep.mubr.f32.mxu0 %v3758
        %4289 = vmatmul.mubr.f32.gmra.mrb[0].mxu0 %v3757
        %v4290 = vpop.f32.mrb[0].mxu0
        %v4291 = vadd.f32 0.0, %v4290
        %v4292 = vpop.f32.mrb[0].mxu0
        %v4293 = vadd.f32 0.0, %v4292
        %4294 = vmatprep.mubr.f32.mxu0 %v3760
        %4295 = vmatmul.mubr.f32.gmra.mrb[0].mxu0 %v3759
        %v4296 = vpop.f32.mrb[0].mxu0
        %v4297 = vadd.f32 0.0, %v4296
        %v4298 = vpop.f32.mrb[0].mxu0
        %v4299 = vadd.f32 0.0, %v4298
        %4300 = vmatprep.mubr.f32.mxu0 %v3762
        %4301 = vmatmul.mubr.f32.gmra.mrb[0].mxu0 %v3761
        %v4302 = vpop.f32.mrb[0].mxu0
        %v4303 = vadd.f32 0.0, %v4302
        %v4304 = vpop.f32.mrb[0].mxu0
        %v4305 = vadd.f32 0.0, %v4304
        %4306 = vmatprep.mubr.f32.mxu0 %v3764
        %4307 = vmatmul.mubr.f32.gmra.mrb[0].mxu0 %v3763
        %v4308 = vpop.f32.mrb[0].mxu0
        %v4309 = vadd.f32 0.0, %v4308
        %v4310 = vpop.f32.mrb[0].mxu0
        %v4311 = vadd.f32 0.0, %v4310
        %4312 = vdwg.mxu0
        %4313 = vmatprep.subr.mxu0 %v3959
        %4314 = vmatpush1.msra.mxu0 %v3958
        %4315 = vmatprep.subr.mxu0 %v3961
        %4316 = vmatpush1.msra.mxu0 %v3960
        %4317 = vmatprep.subr.mxu0 %v3963
        %4318 = vmatpush1.msra.mxu0 %v3962
        %4319 = vmatprep.subr.mxu0 %v3965
        %4320 = vmatpush1.msra.mxu0 %v3964
        %4321 = vmatprep.subr.mxu0 %v3967
        %4322 = vmatpush1.msra.mxu0 %v3966
        %4323 = vmatprep.subr.mxu0 %v3969
        %4324 = vmatpush1.msra.mxu0 %v3968
        %4325 = vmatprep.subr.mxu0 %v3971
        %4326 = vmatpush1.msra.mxu0 %v3970
        %4327 = vmatprep.subr.mxu0 %v3973
        %4328 = vmatpush1.msra.mxu0 %v3972
        %4329 = vmatprep.subr.mxu0 %v3975
        %4330 = vmatpush1.msra.mxu0 %v3974
        %4331 = vmatprep.subr.mxu0 %v3977
        %4332 = vmatpush1.msra.mxu0 %v3976
        %4333 = vmatprep.subr.mxu0 %v3979
        %4334 = vmatpush1.msra.mxu0 %v3978
        %4335 = vmatprep.subr.mxu0 %v3981
        %4336 = vmatpush1.msra.mxu0 %v3980
        %4337 = vmatprep.subr.mxu0 %v3983
        %4338 = vmatpush1.msra.mxu0 %v3982
        %4339 = vmatprep.subr.mxu0 %v3985
        %4340 = vmatpush1.msra.mxu0 %v3984
        %4341 = vmatprep.subr.mxu0 %v3987
        %4342 = vmatpush1.msra.mxu0 %v3986
        %4343 = vmatprep.subr.mxu0 %v3989
        %4344 = vmatpush1.msra.mxu0 %v3988
        %4345 = vmatprep.subr.mxu0 %v3991
        %4346 = vmatpush1.msra.mxu0 %v3990
        %4347 = vmatprep.subr.mxu0 %v3993
        %4348 = vmatpush1.msra.mxu0 %v3992
        %4349 = vmatprep.subr.mxu0 %v3995
        %4350 = vmatpush1.msra.mxu0 %v3994
        %4351 = vmatprep.subr.mxu0 %v3997
        %4352 = vmatpush1.msra.mxu0 %v3996
        %4353 = vmatprep.subr.mxu0 %v3999
        %4354 = vmatpush1.msra.mxu0 %v3998
        %4355 = vmatprep.subr.mxu0 %v4001
        %4356 = vmatpush1.msra.mxu0 %v4000
        %4357 = vmatprep.subr.mxu0 %v4003
        %4358 = vmatpush1.msra.mxu0 %v4002
        %4359 = vmatprep.subr.mxu0 %v4005
        %4360 = vmatpush1.msra.mxu0 %v4004
        %4361 = vmatprep.subr.mxu0 %v4007
        %4362 = vmatpush1.msra.mxu0 %v4006
        %4363 = vmatprep.subr.mxu0 %v4009
        %4364 = vmatpush1.msra.mxu0 %v4008
        %4365 = vmatprep.subr.mxu0 %v4011
        %4366 = vmatpush1.msra.mxu0 %v4010
        %4367 = vmatprep.subr.mxu0 %v4013
        %4368 = vmatpush1.msra.mxu0 %v4012
        %4369 = vmatprep.subr.mxu0 %v4015
        %4370 = vmatpush1.msra.mxu0 %v4014
        %4371 = vmatprep.subr.mxu0 %v4017
        %4372 = vmatpush1.msra.mxu0 %v4016
        %4373 = vmatprep.subr.mxu0 %v4019
        %4374 = vmatpush1.msra.mxu0 %v4018
        %4375 = vmatprep.subr.mxu0 %v4021
        %4376 = vmatpush1.msra.mxu0 %v4020
        %4377 = vmatprep.mubr.f32.mxu0 %v3831
        %4378 = vmatmul.mubr.f32.gmra.mrb[0].mxu0 %v3830
        %v4379 = vpop.f32.mrb[0].mxu0
        %v4380 = vadd.f32 %v4219, %v4379
        %v4381 = vpop.f32.mrb[0].mxu0
        %v4382 = vadd.f32 %v4221, %v4381
        %4383 = vmatprep.mubr.f32.mxu0 %v3833
        %4384 = vmatmul.mubr.f32.gmra.mrb[0].mxu0 %v3832
        %v4385 = vpop.f32.mrb[0].mxu0
        %v4386 = vadd.f32 %v4225, %v4385
        %v4387 = vpop.f32.mrb[0].mxu0
        %v4388 = vadd.f32 %v4227, %v4387
        %4389 = vmatprep.mubr.f32.mxu0 %v3835
        %4390 = vmatmul.mubr.f32.gmra.mrb[0].mxu0 %v3834
        %v4391 = vpop.f32.mrb[0].mxu0
        %v4392 = vadd.f32 %v4231, %v4391
        %v4393 = vpop.f32.mrb[0].mxu0
        %v4394 = vadd.f32 %v4233, %v4393
        %4395 = vmatprep.mubr.f32.mxu0 %v3837
        %4396 = vmatmul.mubr.f32.gmra.mrb[0].mxu0 %v3836
        %v4397 = vpop.f32.mrb[0].mxu0
        %v4398 = vadd.f32 %v4237, %v4397
        %v4399 = vpop.f32.mrb[0].mxu0
        %v4400 = vadd.f32 %v4239, %v4399
        %4401 = vmatprep.mubr.f32.mxu0 %v3839
        %4402 = vmatmul.mubr.f32.gmra.mrb[0].mxu0 %v3838
        %v4403 = vpop.f32.mrb[0].mxu0
        %v4404 = vadd.f32 %v4243, %v4403
        %v4405 = vpop.f32.mrb[0].mxu0
        %v4406 = vadd.f32 %v4245, %v4405
        %4407 = vmatprep.mubr.f32.mxu0 %v3841
        %4408 = vmatmul.mubr.f32.gmra.mrb[0].mxu0 %v3840
        %v4409 = vpop.f32.mrb[0].mxu0
        %v4410 = vadd.f32 %v4249, %v4409
        %v4411 = vpop.f32.mrb[0].mxu0
        %v4412 = vadd.f32 %v4251, %v4411
        %4413 = vmatprep.mubr.f32.mxu0 %v3843
        %4414 = vmatmul.mubr.f32.gmra.mrb[0].mxu0 %v3842
        %v4415 = vpop.f32.mrb[0].mxu0
        %v4416 = vadd.f32 %v4255, %v4415
        %v4417 = vpop.f32.mrb[0].mxu0
        %v4418 = vadd.f32 %v4257, %v4417
        %4419 = vmatprep.mubr.f32.mxu0 %v3845
        %4420 = vmatmul.mubr.f32.gmra.mrb[0].mxu0 %v3844
        %v4421 = vpop.f32.mrb[0].mxu0
        %v4422 = vadd.f32 %v4261, %v4421
        %v4423 = vpop.f32.mrb[0].mxu0
        %v4424 = vadd.f32 %v4263, %v4423
        %4425 = vmatprep.mubr.f32.mxu0 %v3847
        %4426 = vmatmul.mubr.f32.gmra.mrb[0].mxu0 %v3846
        %v4427 = vpop.f32.mrb[0].mxu0
        %v4428 = vadd.f32 %v4267, %v4427
        %v4429 = vpop.f32.mrb[0].mxu0
        %v4430 = vadd.f32 %v4269, %v4429
        %4431 = vmatprep.mubr.f32.mxu0 %v3849
        %4432 = vmatmul.mubr.f32.gmra.mrb[0].mxu0 %v3848
        %v4433 = vpop.f32.mrb[0].mxu0
        %v4434 = vadd.f32 %v4273, %v4433
        %v4435 = vpop.f32.mrb[0].mxu0
        %v4436 = vadd.f32 %v4275, %v4435
        %4437 = vmatprep.mubr.f32.mxu0 %v3851
        %4438 = vmatmul.mubr.f32.gmra.mrb[0].mxu0 %v3850
        %v4439 = vpop.f32.mrb[0].mxu0
        %v4440 = vadd.f32 %v4279, %v4439
        %v4441 = vpop.f32.mrb[0].mxu0
        %v4442 = vadd.f32 %v4281, %v4441
        %4443 = vmatprep.mubr.f32.mxu0 %v3853
        %4444 = vmatmul.mubr.f32.gmra.mrb[0].mxu0 %v3852
        %v4445 = vpop.f32.mrb[0].mxu0
        %v4446 = vadd.f32 %v4285, %v4445
        %v4447 = vpop.f32.mrb[0].mxu0
        %v4448 = vadd.f32 %v4287, %v4447
        %4449 = vmatprep.mubr.f32.mxu0 %v3855
        %4450 = vmatmul.mubr.f32.gmra.mrb[0].mxu0 %v3854
        %v4451 = vpop.f32.mrb[0].mxu0
        %v4452 = vadd.f32 %v4291, %v4451
        %v4453 = vpop.f32.mrb[0].mxu0
        %v4454 = vadd.f32 %v4293, %v4453
        %4455 = vmatprep.mubr.f32.mxu0 %v3857
        %4456 = vmatmul.mubr.f32.gmra.mrb[0].mxu0 %v3856
        %v4457 = vpop.f32.mrb[0].mxu0
        %v4458 = vadd.f32 %v4297, %v4457
        %v4459 = vpop.f32.mrb[0].mxu0
        %v4460 = vadd.f32 %v4299, %v4459
        %4461 = vmatprep.mubr.f32.mxu0 %v3859
        %4462 = vmatmul.mubr.f32.gmra.mrb[0].mxu0 %v3858
        %v4463 = vpop.f32.mrb[0].mxu0
        %v4464 = vadd.f32 %v4303, %v4463
        %v4465 = vpop.f32.mrb[0].mxu0
        %v4466 = vadd.f32 %v4305, %v4465
        %4467 = vmatprep.mubr.f32.mxu0 %v3861
        %4468 = vmatmul.mubr.f32.gmra.mrb[0].mxu0 %v3860
        %v4469 = vpop.f32.mrb[0].mxu0
        %v4470 = vadd.f32 %v4309, %v4469
        %v4471 = vpop.f32.mrb[0].mxu0
        %v4472 = vadd.f32 %v4311, %v4471
        %4473 = vdwg.mxu0
        %4474 = vmatprep.subr.mxu0 %v4089
        %4475 = vmatpush1.msra.mxu0 %v4088
        %4476 = vmatprep.subr.mxu0 %v4091
        %4477 = vmatpush1.msra.mxu0 %v4090
        %4478 = vmatprep.subr.mxu0 %v4093
        %4479 = vmatpush1.msra.mxu0 %v4092
        %4480 = vmatprep.subr.mxu0 %v4095
        %4481 = vmatpush1.msra.mxu0 %v4094
        %4482 = vmatprep.subr.mxu0 %v4097
        %4483 = vmatpush1.msra.mxu0 %v4096
        %4484 = vmatprep.subr.mxu0 %v4099
        %4485 = vmatpush1.msra.mxu0 %v4098
        %4486 = vmatprep.subr.mxu0 %v4101
        %4487 = vmatpush1.msra.mxu0 %v4100
        %4488 = vmatprep.subr.mxu0 %v4103
        %4489 = vmatpush1.msra.mxu0 %v4102
        %4490 = vmatprep.subr.mxu0 %v4105
        %4491 = vmatpush1.msra.mxu0 %v4104
        %4492 = vmatprep.subr.mxu0 %v4107
        %4493 = vmatpush1.msra.mxu0 %v4106
        %4494 = vmatprep.subr.mxu0 %v4109
        %4495 = vmatpush1.msra.mxu0 %v4108
        %4496 = vmatprep.subr.mxu0 %v4111
        %4497 = vmatpush1.msra.mxu0 %v4110
        %4498 = vmatprep.subr.mxu0 %v4113
        %4499 = vmatpush1.msra.mxu0 %v4112
        %4500 = vmatprep.subr.mxu0 %v4115
        %4501 = vmatpush1.msra.mxu0 %v4114
        %4502 = vmatprep.subr.mxu0 %v4117
        %4503 = vmatpush1.msra.mxu0 %v4116
        %4504 = vmatprep.subr.mxu0 %v4119
        %4505 = vmatpush1.msra.mxu0 %v4118
        %4506 = vmatprep.subr.mxu0 %v4121
        %4507 = vmatpush1.msra.mxu0 %v4120
        %4508 = vmatprep.subr.mxu0 %v4123
        %4509 = vmatpush1.msra.mxu0 %v4122
        %4510 = vmatprep.subr.mxu0 %v4125
        %4511 = vmatpush1.msra.mxu0 %v4124
        %4512 = vmatprep.subr.mxu0 %v4127
        %4513 = vmatpush1.msra.mxu0 %v4126
        %4514 = vmatprep.subr.mxu0 %v4129
        %4515 = vmatpush1.msra.mxu0 %v4128
        %4516 = vmatprep.subr.mxu0 %v4131
        %4517 = vmatpush1.msra.mxu0 %v4130
        %4518 = vmatprep.subr.mxu0 %v4133
        %4519 = vmatpush1.msra.mxu0 %v4132
        %4520 = vmatprep.subr.mxu0 %v4135
        %4521 = vmatpush1.msra.mxu0 %v4134
        %4522 = vmatprep.subr.mxu0 %v4137
        %4523 = vmatpush1.msra.mxu0 %v4136
        %4524 = vmatprep.subr.mxu0 %v4139
        %4525 = vmatpush1.msra.mxu0 %v4138
        %4526 = vmatprep.subr.mxu0 %v4141
        %4527 = vmatpush1.msra.mxu0 %v4140
        %4528 = vmatprep.subr.mxu0 %v4143
        %4529 = vmatpush1.msra.mxu0 %v4142
        %4530 = vmatprep.subr.mxu0 %v4145
        %4531 = vmatpush1.msra.mxu0 %v4144
        %4532 = vmatprep.subr.mxu0 %v4147
        %4533 = vmatpush1.msra.mxu0 %v4146
        %4534 = vmatprep.subr.mxu0 %v4149
        %4535 = vmatpush1.msra.mxu0 %v4148
        %4536 = vmatprep.subr.mxu0 %v4151
        %4537 = vmatpush1.msra.mxu0 %v4150
        %4538 = vmatprep.mubr.f32.mxu0 %v3927
        %4539 = vmatmul.mubr.f32.gmra.mrb[0].mxu0 %v3926
        %v4540 = vpop.f32.mrb[0].mxu0
        %v4541 = vadd.f32 0.0, %v4540
        %v4542 = vpop.f32.mrb[0].mxu0
        %v4543 = vadd.f32 0.0, %v4542
        %4544 = vmatprep.mubr.f32.mxu0 %v3929
        %4545 = vmatmul.mubr.f32.gmra.mrb[0].mxu0 %v3928
        %v4546 = vpop.f32.mrb[0].mxu0
        %v4547 = vadd.f32 0.0, %v4546
        %v4548 = vpop.f32.mrb[0].mxu0
        %v4549 = vadd.f32 0.0, %v4548
        %4550 = vmatprep.mubr.f32.mxu0 %v3931
        %4551 = vmatmul.mubr.f32.gmra.mrb[0].mxu0 %v3930
        %v4552 = vpop.f32.mrb[0].mxu0
        %v4553 = vadd.f32 0.0, %v4552
        %v4554 = vpop.f32.mrb[0].mxu0
        %v4555 = vadd.f32 0.0, %v4554
        %4556 = vmatprep.mubr.f32.mxu0 %v3933
        %4557 = vmatmul.mubr.f32.gmra.mrb[0].mxu0 %v3932
        %v4558 = vpop.f32.mrb[0].mxu0
        %v4559 = vadd.f32 0.0, %v4558
        %v4560 = vpop.f32.mrb[0].mxu0
        %v4561 = vadd.f32 0.0, %v4560
        %4562 = vmatprep.mubr.f32.mxu0 %v3935
        %4563 = vmatmul.mubr.f32.gmra.mrb[0].mxu0 %v3934
        %v4564 = vpop.f32.mrb[0].mxu0
        %v4565 = vadd.f32 0.0, %v4564
        %v4566 = vpop.f32.mrb[0].mxu0
        %v4567 = vadd.f32 0.0, %v4566
        %4568 = vmatprep.mubr.f32.mxu0 %v3937
        %4569 = vmatmul.mubr.f32.gmra.mrb[0].mxu0 %v3936
        %v4570 = vpop.f32.mrb[0].mxu0
        %v4571 = vadd.f32 0.0, %v4570
        %v4572 = vpop.f32.mrb[0].mxu0
        %v4573 = vadd.f32 0.0, %v4572
        %4574 = vmatprep.mubr.f32.mxu0 %v3939
        %4575 = vmatmul.mubr.f32.gmra.mrb[0].mxu0 %v3938
        %v4576 = vpop.f32.mrb[0].mxu0
        %v4577 = vadd.f32 0.0, %v4576
        %v4578 = vpop.f32.mrb[0].mxu0
        %v4579 = vadd.f32 0.0, %v4578
        %4580 = vmatprep.mubr.f32.mxu0 %v3941
        %4581 = vmatmul.mubr.f32.gmra.mrb[0].mxu0 %v3940
        %v4582 = vpop.f32.mrb[0].mxu0
        %v4583 = vadd.f32 0.0, %v4582
        %v4584 = vpop.f32.mrb[0].mxu0
        %v4585 = vadd.f32 0.0, %v4584
        %4586 = vmatprep.mubr.f32.mxu0 %v3943
        %4587 = vmatmul.mubr.f32.gmra.mrb[0].mxu0 %v3942
        %v4588 = vpop.f32.mrb[0].mxu0
        %v4589 = vadd.f32 0.0, %v4588
        %v4590 = vpop.f32.mrb[0].mxu0
        %v4591 = vadd.f32 0.0, %v4590
        %4592 = vmatprep.mubr.f32.mxu0 %v3945
        %4593 = vmatmul.mubr.f32.gmra.mrb[0].mxu0 %v3944
        %v4594 = vpop.f32.mrb[0].mxu0
        %v4595 = vadd.f32 0.0, %v4594
        %v4596 = vpop.f32.mrb[0].mxu0
        %v4597 = vadd.f32 0.0, %v4596
        %4598 = vmatprep.mubr.f32.mxu0 %v3947
        %4599 = vmatmul.mubr.f32.gmra.mrb[0].mxu0 %v3946
        %v4600 = vpop.f32.mrb[0].mxu0
        %v4601 = vadd.f32 0.0, %v4600
        %v4602 = vpop.f32.mrb[0].mxu0
        %v4603 = vadd.f32 0.0, %v4602
        %4604 = vmatprep.mubr.f32.mxu0 %v3949
        %4605 = vmatmul.mubr.f32.gmra.mrb[0].mxu0 %v3948
        %v4606 = vpop.f32.mrb[0].mxu0
        %v4607 = vadd.f32 0.0, %v4606
        %v4608 = vpop.f32.mrb[0].mxu0
        %v4609 = vadd.f32 0.0, %v4608
        %4610 = vmatprep.mubr.f32.mxu0 %v3951
        %4611 = vmatmul.mubr.f32.gmra.mrb[0].mxu0 %v3950
        %v4612 = vpop.f32.mrb[0].mxu0
        %v4613 = vadd.f32 0.0, %v4612
        %v4614 = vpop.f32.mrb[0].mxu0
        %v4615 = vadd.f32 0.0, %v4614
        %4616 = vmatprep.mubr.f32.mxu0 %v3953
        %4617 = vmatmul.mubr.f32.gmra.mrb[0].mxu0 %v3952
        %v4618 = vpop.f32.mrb[0].mxu0
        %v4619 = vadd.f32 0.0, %v4618
        %v4620 = vpop.f32.mrb[0].mxu0
        %v4621 = vadd.f32 0.0, %v4620
        %4622 = vmatprep.mubr.f32.mxu0 %v3955
        %4623 = vmatmul.mubr.f32.gmra.mrb[0].mxu0 %v3954
        %v4624 = vpop.f32.mrb[0].mxu0
        %v4625 = vadd.f32 0.0, %v4624
        %v4626 = vpop.f32.mrb[0].mxu0
        %v4627 = vadd.f32 0.0, %v4626
        %4628 = vmatprep.mubr.f32.mxu0 %v3957
        %4629 = vmatmul.mubr.f32.gmra.mrb[0].mxu0 %v3956
        %v4630 = vpop.f32.mrb[0].mxu0
        %v4631 = vadd.f32 0.0, %v4630
        %v4632 = vpop.f32.mrb[0].mxu0
        %v4633 = vadd.f32 0.0, %v4632
        %4634 = vdwg.mxu0
        %v4635 = vadd.f32 %v4380, %v4541
        %v4636 = vadd.f32 %v4382, %v4543
        %v4637 = vadd.f32 %v4386, %v4547
        %v4638 = vadd.f32 %v4388, %v4549
        %v4639 = vadd.f32 %v4392, %v4553
        %v4640 = vadd.f32 %v4394, %v4555
        %v4641 = vadd.f32 %v4398, %v4559
        %v4642 = vadd.f32 %v4400, %v4561
        %v4643 = vadd.f32 %v4404, %v4565
        %v4644 = vadd.f32 %v4406, %v4567
        %v4645 = vadd.f32 %v4410, %v4571
        %v4646 = vadd.f32 %v4412, %v4573
        %v4647 = vadd.f32 %v4416, %v4577
        %v4648 = vadd.f32 %v4418, %v4579
        %v4649 = vadd.f32 %v4422, %v4583
        %v4650 = vadd.f32 %v4424, %v4585
        %v4651 = vadd.f32 %v4428, %v4589
        %v4652 = vadd.f32 %v4430, %v4591
        %v4653 = vadd.f32 %v4434, %v4595
        %v4654 = vadd.f32 %v4436, %v4597
        %v4655 = vadd.f32 %v4440, %v4601
        %v4656 = vadd.f32 %v4442, %v4603
        %v4657 = vadd.f32 %v4446, %v4607
        %v4658 = vadd.f32 %v4448, %v4609
        %v4659 = vadd.f32 %v4452, %v4613
        %v4660 = vadd.f32 %v4454, %v4615
        %v4661 = vadd.f32 %v4458, %v4619
        %v4662 = vadd.f32 %v4460, %v4621
        %v4663 = vadd.f32 %v4464, %v4625
        %v4664 = vadd.f32 %v4466, %v4627
        %v4665 = vadd.f32 %v4470, %v4631
        %v4666 = vadd.f32 %v4472, %v4633
        %v4668 = vlaneseq
        %v4669 = vshrl.u32 %v4668, 7
        %v4670 = vsub.s32 0, %v4669
        %v4671 = vrot.slane %v3765, %v4670
        %v4672 = vlaneseq
        %v4673 = vshrl.u32 %v4672, 7
        %v4674 = vsub.s32 1, %v4673
        %v4675 = vrot.slane %v3765, %v4674
        %v4678 = vadd.f32 %v4635, %v4671
        %v4679 = vadd.f32 %v4636, %v4675
        %v4680 = vadd.f32 %v4637, %v4671
        %v4681 = vadd.f32 %v4638, %v4675
        %v4682 = vadd.f32 %v4639, %v4671
        %v4683 = vadd.f32 %v4640, %v4675
        %v4684 = vadd.f32 %v4641, %v4671
        %v4685 = vadd.f32 %v4642, %v4675
        %v4686 = vadd.f32 %v4643, %v4671
        %v4687 = vadd.f32 %v4644, %v4675
        %v4688 = vadd.f32 %v4645, %v4671
        %v4689 = vadd.f32 %v4646, %v4675
        %v4690 = vadd.f32 %v4647, %v4671
        %v4691 = vadd.f32 %v4648, %v4675
        %v4692 = vadd.f32 %v4649, %v4671
        %v4693 = vadd.f32 %v4650, %v4675
        %v4694 = vadd.f32 %v4651, %v4671
        %v4695 = vadd.f32 %v4652, %v4675
        %v4696 = vadd.f32 %v4653, %v4671
        %v4697 = vadd.f32 %v4654, %v4675
        %v4698 = vadd.f32 %v4655, %v4671
        %v4699 = vadd.f32 %v4656, %v4675
        %v4700 = vadd.f32 %v4657, %v4671
        %v4701 = vadd.f32 %v4658, %v4675
        %v4702 = vadd.f32 %v4659, %v4671
        %v4703 = vadd.f32 %v4660, %v4675
        %v4704 = vadd.f32 %v4661, %v4671
        %v4705 = vadd.f32 %v4662, %v4675
        %v4706 = vadd.f32 %v4663, %v4671
        %v4707 = vadd.f32 %v4664, %v4675
        %v4708 = vadd.f32 %v4665, %v4671
        %v4709 = vadd.f32 %v4666, %v4675
        %v4710 = vld [vmem:[#allocation7] sm:$0xff]
        %v4711 = vld [vmem:[#allocation7 + $0x8] sm:$0xff]
        %v4712 = vld [vmem:[#allocation7 + $0x10] sm:$0xff]
        %v4713 = vld [vmem:[#allocation7 + $0x18] sm:$0xff]
        %v4714 = vld [vmem:[#allocation7 + $0x20] sm:$0xff]
        %v4715 = vld [vmem:[#allocation7 + $0x28] sm:$0xff]
        %v4716 = vld [vmem:[#allocation7 + $0x30] sm:$0xff]
        %v4717 = vld [vmem:[#allocation7 + $0x38] sm:$0xff]
        %v4718 = vld [vmem:[#allocation7 + $0x40] sm:$0xff]
        %v4719 = vld [vmem:[#allocation7 + $0x48] sm:$0xff]
        %v4720 = vld [vmem:[#allocation7 + $0x50] sm:$0xff]
        %v4721 = vld [vmem:[#allocation7 + $0x58] sm:$0xff]
        %v4722 = vld [vmem:[#allocation7 + $0x60] sm:$0xff]
        %v4723 = vld [vmem:[#allocation7 + $0x68] sm:$0xff]
        %v4724 = vld [vmem:[#allocation7 + $0x70] sm:$0xff]
        %v4725 = vld [vmem:[#allocation7 + $0x78] sm:$0xff]
        %v4726 = vld [vmem:[#allocation7 + $0x80] sm:$0xff]
        %v4727 = vld [vmem:[#allocation7 + $0x88] sm:$0xff]
        %v4728 = vld [vmem:[#allocation7 + $0x90] sm:$0xff]
        %v4729 = vld [vmem:[#allocation7 + $0x98] sm:$0xff]
        %v4730 = vld [vmem:[#allocation7 + $0xa0] sm:$0xff]
        %v4731 = vld [vmem:[#allocation7 + $0xa8] sm:$0xff]
        %v4732 = vld [vmem:[#allocation7 + $0xb0] sm:$0xff]
        %v4733 = vld [vmem:[#allocation7 + $0xb8] sm:$0xff]
        %v4734 = vld [vmem:[#allocation7 + $0xc0] sm:$0xff]
        %v4735 = vld [vmem:[#allocation7 + $0xc8] sm:$0xff]
        %v4736 = vld [vmem:[#allocation7 + $0xd0] sm:$0xff]
        %v4737 = vld [vmem:[#allocation7 + $0xd8] sm:$0xff]
        %v4738 = vld [vmem:[#allocation7 + $0xe0] sm:$0xff]
        %v4739 = vld [vmem:[#allocation7 + $0xe8] sm:$0xff]
        %v4740 = vld [vmem:[#allocation7 + $0xf0] sm:$0xff]
        %v4741 = vld [vmem:[#allocation7 + $0xf8] sm:$0xff]
        %4742 = vmatprep.subr.mxu0 %v4711
        %4743 = vmatpush1.msra.mxu0 %v4710
        %4744 = vmatprep.subr.mxu0 %v4713
        %4745 = vmatpush1.msra.mxu0 %v4712
        %4746 = vmatprep.subr.mxu0 %v4715
        %4747 = vmatpush1.msra.mxu0 %v4714
        %4748 = vmatprep.subr.mxu0 %v4717
        %4749 = vmatpush1.msra.mxu0 %v4716
        %4750 = vmatprep.subr.mxu0 %v4719
        %4751 = vmatpush1.msra.mxu0 %v4718
        %4752 = vmatprep.subr.mxu0 %v4721
        %4753 = vmatpush1.msra.mxu0 %v4720
        %4754 = vmatprep.subr.mxu0 %v4723
        %4755 = vmatpush1.msra.mxu0 %v4722
        %4756 = vmatprep.subr.mxu0 %v4725
        %4757 = vmatpush1.msra.mxu0 %v4724
        %4758 = vmatprep.subr.mxu0 %v4727
        %4759 = vmatpush1.msra.mxu0 %v4726
        %4760 = vmatprep.subr.mxu0 %v4729
        %4761 = vmatpush1.msra.mxu0 %v4728
        %4762 = vmatprep.subr.mxu0 %v4731
        %4763 = vmatpush1.msra.mxu0 %v4730
        %4764 = vmatprep.subr.mxu0 %v4733
        %4765 = vmatpush1.msra.mxu0 %v4732
        %4766 = vmatprep.subr.mxu0 %v4735
        %4767 = vmatpush1.msra.mxu0 %v4734
        %4768 = vmatprep.subr.mxu0 %v4737
        %4769 = vmatpush1.msra.mxu0 %v4736
        %4770 = vmatprep.subr.mxu0 %v4739
        %4771 = vmatpush1.msra.mxu0 %v4738
        %4772 = vmatprep.subr.mxu0 %v4741
        %4773 = vmatpush1.msra.mxu0 %v4740
        %4774 = vmatprep.subr.mxu0 0.0
        %4775 = vmatpush1.msra.mxu0 0.0
        %4776 = vmatprep.subr.mxu0 0.0
        %4777 = vmatpush1.msra.mxu0 0.0
        %4778 = vmatprep.subr.mxu0 0.0
        %4779 = vmatpush1.msra.mxu0 0.0
        %4780 = vmatprep.subr.mxu0 0.0
        %4781 = vmatpush1.msra.mxu0 0.0
        %4782 = vmatprep.subr.mxu0 0.0
        %4783 = vmatpush1.msra.mxu0 0.0
        %4784 = vmatprep.subr.mxu0 0.0
        %4785 = vmatpush1.msra.mxu0 0.0
        %4786 = vmatprep.subr.mxu0 0.0
        %4787 = vmatpush1.msra.mxu0 0.0
        %4788 = vmatprep.subr.mxu0 0.0
        %4789 = vmatpush1.msra.mxu0 0.0
        %4790 = vmatprep.subr.mxu0 0.0
        %4791 = vmatpush1.msra.mxu0 0.0
        %4792 = vmatprep.subr.mxu0 0.0
        %4793 = vmatpush1.msra.mxu0 0.0
        %4794 = vmatprep.subr.mxu0 0.0
        %4795 = vmatpush1.msra.mxu0 0.0
        %4796 = vmatprep.subr.mxu0 0.0
        %4797 = vmatpush1.msra.mxu0 0.0
        %4798 = vmatprep.subr.mxu0 0.0
        %4799 = vmatpush1.msra.mxu0 0.0
        %4800 = vmatprep.subr.mxu0 0.0
        %4801 = vmatpush1.msra.mxu0 0.0
        %4802 = vmatprep.subr.mxu0 0.0
        %4803 = vmatpush1.msra.mxu0 0.0
        %4804 = vmatprep.subr.mxu0 0.0
        %4805 = vmatpush1.msra.mxu0 0.0
        %4806 = vmatprep.mubr.f32.mxu0 0.0
        %4807 = vmatmul.mubr.f32.gmra.mrb[0].mxu0 %v543
        %v4808 = vpop.f32.mrb[0].mxu0
        %v4809 = vadd.f32 0.0, %v4808
        %v4810 = vpop.f32.mrb[0].mxu0
        %v4811 = vadd.f32 0.0, %v4810
        %4812 = vmatprep.mubr.f32.mxu0 0.0
        %4813 = vmatmul.mubr.f32.gmra.mrb[0].mxu0 %v544
        %v4814 = vpop.f32.mrb[0].mxu0
        %v4815 = vadd.f32 0.0, %v4814
        %v4816 = vpop.f32.mrb[0].mxu0
        %v4817 = vadd.f32 0.0, %v4816
        %4818 = vmatprep.mubr.f32.mxu0 0.0
        %4819 = vmatmul.mubr.f32.gmra.mrb[0].mxu0 %v545
        %v4820 = vpop.f32.mrb[0].mxu0
        %v4821 = vadd.f32 0.0, %v4820
        %v4822 = vpop.f32.mrb[0].mxu0
        %v4823 = vadd.f32 0.0, %v4822
        %4824 = vmatprep.mubr.f32.mxu0 0.0
        %4825 = vmatmul.mubr.f32.gmra.mrb[0].mxu0 %v546
        %v4826 = vpop.f32.mrb[0].mxu0
        %v4827 = vadd.f32 0.0, %v4826
        %v4828 = vpop.f32.mrb[0].mxu0
        %v4829 = vadd.f32 0.0, %v4828
        %4830 = vmatprep.mubr.f32.mxu0 0.0
        %4831 = vmatmul.mubr.f32.gmra.mrb[0].mxu0 %v547
        %v4832 = vpop.f32.mrb[0].mxu0
        %v4833 = vadd.f32 0.0, %v4832
        %v4834 = vpop.f32.mrb[0].mxu0
        %v4835 = vadd.f32 0.0, %v4834
        %4836 = vmatprep.mubr.f32.mxu0 0.0
        %4837 = vmatmul.mubr.f32.gmra.mrb[0].mxu0 %v548
        %v4838 = vpop.f32.mrb[0].mxu0
        %v4839 = vadd.f32 0.0, %v4838
        %v4840 = vpop.f32.mrb[0].mxu0
        %v4841 = vadd.f32 0.0, %v4840
        %4842 = vmatprep.mubr.f32.mxu0 0.0
        %4843 = vmatmul.mubr.f32.gmra.mrb[0].mxu0 %v549
        %v4844 = vpop.f32.mrb[0].mxu0
        %v4845 = vadd.f32 0.0, %v4844
        %v4846 = vpop.f32.mrb[0].mxu0
        %v4847 = vadd.f32 0.0, %v4846
        %4848 = vmatprep.mubr.f32.mxu0 0.0
        %4849 = vmatmul.mubr.f32.gmra.mrb[0].mxu0 %v550
        %v4850 = vpop.f32.mrb[0].mxu0
        %v4851 = vadd.f32 0.0, %v4850
        %v4852 = vpop.f32.mrb[0].mxu0
        %v4853 = vadd.f32 0.0, %v4852
        %4854 = vmatprep.mubr.f32.mxu0 0.0
        %4855 = vmatmul.mubr.f32.gmra.mrb[0].mxu0 %v551
        %v4856 = vpop.f32.mrb[0].mxu0
        %v4857 = vadd.f32 0.0, %v4856
        %v4858 = vpop.f32.mrb[0].mxu0
        %v4859 = vadd.f32 0.0, %v4858
        %4860 = vmatprep.mubr.f32.mxu0 0.0
        %4861 = vmatmul.mubr.f32.gmra.mrb[0].mxu0 %v552
        %v4862 = vpop.f32.mrb[0].mxu0
        %v4863 = vadd.f32 0.0, %v4862
        %v4864 = vpop.f32.mrb[0].mxu0
        %v4865 = vadd.f32 0.0, %v4864
        %4866 = vmatprep.mubr.f32.mxu0 0.0
        %4867 = vmatmul.mubr.f32.gmra.mrb[0].mxu0 %v553
        %v4868 = vpop.f32.mrb[0].mxu0
        %v4869 = vadd.f32 0.0, %v4868
        %v4870 = vpop.f32.mrb[0].mxu0
        %v4871 = vadd.f32 0.0, %v4870
        %4872 = vmatprep.mubr.f32.mxu0 0.0
        %4873 = vmatmul.mubr.f32.gmra.mrb[0].mxu0 %v554
        %v4874 = vpop.f32.mrb[0].mxu0
        %v4875 = vadd.f32 0.0, %v4874
        %v4876 = vpop.f32.mrb[0].mxu0
        %v4877 = vadd.f32 0.0, %v4876
        %4878 = vmatprep.mubr.f32.mxu0 0.0
        %4879 = vmatmul.mubr.f32.gmra.mrb[0].mxu0 %v555
        %v4880 = vpop.f32.mrb[0].mxu0
        %v4881 = vadd.f32 0.0, %v4880
        %v4882 = vpop.f32.mrb[0].mxu0
        %v4883 = vadd.f32 0.0, %v4882
        %4884 = vmatprep.mubr.f32.mxu0 0.0
        %4885 = vmatmul.mubr.f32.gmra.mrb[0].mxu0 %v556
        %v4886 = vpop.f32.mrb[0].mxu0
        %v4887 = vadd.f32 0.0, %v4886
        %v4888 = vpop.f32.mrb[0].mxu0
        %v4889 = vadd.f32 0.0, %v4888
        %4890 = vmatprep.mubr.f32.mxu0 0.0
        %4891 = vmatmul.mubr.f32.gmra.mrb[0].mxu0 %v557
        %v4892 = vpop.f32.mrb[0].mxu0
        %v4893 = vadd.f32 0.0, %v4892
        %v4894 = vpop.f32.mrb[0].mxu0
        %v4895 = vadd.f32 0.0, %v4894
        %4896 = vmatprep.mubr.f32.mxu0 0.0
        %4897 = vmatmul.mubr.f32.gmra.mrb[0].mxu0 %v558
        %v4898 = vpop.f32.mrb[0].mxu0
        %v4899 = vadd.f32 0.0, %v4898
        %v4900 = vpop.f32.mrb[0].mxu0
        %v4901 = vadd.f32 0.0, %v4900
        %4902 = vdwg.mxu0
        %v4903 = vld [vmem:[%s14] sm:$0x3]
        %v4905 = vlaneseq
        %v4906 = vshrl.u32 %v4905, 7
        %v4907 = vsub.s32 0, %v4906
        %v4908 = vrot.slane %v4903, %v4907
        %v4909 = vlaneseq
        %v4910 = vshrl.u32 %v4909, 7
        %v4911 = vsub.s32 1, %v4910
        %v4912 = vrot.slane %v4903, %v4911
        %v4915 = vadd.f32 %v4809, %v4908
        %v4916 = vadd.f32 %v4811, %v4912
        %v4917 = vadd.f32 %v4815, %v4908
        %v4918 = vadd.f32 %v4817, %v4912
        %v4919 = vadd.f32 %v4821, %v4908
        %v4920 = vadd.f32 %v4823, %v4912
        %v4921 = vadd.f32 %v4827, %v4908
        %v4922 = vadd.f32 %v4829, %v4912
        %v4923 = vadd.f32 %v4833, %v4908
        %v4924 = vadd.f32 %v4835, %v4912
        %v4925 = vadd.f32 %v4839, %v4908
        %v4926 = vadd.f32 %v4841, %v4912
        %v4927 = vadd.f32 %v4845, %v4908
        %v4928 = vadd.f32 %v4847, %v4912
        %v4929 = vadd.f32 %v4851, %v4908
        %v4930 = vadd.f32 %v4853, %v4912
        %v4931 = vadd.f32 %v4857, %v4908
        %v4932 = vadd.f32 %v4859, %v4912
        %v4933 = vadd.f32 %v4863, %v4908
        %v4934 = vadd.f32 %v4865, %v4912
        %v4935 = vadd.f32 %v4869, %v4908
        %v4936 = vadd.f32 %v4871, %v4912
        %v4937 = vadd.f32 %v4875, %v4908
        %v4938 = vadd.f32 %v4877, %v4912
        %v4939 = vadd.f32 %v4881, %v4908
        %v4940 = vadd.f32 %v4883, %v4912
        %v4941 = vadd.f32 %v4887, %v4908
        %v4942 = vadd.f32 %v4889, %v4912
        %v4943 = vadd.f32 %v4893, %v4908
        %v4944 = vadd.f32 %v4895, %v4912
        %v4945 = vadd.f32 %v4899, %v4908
        %v4946 = vadd.f32 %v4901, %v4912
        %v4947 = vadd.f32 %v4678, %v4915
        %v4948 = vadd.f32 %v4679, %v4916
        %v4949 = vadd.f32 %v4680, %v4917
        %v4950 = vadd.f32 %v4681, %v4918
        %v4951 = vadd.f32 %v4682, %v4919
        %v4952 = vadd.f32 %v4683, %v4920
        %v4953 = vadd.f32 %v4684, %v4921
        %v4954 = vadd.f32 %v4685, %v4922
        %v4955 = vadd.f32 %v4686, %v4923
        %v4956 = vadd.f32 %v4687, %v4924
        %v4957 = vadd.f32 %v4688, %v4925
        %v4958 = vadd.f32 %v4689, %v4926
        %v4959 = vadd.f32 %v4690, %v4927
        %v4960 = vadd.f32 %v4691, %v4928
        %v4961 = vadd.f32 %v4692, %v4929
        %v4962 = vadd.f32 %v4693, %v4930
        %v4963 = vadd.f32 %v4694, %v4931
        %v4964 = vadd.f32 %v4695, %v4932
        %v4965 = vadd.f32 %v4696, %v4933
        %v4966 = vadd.f32 %v4697, %v4934
        %v4967 = vadd.f32 %v4698, %v4935
        %v4968 = vadd.f32 %v4699, %v4936
        %v4969 = vadd.f32 %v4700, %v4937
        %v4970 = vadd.f32 %v4701, %v4938
        %v4971 = vadd.f32 %v4702, %v4939
        %v4972 = vadd.f32 %v4703, %v4940
        %v4973 = vadd.f32 %v4704, %v4941
        %v4974 = vadd.f32 %v4705, %v4942
        %v4975 = vadd.f32 %v4706, %v4943
        %v4976 = vadd.f32 %v4707, %v4944
        %v4977 = vadd.f32 %v4708, %v4945
        %v4978 = vadd.f32 %v4709, %v4946
        %4979 = vst [vmem:[%s534] sm:$0xff] %v4947
        %4980 = vst [vmem:[%s534 + $0x8] sm:$0xff] %v4948
        %4981 = vst [vmem:[%s534 + $0x10] sm:$0xff] %v4949
        %4982 = vst [vmem:[%s534 + $0x18] sm:$0xff] %v4950
        %4983 = vst [vmem:[%s534 + $0x20] sm:$0xff] %v4951
        %4984 = vst [vmem:[%s534 + $0x28] sm:$0xff] %v4952
        %4985 = vst [vmem:[%s534 + $0x30] sm:$0xff] %v4953
        %4986 = vst [vmem:[%s534 + $0x38] sm:$0xff] %v4954
        %4987 = vst [vmem:[%s534 + $0x40] sm:$0xff] %v4955
        %4988 = vst [vmem:[%s534 + $0x48] sm:$0xff] %v4956
        %4989 = vst [vmem:[%s534 + $0x50] sm:$0xff] %v4957
        %4990 = vst [vmem:[%s534 + $0x58] sm:$0xff] %v4958
        %4991 = vst [vmem:[%s534 + $0x60] sm:$0xff] %v4959
        %4992 = vst [vmem:[%s534 + $0x68] sm:$0xff] %v4960
        %4993 = vst [vmem:[%s534 + $0x70] sm:$0xff] %v4961
        %4994 = vst [vmem:[%s534 + $0x78] sm:$0xff] %v4962
        %4995 = vst [vmem:[%s534 + $0x80] sm:$0xff] %v4963
        %4996 = vst [vmem:[%s534 + $0x88] sm:$0xff] %v4964
        %4997 = vst [vmem:[%s534 + $0x90] sm:$0xff] %v4965
        %4998 = vst [vmem:[%s534 + $0x98] sm:$0xff] %v4966
        %4999 = vst [vmem:[%s534 + $0xa0] sm:$0xff] %v4967
        %5000 = vst [vmem:[%s534 + $0xa8] sm:$0xff] %v4968
        %5001 = vst [vmem:[%s534 + $0xb0] sm:$0xff] %v4969
        %5002 = vst [vmem:[%s534 + $0xb8] sm:$0xff] %v4970
        %5003 = vst [vmem:[%s534 + $0xc0] sm:$0xff] %v4971
        %5004 = vst [vmem:[%s534 + $0xc8] sm:$0xff] %v4972
        %5005 = vst [vmem:[%s534 + $0xd0] sm:$0xff] %v4973
        %5006 = vst [vmem:[%s534 + $0xd8] sm:$0xff] %v4974
        %5007 = vst [vmem:[%s534 + $0xe0] sm:$0xff] %v4975
        %5008 = vst [vmem:[%s534 + $0xe8] sm:$0xff] %v4976
        %5009 = vst [vmem:[%s534 + $0xf0] sm:$0xff] %v4977
        %5010 = vst [vmem:[%s534 + $0xf8] sm:$0xff] %v4978
        %s5011 = sand.u32 %s359, 1
        %s5012 = scalar_lea.sflag [#allocation4], %s5011
        %s5013 = sand.u32 %s359, 1
        %s5014 = smul.addr %s5013, 256
        %s5015 = scalar_lea.vmem [#allocation8], %s5014
        // Predicated region
        $region93: #{tpu_custom_call.1} parent=79 // pred_check
          %p5016 = pneg %p369
        $region94: #{tpu_custom_call.1} parent=79 // pred_check_branch
          %5018 = sbr.rel (%p5016) target = $region96
        $region95: #{tpu_custom_call.1} parent=79 // pred_region
          %s5019 = smul.u32 8, %s31
          %s5021 = ssub.s32 4096, 4096
          %5022 = vsyncadd %s5012, %s5021
          %s5023 = smul.addr %s5019, 4
          %s5024 = smul.addr %s5023, 128
          %s5025 = scalar_lea.hbm %s15, %s5024
          %s5026 = sshll.u32 %s5015, 4
          %s5027 = int_to_ptr.vmem [resolvable:$true] %s5026
          %5032 = dma.vmem_to_hbm [thread:$0]  %s5027, 4096, %s5025, %s5012, 256, 256, 16
        $region96: #{tpu_custom_call.1} parent=79 // pred_fallthru
          _
      $region80: #{tpu_custom_call.1} parent=5 // pred_fallthru
        _
      %p5033 = scmp.le.s32.totalorder 2, %s26
      // Predicated region
      $region97: #{tpu_custom_call.1} parent=5 // pred_check
        %p5034 = pneg %p5033
      $region98: #{tpu_custom_call.1} parent=5 // pred_check_branch
        %5036 = sbr.rel (%p5034) target = $region100
      $region99: #{tpu_custom_call.1} parent=5 // pred_region
        %s5037 = ssub.s32 %s26, 2
        // Predicated region
        $region101: #{tpu_custom_call.1} parent=99 // pred_check
          %p5038 = pneg %p375
        $region102: #{tpu_custom_call.1} parent=99 // pred_check_branch
          %5040 = sbr.rel (%p5038) target = $region104
        $region103: #{tpu_custom_call.1} parent=99 // pred_region
          %s5041 = sand.u32 %s360, 1
          %s5042 = scalar_lea.sflag [#allocation4], %s5041
          %s5043 = sand.u32 %s360, 1
          %s5044 = smul.addr %s5043, 256
          %s5045 = scalar_lea.vmem [#allocation8], %s5044
          %5046 = dma.done %s5042, 4096
        $region104: #{tpu_custom_call.1} parent=99 // pred_fallthru
          _
      $region100: #{tpu_custom_call.1} parent=5 // pred_fallthru
        _
    $region6: #{tpu_custom_call.1} parent=1 // loop_footer
      %s30 = sadd.s32 1, %s26
    $region7: #{tpu_custom_call.1} parent=1 // loop_footer_branch
      %25 = sbr.rel target = $region3
    $region8: #{tpu_custom_call.1} parent=1 // loop_exit
      _
    %5047 = vsyncpa [#allocation3], 1
    %s5048 = scalar_lea.sflag [#allocation3], 1
    %5049 = vsyncpa %s5048, 1
    %5050 = vsyncpa [#allocation6], 1
    %5051 = vsyncpa [#allocation4], 1
    %s5052 = scalar_lea.sflag [#allocation4], 1
    %5053 = vsyncpa %s5052, 1

</llo_original>
